<compile_context>
chip_gen: v7x
topology: tpu7x:2x2x1
jax: 0.10.0
libtpu: 0.0.40
codegen_flags: <defaults>
</compile_context>

<pallas_src>
import functools

import numpy as np
import jax
import jax.numpy as jnp
from jax.experimental import pallas as pl
from jax.experimental.pallas import tpu as pltpu


# ----------------------------------------------------------------------------
# Kernel 1: ReLU + HookScale calibration (k-th order statistic / percentile).
#
# Grid axis = calibration batch index ("arbitrary": running max carried).
# The running-max scale lives in an SMEM scalar scratch; the (1,1) output is
# written only on the last batch (no (8,128) carrier tile, no per-batch HBM
# writeback).
#
# Selection: post-ReLU, gamma-clamped values live in [0, gamma], so the search
# bracket is analytic (no min/max reductions to initialize it). A statically
# unrolled multi-candidate count search (n_cand candidates per pass -> bracket
# shrinks by (n_cand+1)x per pass) replaces the 64 serially dependent
# bisection steps: with n_cand=8, n_outer=12 the serial reduction chain is 12
# stages (each stage's 8 compare+count reductions are independent) and the
# final bracket width ~ (gamma+1e-3)/9^12 ~ 3.5e-12 — below one f32 ulp for
# any result >= ~3e-5 — so the final "smallest element above lo" extraction
# returns the exact array element (== torch.sort(...)[int(n*p)-1]).
# ----------------------------------------------------------------------------
def _hookscale_calib_kernel(x_ref, o_ref, smax_ref, *, k, gamma, n_outer, n_cand):
    b = pl.program_id(0)
    nb = pl.num_programs(0)

    @pl.when(b == 0)
    def _():
        smax_ref[0, 0] = jnp.float32(0.0)          # self.scale buffer = 0.0

    x = x_ref[0]                                   # (ROWS, 128) pre-activation
    a = jnp.maximum(x, 0.0)                        # nn.ReLU()
    xc = jnp.minimum(a, jnp.float32(gamma))        # torch.where(x < gamma, x, gamma)

    kf = jnp.float32(k)
    # Analytic bracket: xc >= 0 so count(xc <= lo0) == 0 < k; xc <= gamma so
    # count(xc <= gamma) == n >= k.
    lo = jnp.float32(-1e-3)
    hi = jnp.float32(gamma)
    fracs = [(c + 1.0) / (n_cand + 1.0) for c in range(n_cand)]

    # Fully unrolled multi-way count search (LLO sees all iterations).
    for _ in range(n_outer):
        width = hi - lo
        ts = [lo + jnp.float32(f) * width for f in fracs]
        # n_cand independent compare+count reductions (pipeline on VPU/XLU).
        cnts = [jnp.sum((xc <= t).astype(jnp.float32)) for t in ts]
        new_lo, new_hi = lo, hi
        for t, c in zip(ts, cnts):
            below = c < kf                          # fewer than k elements <= t
            new_lo = jnp.where(below, jnp.maximum(new_lo, t), new_lo)
            new_hi = jnp.where(below, new_hi, jnp.minimum(new_hi, t))
        lo, hi = new_lo, new_hi

    # Exact array element: smallest element strictly above lo.
    kth = jnp.min(jnp.where(xc > lo, xc, jnp.float32(jnp.inf)))

    # self.scale = torch.max(percentile, self.scale)  (running max in SMEM)
    smax_ref[0, 0] = jnp.maximum(smax_ref[0, 0], kth)

    @pl.when(b == nb - 1)
    def _():
        o_ref[...] = jnp.full((1, 1), smax_ref[0, 0], dtype=o_ref.dtype)


def hookscale_percentile(calib_batches, *, p, gamma, n_outer=12, n_cand=8):
    """calib_batches: (B, N, C, H, W) pre-ReLU activations -> scalar scale (f32)."""
    B = calib_batches.shape[0]
    n = int(np.prod(calib_batches.shape[1:]))
    assert n % 128 == 0, "calibration activation size must be a multiple of 128"
    rows = n // 128
    # Whole batch resident in VMEM (double-buffered by the pipeline).
    batch_bytes = rows * 128 * 4
    assert batch_bytes <= 12 * 1024 * 1024, (
        "calibration batch too large for single-block kernel 1; "
        "TODO(synk): switch to histogram selection with a rows grid axis")
    k = int(n * p)                                  # torch: sort[int(n*p) - 1]
    assert 1 <= k <= n
    xf = calib_batches.reshape(B, rows, 128).astype(jnp.float32)

    scale = pl.pallas_call(
        functools.partial(_hookscale_calib_kernel, k=k, gamma=gamma,
                          n_outer=n_outer, n_cand=n_cand),
        out_shape=jax.ShapeDtypeStruct((1, 1), jnp.float32),
        grid=(B,),
        in_specs=[pl.BlockSpec((1, rows, 128), lambda b: (b, 0, 0))],
        out_specs=pl.BlockSpec((1, 1), lambda b: (0, 0)),
        scratch_shapes=[pltpu.SMEM((1, 1), jnp.float32)],
        compiler_params=pltpu.CompilerParams(
            dimension_semantics=("arbitrary",),
            vmem_limit_bytes=32 * 1024 * 1024),
    )(xf)
    return scale[0, 0]


# ----------------------------------------------------------------------------
# Kernel 2: converted block  Scale(1/scale) -> ReLU -> Scale(scale).
# Pure HBM-bandwidth-bound elementwise op: large row tiles (~0.5 MiB/block),
# native I/O dtype (no forced f32 cast of the stream), ragged tail handled by
# pl.cdiv + Pallas edge-block masking.
# ----------------------------------------------------------------------------
def _converted_block_kernel(scale_ref, x_ref, o_ref):
    s = scale_ref[0, 0]                             # SMEM scalar (f32)
    s_safe = jnp.maximum(s, jnp.float32(1e-12))     # guard: calibrated scale == 0
    inv = 1.0 / s_safe                              # Scale(1.0 / scale)
    y = x_ref[...].astype(jnp.float32) * inv
    y = jnp.maximum(y, 0.0)                         # Hookoutput(nn.ReLU(True))
    o_ref[...] = (y * s_safe).astype(o_ref.dtype)   # Scale(scale)


def converted_block_apply(x, scale, *, tile_rows=1024):
    """y = ReLU(x / scale) * scale, in x's native dtype."""
    assert tile_rows >= 8
    shape = x.shape
    dtype = x.dtype
    n = int(np.prod(shape))
    pad = (-n) % 128
    xf = x.reshape(-1)
    if pad:
        xf = jnp.pad(xf, (0, pad))
    rows = (n + pad) // 128
    xf = xf.reshape(rows, 128)

    # Block spans the full row dim when small; otherwise an (8-aligned) tile
    # with a masked edge block (grid via cdiv -> no tail rows dropped).
    block_rows = rows if rows <= tile_rows else (tile_rows // 8) * 8
    grid = (pl.cdiv(rows, block_rows),)
    s2 = jnp.reshape(scale.astype(jnp.float32), (1, 1))

    yf = pl.pallas_call(
        _converted_block_kernel,
        out_shape=jax.ShapeDtypeStruct((rows, 128), dtype),
        grid=grid,
        in_specs=[
            pl.BlockSpec(memory_space=pltpu.MemorySpace.SMEM),      # scale scalar
            pl.BlockSpec((block_rows, 128), lambda i: (i, 0)),      # x tile
        ],
        out_specs=pl.BlockSpec((block_rows, 128), lambda i: (i, 0)),
        compiler_params=pltpu.CompilerParams(
            dimension_semantics=("parallel",),
            vmem_limit_bytes=32 * 1024 * 1024),
    )(s2, xf)

    y = yf.reshape(-1)
    if pad:
        y = y[:n]
    return y.reshape(shape)


if __name__ == "__main__":
    # PercentConvertor config
    p = 0.9995
    gamma = 0.999
    channelnorm = False
    pseudo_convert = True
    batch_num = 2

    N, C, H, W = 2, 4, 16, 16
    key = jax.random.PRNGKey(0)
    k1, k2 = jax.random.split(key)
    calib = jax.random.normal(k1, (batch_num, N, C, H, W), dtype=jnp.float32)
    x_test = jax.random.normal(k2, (N, C, H, W), dtype=jnp.float32)

    # --- Pallas "conversion": calibrate HookScale, then run the converted block
    scale = hookscale_percentile(calib, p=p, gamma=gamma)
    y = converted_block_apply(x_test, scale)
    y = jax.block_until_ready(y)

    # --- pure-JAX reference of the PyTorch semantics
    n = N * C * H * W
    ref_scale = jnp.float32(0.0)
    for b in range(batch_num):
        a = jnp.minimum(jnp.maximum(calib[b], 0.0), gamma)
        srt = jnp.sort(a.reshape(-1))
        ref_scale = jnp.maximum(srt[int(n * p) - 1], ref_scale)
    ref_y = jnp.maximum(x_test * (1.0 / ref_scale), 0.0) * ref_scale

    np.testing.assert_allclose(float(scale), float(ref_scale), rtol=1e-6, atol=1e-7)
    np.testing.assert_allclose(np.asarray(y), np.asarray(ref_y), rtol=1e-6, atol=1e-6)
    print("KERNEL_OK")
</pallas_src>

<mosaic_0001>
module attributes {stable_mosaic.version = 11 : i64} {
  func.func @_hookscale_calib_kernel(%arg0: i32, %arg1: memref<1x16x128xf32, #tpu.memory_space<vmem>>, %arg2: memref<1x1xf32, #tpu.memory_space<vmem>>, %arg3: memref<1x1xf32, #tpu.memory_space<smem>>) attributes {dimension_semantics = [#tpu.dimension_semantics<arbitrary>], iteration_bounds = array<i64: 2>, scalar_prefetch = 0 : i64, scratch_operands = 1 : i64, tpu.core_type = #tpu.core_type<tc>, window_params = [{transform_indices = @transform_0, window_bounds = array<i64: 1, 16, 128>}, {pipeline_mode = #tpu.pipeline_mode<synchronous>, transform_indices = @transform_1, window_bounds = array<i64: 1, 1>}]} {
    %c0_i32 = arith.constant 0 : i32
    %0 = arith.cmpi eq, %arg0, %c0_i32 : i32
    %1 = arith.extui %0 : i1 to i32
    %c0_i32_0 = arith.constant 0 : i32
    %2 = arith.cmpi ne, %1, %c0_i32_0 : i32
    scf.if %2 {
      %cst_313 = arith.constant 0.000000e+00 : f32
      %c0_314 = arith.constant 0 : index
      %c0_315 = arith.constant 0 : index
      %1459 = memref.load %arg3[%c0_314, %c0_315] : memref<1x1xf32, #tpu.memory_space<smem>>
      memref.store %cst_313, %arg3[%c0_314, %c0_315] : memref<1x1xf32, #tpu.memory_space<smem>>
    } else {
    }
    %c0 = arith.constant 0 : index
    %c0_1 = arith.constant 0 : index
    %c0_2 = arith.constant 0 : index
    %3 = vector.load %arg1[%c0, %c0_1, %c0_2] : memref<1x16x128xf32, #tpu.memory_space<vmem>>, vector<1x16x128xf32>
    %4 = vector.shape_cast %3 : vector<1x16x128xf32> to vector<16x128xf32>
    %cst = arith.constant 0.000000e+00 : f32
    %5 = vector.broadcast %cst : f32 to vector<16x128xf32>
    %6 = arith.maximumf %4, %5 : vector<16x128xf32>
    %cst_3 = arith.constant 9.990000e-01 : f32
    %7 = vector.broadcast %cst_3 : f32 to vector<16x128xf32>
    %8 = arith.minimumf %6, %7 : vector<16x128xf32>
    %cst_4 = arith.constant 9.990000e-01 : f32
    %cst_5 = arith.constant -1.000000e-03 : f32
    %9 = arith.subf %cst_4, %cst_5 : f32
    %cst_6 = arith.constant 0.111111112 : f32
    %10 = arith.mulf %cst_6, %9 : f32
    %cst_7 = arith.constant -1.000000e-03 : f32
    %11 = arith.addf %cst_7, %10 : f32
    %cst_8 = arith.constant 0.222222224 : f32
    %12 = arith.mulf %cst_8, %9 : f32
    %cst_9 = arith.constant -1.000000e-03 : f32
    %13 = arith.addf %cst_9, %12 : f32
    %cst_10 = arith.constant 0.333333343 : f32
    %14 = arith.mulf %cst_10, %9 : f32
    %cst_11 = arith.constant -1.000000e-03 : f32
    %15 = arith.addf %cst_11, %14 : f32
    %cst_12 = arith.constant 0.444444448 : f32
    %16 = arith.mulf %cst_12, %9 : f32
    %cst_13 = arith.constant -1.000000e-03 : f32
    %17 = arith.addf %cst_13, %16 : f32
    %cst_14 = arith.constant 0.555555582 : f32
    %18 = arith.mulf %cst_14, %9 : f32
    %cst_15 = arith.constant -1.000000e-03 : f32
    %19 = arith.addf %cst_15, %18 : f32
    %cst_16 = arith.constant 0.666666686 : f32
    %20 = arith.mulf %cst_16, %9 : f32
    %cst_17 = arith.constant -1.000000e-03 : f32
    %21 = arith.addf %cst_17, %20 : f32
    %cst_18 = arith.constant 0.777777791 : f32
    %22 = arith.mulf %cst_18, %9 : f32
    %cst_19 = arith.constant -1.000000e-03 : f32
    %23 = arith.addf %cst_19, %22 : f32
    %cst_20 = arith.constant 0.888888895 : f32
    %24 = arith.mulf %cst_20, %9 : f32
    %cst_21 = arith.constant -1.000000e-03 : f32
    %25 = arith.addf %cst_21, %24 : f32
    %26 = vector.broadcast %11 : f32 to vector<16x128xf32>
    %27 = arith.cmpf ole, %8, %26 : vector<16x128xf32>
    %28 = arith.extui %27 : vector<16x128xi1> to vector<16x128xi32>
    %29 = arith.sitofp %28 : vector<16x128xi32> to vector<16x128xf32>
    %30 = vector.shape_cast %29 : vector<16x128xf32> to vector<1x16x128xf32>
    %cst_22 = arith.constant dense<0.000000e+00> : vector<1xf32>
    %31 = vector.multi_reduction <add>, %30, %cst_22 [1, 2] : vector<1x16x128xf32> to vector<1xf32>
    %32 = vector.shape_cast %31 : vector<1xf32> to vector<1x1x1xf32>
    %33 = vector.extract %32[0, 0, 0] : f32 from vector<1x1x1xf32>
    %34 = vector.broadcast %13 : f32 to vector<16x128xf32>
    %35 = arith.cmpf ole, %8, %34 : vector<16x128xf32>
    %36 = arith.extui %35 : vector<16x128xi1> to vector<16x128xi32>
    %37 = arith.sitofp %36 : vector<16x128xi32> to vector<16x128xf32>
    %38 = vector.shape_cast %37 : vector<16x128xf32> to vector<1x16x128xf32>
    %cst_23 = arith.constant dense<0.000000e+00> : vector<1xf32>
    %39 = vector.multi_reduction <add>, %38, %cst_23 [1, 2] : vector<1x16x128xf32> to vector<1xf32>
    %40 = vector.shape_cast %39 : vector<1xf32> to vector<1x1x1xf32>
    %41 = vector.extract %40[0, 0, 0] : f32 from vector<1x1x1xf32>
    %42 = vector.broadcast %15 : f32 to vector<16x128xf32>
    %43 = arith.cmpf ole, %8, %42 : vector<16x128xf32>
    %44 = arith.extui %43 : vector<16x128xi1> to vector<16x128xi32>
    %45 = arith.sitofp %44 : vector<16x128xi32> to vector<16x128xf32>
    %46 = vector.shape_cast %45 : vector<16x128xf32> to vector<1x16x128xf32>
    %cst_24 = arith.constant dense<0.000000e+00> : vector<1xf32>
    %47 = vector.multi_reduction <add>, %46, %cst_24 [1, 2] : vector<1x16x128xf32> to vector<1xf32>
    %48 = vector.shape_cast %47 : vector<1xf32> to vector<1x1x1xf32>
    %49 = vector.extract %48[0, 0, 0] : f32 from vector<1x1x1xf32>
    %50 = vector.broadcast %17 : f32 to vector<16x128xf32>
    %51 = arith.cmpf ole, %8, %50 : vector<16x128xf32>
    %52 = arith.extui %51 : vector<16x128xi1> to vector<16x128xi32>
    %53 = arith.sitofp %52 : vector<16x128xi32> to vector<16x128xf32>
    %54 = vector.shape_cast %53 : vector<16x128xf32> to vector<1x16x128xf32>
    %cst_25 = arith.constant dense<0.000000e+00> : vector<1xf32>
    %55 = vector.multi_reduction <add>, %54, %cst_25 [1, 2] : vector<1x16x128xf32> to vector<1xf32>
    %56 = vector.shape_cast %55 : vector<1xf32> to vector<1x1x1xf32>
    %57 = vector.extract %56[0, 0, 0] : f32 from vector<1x1x1xf32>
    %58 = vector.broadcast %19 : f32 to vector<16x128xf32>
    %59 = arith.cmpf ole, %8, %58 : vector<16x128xf32>
    %60 = arith.extui %59 : vector<16x128xi1> to vector<16x128xi32>
    %61 = arith.sitofp %60 : vector<16x128xi32> to vector<16x128xf32>
    %62 = vector.shape_cast %61 : vector<16x128xf32> to vector<1x16x128xf32>
    %cst_26 = arith.constant dense<0.000000e+00> : vector<1xf32>
    %63 = vector.multi_reduction <add>, %62, %cst_26 [1, 2] : vector<1x16x128xf32> to vector<1xf32>
    %64 = vector.shape_cast %63 : vector<1xf32> to vector<1x1x1xf32>
    %65 = vector.extract %64[0, 0, 0] : f32 from vector<1x1x1xf32>
    %66 = vector.broadcast %21 : f32 to vector<16x128xf32>
    %67 = arith.cmpf ole, %8, %66 : vector<16x128xf32>
    %68 = arith.extui %67 : vector<16x128xi1> to vector<16x128xi32>
    %69 = arith.sitofp %68 : vector<16x128xi32> to vector<16x128xf32>
    %70 = vector.shape_cast %69 : vector<16x128xf32> to vector<1x16x128xf32>
    %cst_27 = arith.constant dense<0.000000e+00> : vector<1xf32>
    %71 = vector.multi_reduction <add>, %70, %cst_27 [1, 2] : vector<1x16x128xf32> to vector<1xf32>
    %72 = vector.shape_cast %71 : vector<1xf32> to vector<1x1x1xf32>
    %73 = vector.extract %72[0, 0, 0] : f32 from vector<1x1x1xf32>
    %74 = vector.broadcast %23 : f32 to vector<16x128xf32>
    %75 = arith.cmpf ole, %8, %74 : vector<16x128xf32>
    %76 = arith.extui %75 : vector<16x128xi1> to vector<16x128xi32>
    %77 = arith.sitofp %76 : vector<16x128xi32> to vector<16x128xf32>
    %78 = vector.shape_cast %77 : vector<16x128xf32> to vector<1x16x128xf32>
    %cst_28 = arith.constant dense<0.000000e+00> : vector<1xf32>
    %79 = vector.multi_reduction <add>, %78, %cst_28 [1, 2] : vector<1x16x128xf32> to vector<1xf32>
    %80 = vector.shape_cast %79 : vector<1xf32> to vector<1x1x1xf32>
    %81 = vector.extract %80[0, 0, 0] : f32 from vector<1x1x1xf32>
    %82 = vector.broadcast %25 : f32 to vector<16x128xf32>
    %83 = arith.cmpf ole, %8, %82 : vector<16x128xf32>
    %84 = arith.extui %83 : vector<16x128xi1> to vector<16x128xi32>
    %85 = arith.sitofp %84 : vector<16x128xi32> to vector<16x128xf32>
    %86 = vector.shape_cast %85 : vector<16x128xf32> to vector<1x16x128xf32>
    %cst_29 = arith.constant dense<0.000000e+00> : vector<1xf32>
    %87 = vector.multi_reduction <add>, %86, %cst_29 [1, 2] : vector<1x16x128xf32> to vector<1xf32>
    %88 = vector.shape_cast %87 : vector<1xf32> to vector<1x1x1xf32>
    %89 = vector.extract %88[0, 0, 0] : f32 from vector<1x1x1xf32>
    %cst_30 = arith.constant 2.046000e+03 : f32
    %90 = arith.cmpf olt, %33, %cst_30 : f32
    %cst_31 = arith.constant -1.000000e-03 : f32
    %91 = arith.maximumf %cst_31, %11 : f32
    %cst_32 = arith.constant -1.000000e-03 : f32
    %92 = arith.select %90, %91, %cst_32 : f32
    %cst_33 = arith.constant 9.990000e-01 : f32
    %93 = arith.minimumf %cst_33, %11 : f32
    %cst_34 = arith.constant 9.990000e-01 : f32
    %94 = arith.select %90, %cst_34, %93 : f32
    %cst_35 = arith.constant 2.046000e+03 : f32
    %95 = arith.cmpf olt, %41, %cst_35 : f32
    %96 = arith.maximumf %92, %13 : f32
    %97 = arith.select %95, %96, %92 : f32
    %98 = arith.minimumf %94, %13 : f32
    %99 = arith.select %95, %94, %98 : f32
    %cst_36 = arith.constant 2.046000e+03 : f32
    %100 = arith.cmpf olt, %49, %cst_36 : f32
    %101 = arith.maximumf %97, %15 : f32
    %102 = arith.select %100, %101, %97 : f32
    %103 = arith.minimumf %99, %15 : f32
    %104 = arith.select %100, %99, %103 : f32
    %cst_37 = arith.constant 2.046000e+03 : f32
    %105 = arith.cmpf olt, %57, %cst_37 : f32
    %106 = arith.maximumf %102, %17 : f32
    %107 = arith.select %105, %106, %102 : f32
    %108 = arith.minimumf %104, %17 : f32
    %109 = arith.select %105, %104, %108 : f32
    %cst_38 = arith.constant 2.046000e+03 : f32
    %110 = arith.cmpf olt, %65, %cst_38 : f32
    %111 = arith.maximumf %107, %19 : f32
    %112 = arith.select %110, %111, %107 : f32
    %113 = arith.minimumf %109, %19 : f32
    %114 = arith.select %110, %109, %113 : f32
    %cst_39 = arith.constant 2.046000e+03 : f32
    %115 = arith.cmpf olt, %73, %cst_39 : f32
    %116 = arith.maximumf %112, %21 : f32
    %117 = arith.select %115, %116, %112 : f32
    %118 = arith.minimumf %114, %21 : f32
    %119 = arith.select %115, %114, %118 : f32
    %cst_40 = arith.constant 2.046000e+03 : f32
    %120 = arith.cmpf olt, %81, %cst_40 : f32
    %121 = arith.maximumf %117, %23 : f32
    %122 = arith.select %120, %121, %117 : f32
    %123 = arith.minimumf %119, %23 : f32
    %124 = arith.select %120, %119, %123 : f32
    %cst_41 = arith.constant 2.046000e+03 : f32
    %125 = arith.cmpf olt, %89, %cst_41 : f32
    %126 = arith.maximumf %122, %25 : f32
    %127 = arith.select %125, %126, %122 : f32
    %128 = arith.minimumf %124, %25 : f32
    %129 = arith.select %125, %124, %128 : f32
    %130 = arith.subf %129, %127 : f32
    %cst_42 = arith.constant 0.111111112 : f32
    %131 = arith.mulf %cst_42, %130 : f32
    %132 = arith.addf %127, %131 : f32
    %cst_43 = arith.constant 0.222222224 : f32
    %133 = arith.mulf %cst_43, %130 : f32
    %134 = arith.addf %127, %133 : f32
    %cst_44 = arith.constant 0.333333343 : f32
    %135 = arith.mulf %cst_44, %130 : f32
    %136 = arith.addf %127, %135 : f32
    %cst_45 = arith.constant 0.444444448 : f32
    %137 = arith.mulf %cst_45, %130 : f32
    %138 = arith.addf %127, %137 : f32
    %cst_46 = arith.constant 0.555555582 : f32
    %139 = arith.mulf %cst_46, %130 : f32
    %140 = arith.addf %127, %139 : f32
    %cst_47 = arith.constant 0.666666686 : f32
    %141 = arith.mulf %cst_47, %130 : f32
    %142 = arith.addf %127, %141 : f32
    %cst_48 = arith.constant 0.777777791 : f32
    %143 = arith.mulf %cst_48, %130 : f32
    %144 = arith.addf %127, %143 : f32
    %cst_49 = arith.constant 0.888888895 : f32
    %145 = arith.mulf %cst_49, %130 : f32
    %146 = arith.addf %127, %145 : f32
    %147 = vector.broadcast %132 : f32 to vector<16x128xf32>
    %148 = arith.cmpf ole, %8, %147 : vector<16x128xf32>
    %149 = arith.extui %148 : vector<16x128xi1> to vector<16x128xi32>
    %150 = arith.sitofp %149 : vector<16x128xi32> to vector<16x128xf32>
    %151 = vector.shape_cast %150 : vector<16x128xf32> to vector<1x16x128xf32>
    %cst_50 = arith.constant dense<0.000000e+00> : vector<1xf32>
    %152 = vector.multi_reduction <add>, %151, %cst_50 [1, 2] : vector<1x16x128xf32> to vector<1xf32>
    %153 = vector.shape_cast %152 : vector<1xf32> to vector<1x1x1xf32>
    %154 = vector.extract %153[0, 0, 0] : f32 from vector<1x1x1xf32>
    %155 = vector.broadcast %134 : f32 to vector<16x128xf32>
    %156 = arith.cmpf ole, %8, %155 : vector<16x128xf32>
    %157 = arith.extui %156 : vector<16x128xi1> to vector<16x128xi32>
    %158 = arith.sitofp %157 : vector<16x128xi32> to vector<16x128xf32>
    %159 = vector.shape_cast %158 : vector<16x128xf32> to vector<1x16x128xf32>
    %cst_51 = arith.constant dense<0.000000e+00> : vector<1xf32>
    %160 = vector.multi_reduction <add>, %159, %cst_51 [1, 2] : vector<1x16x128xf32> to vector<1xf32>
    %161 = vector.shape_cast %160 : vector<1xf32> to vector<1x1x1xf32>
    %162 = vector.extract %161[0, 0, 0] : f32 from vector<1x1x1xf32>
    %163 = vector.broadcast %136 : f32 to vector<16x128xf32>
    %164 = arith.cmpf ole, %8, %163 : vector<16x128xf32>
    %165 = arith.extui %164 : vector<16x128xi1> to vector<16x128xi32>
    %166 = arith.sitofp %165 : vector<16x128xi32> to vector<16x128xf32>
    %167 = vector.shape_cast %166 : vector<16x128xf32> to vector<1x16x128xf32>
    %cst_52 = arith.constant dense<0.000000e+00> : vector<1xf32>
    %168 = vector.multi_reduction <add>, %167, %cst_52 [1, 2] : vector<1x16x128xf32> to vector<1xf32>
    %169 = vector.shape_cast %168 : vector<1xf32> to vector<1x1x1xf32>
    %170 = vector.extract %169[0, 0, 0] : f32 from vector<1x1x1xf32>
    %171 = vector.broadcast %138 : f32 to vector<16x128xf32>
    %172 = arith.cmpf ole, %8, %171 : vector<16x128xf32>
    %173 = arith.extui %172 : vector<16x128xi1> to vector<16x128xi32>
    %174 = arith.sitofp %173 : vector<16x128xi32> to vector<16x128xf32>
    %175 = vector.shape_cast %174 : vector<16x128xf32> to vector<1x16x128xf32>
    %cst_53 = arith.constant dense<0.000000e+00> : vector<1xf32>
    %176 = vector.multi_reduction <add>, %175, %cst_53 [1, 2] : vector<1x16x128xf32> to vector<1xf32>
    %177 = vector.shape_cast %176 : vector<1xf32> to vector<1x1x1xf32>
    %178 = vector.extract %177[0, 0, 0] : f32 from vector<1x1x1xf32>
    %179 = vector.broadcast %140 : f32 to vector<16x128xf32>
    %180 = arith.cmpf ole, %8, %179 : vector<16x128xf32>
    %181 = arith.extui %180 : vector<16x128xi1> to vector<16x128xi32>
    %182 = arith.sitofp %181 : vector<16x128xi32> to vector<16x128xf32>
    %183 = vector.shape_cast %182 : vector<16x128xf32> to vector<1x16x128xf32>
    %cst_54 = arith.constant dense<0.000000e+00> : vector<1xf32>
    %184 = vector.multi_reduction <add>, %183, %cst_54 [1, 2] : vector<1x16x128xf32> to vector<1xf32>
    %185 = vector.shape_cast %184 : vector<1xf32> to vector<1x1x1xf32>
    %186 = vector.extract %185[0, 0, 0] : f32 from vector<1x1x1xf32>
    %187 = vector.broadcast %142 : f32 to vector<16x128xf32>
    %188 = arith.cmpf ole, %8, %187 : vector<16x128xf32>
    %189 = arith.extui %188 : vector<16x128xi1> to vector<16x128xi32>
    %190 = arith.sitofp %189 : vector<16x128xi32> to vector<16x128xf32>
    %191 = vector.shape_cast %190 : vector<16x128xf32> to vector<1x16x128xf32>
    %cst_55 = arith.constant dense<0.000000e+00> : vector<1xf32>
    %192 = vector.multi_reduction <add>, %191, %cst_55 [1, 2] : vector<1x16x128xf32> to vector<1xf32>
    %193 = vector.shape_cast %192 : vector<1xf32> to vector<1x1x1xf32>
    %194 = vector.extract %193[0, 0, 0] : f32 from vector<1x1x1xf32>
    %195 = vector.broadcast %144 : f32 to vector<16x128xf32>
    %196 = arith.cmpf ole, %8, %195 : vector<16x128xf32>
    %197 = arith.extui %196 : vector<16x128xi1> to vector<16x128xi32>
    %198 = arith.sitofp %197 : vector<16x128xi32> to vector<16x128xf32>
    %199 = vector.shape_cast %198 : vector<16x128xf32> to vector<1x16x128xf32>
    %cst_56 = arith.constant dense<0.000000e+00> : vector<1xf32>
    %200 = vector.multi_reduction <add>, %199, %cst_56 [1, 2] : vector<1x16x128xf32> to vector<1xf32>
    %201 = vector.shape_cast %200 : vector<1xf32> to vector<1x1x1xf32>
    %202 = vector.extract %201[0, 0, 0] : f32 from vector<1x1x1xf32>
    %203 = vector.broadcast %146 : f32 to vector<16x128xf32>
    %204 = arith.cmpf ole, %8, %203 : vector<16x128xf32>
    %205 = arith.extui %204 : vector<16x128xi1> to vector<16x128xi32>
    %206 = arith.sitofp %205 : vector<16x128xi32> to vector<16x128xf32>
    %207 = vector.shape_cast %206 : vector<16x128xf32> to vector<1x16x128xf32>
    %cst_57 = arith.constant dense<0.000000e+00> : vector<1xf32>
    %208 = vector.multi_reduction <add>, %207, %cst_57 [1, 2] : vector<1x16x128xf32> to vector<1xf32>
    %209 = vector.shape_cast %208 : vector<1xf32> to vector<1x1x1xf32>
    %210 = vector.extract %209[0, 0, 0] : f32 from vector<1x1x1xf32>
    %cst_58 = arith.constant 2.046000e+03 : f32
    %211 = arith.cmpf olt, %154, %cst_58 : f32
    %212 = arith.maximumf %127, %132 : f32
    %213 = arith.select %211, %212, %127 : f32
    %214 = arith.minimumf %129, %132 : f32
    %215 = arith.select %211, %129, %214 : f32
    %cst_59 = arith.constant 2.046000e+03 : f32
    %216 = arith.cmpf olt, %162, %cst_59 : f32
    %217 = arith.maximumf %213, %134 : f32
    %218 = arith.select %216, %217, %213 : f32
    %219 = arith.minimumf %215, %134 : f32
    %220 = arith.select %216, %215, %219 : f32
    %cst_60 = arith.constant 2.046000e+03 : f32
    %221 = arith.cmpf olt, %170, %cst_60 : f32
    %222 = arith.maximumf %218, %136 : f32
    %223 = arith.select %221, %222, %218 : f32
    %224 = arith.minimumf %220, %136 : f32
    %225 = arith.select %221, %220, %224 : f32
    %cst_61 = arith.constant 2.046000e+03 : f32
    %226 = arith.cmpf olt, %178, %cst_61 : f32
    %227 = arith.maximumf %223, %138 : f32
    %228 = arith.select %226, %227, %223 : f32
    %229 = arith.minimumf %225, %138 : f32
    %230 = arith.select %226, %225, %229 : f32
    %cst_62 = arith.constant 2.046000e+03 : f32
    %231 = arith.cmpf olt, %186, %cst_62 : f32
    %232 = arith.maximumf %228, %140 : f32
    %233 = arith.select %231, %232, %228 : f32
    %234 = arith.minimumf %230, %140 : f32
    %235 = arith.select %231, %230, %234 : f32
    %cst_63 = arith.constant 2.046000e+03 : f32
    %236 = arith.cmpf olt, %194, %cst_63 : f32
    %237 = arith.maximumf %233, %142 : f32
    %238 = arith.select %236, %237, %233 : f32
    %239 = arith.minimumf %235, %142 : f32
    %240 = arith.select %236, %235, %239 : f32
    %cst_64 = arith.constant 2.046000e+03 : f32
    %241 = arith.cmpf olt, %202, %cst_64 : f32
    %242 = arith.maximumf %238, %144 : f32
    %243 = arith.select %241, %242, %238 : f32
    %244 = arith.minimumf %240, %144 : f32
    %245 = arith.select %241, %240, %244 : f32
    %cst_65 = arith.constant 2.046000e+03 : f32
    %246 = arith.cmpf olt, %210, %cst_65 : f32
    %247 = arith.maximumf %243, %146 : f32
    %248 = arith.select %246, %247, %243 : f32
    %249 = arith.minimumf %245, %146 : f32
    %250 = arith.select %246, %245, %249 : f32
    %251 = arith.subf %250, %248 : f32
    %cst_66 = arith.constant 0.111111112 : f32
    %252 = arith.mulf %cst_66, %251 : f32
    %253 = arith.addf %248, %252 : f32
    %cst_67 = arith.constant 0.222222224 : f32
    %254 = arith.mulf %cst_67, %251 : f32
    %255 = arith.addf %248, %254 : f32
    %cst_68 = arith.constant 0.333333343 : f32
    %256 = arith.mulf %cst_68, %251 : f32
    %257 = arith.addf %248, %256 : f32
    %cst_69 = arith.constant 0.444444448 : f32
    %258 = arith.mulf %cst_69, %251 : f32
    %259 = arith.addf %248, %258 : f32
    %cst_70 = arith.constant 0.555555582 : f32
    %260 = arith.mulf %cst_70, %251 : f32
    %261 = arith.addf %248, %260 : f32
    %cst_71 = arith.constant 0.666666686 : f32
    %262 = arith.mulf %cst_71, %251 : f32
    %263 = arith.addf %248, %262 : f32
    %cst_72 = arith.constant 0.777777791 : f32
    %264 = arith.mulf %cst_72, %251 : f32
    %265 = arith.addf %248, %264 : f32
    %cst_73 = arith.constant 0.888888895 : f32
    %266 = arith.mulf %cst_73, %251 : f32
    %267 = arith.addf %248, %266 : f32
    %268 = vector.broadcast %253 : f32 to vector<16x128xf32>
    %269 = arith.cmpf ole, %8, %268 : vector<16x128xf32>
    %270 = arith.extui %269 : vector<16x128xi1> to vector<16x128xi32>
    %271 = arith.sitofp %270 : vector<16x128xi32> to vector<16x128xf32>
    %272 = vector.shape_cast %271 : vector<16x128xf32> to vector<1x16x128xf32>
    %cst_74 = arith.constant dense<0.000000e+00> : vector<1xf32>
    %273 = vector.multi_reduction <add>, %272, %cst_74 [1, 2] : vector<1x16x128xf32> to vector<1xf32>
    %274 = vector.shape_cast %273 : vector<1xf32> to vector<1x1x1xf32>
    %275 = vector.extract %274[0, 0, 0] : f32 from vector<1x1x1xf32>
    %276 = vector.broadcast %255 : f32 to vector<16x128xf32>
    %277 = arith.cmpf ole, %8, %276 : vector<16x128xf32>
    %278 = arith.extui %277 : vector<16x128xi1> to vector<16x128xi32>
    %279 = arith.sitofp %278 : vector<16x128xi32> to vector<16x128xf32>
    %280 = vector.shape_cast %279 : vector<16x128xf32> to vector<1x16x128xf32>
    %cst_75 = arith.constant dense<0.000000e+00> : vector<1xf32>
    %281 = vector.multi_reduction <add>, %280, %cst_75 [1, 2] : vector<1x16x128xf32> to vector<1xf32>
    %282 = vector.shape_cast %281 : vector<1xf32> to vector<1x1x1xf32>
    %283 = vector.extract %282[0, 0, 0] : f32 from vector<1x1x1xf32>
    %284 = vector.broadcast %257 : f32 to vector<16x128xf32>
    %285 = arith.cmpf ole, %8, %284 : vector<16x128xf32>
    %286 = arith.extui %285 : vector<16x128xi1> to vector<16x128xi32>
    %287 = arith.sitofp %286 : vector<16x128xi32> to vector<16x128xf32>
    %288 = vector.shape_cast %287 : vector<16x128xf32> to vector<1x16x128xf32>
    %cst_76 = arith.constant dense<0.000000e+00> : vector<1xf32>
    %289 = vector.multi_reduction <add>, %288, %cst_76 [1, 2] : vector<1x16x128xf32> to vector<1xf32>
    %290 = vector.shape_cast %289 : vector<1xf32> to vector<1x1x1xf32>
    %291 = vector.extract %290[0, 0, 0] : f32 from vector<1x1x1xf32>
    %292 = vector.broadcast %259 : f32 to vector<16x128xf32>
    %293 = arith.cmpf ole, %8, %292 : vector<16x128xf32>
    %294 = arith.extui %293 : vector<16x128xi1> to vector<16x128xi32>
    %295 = arith.sitofp %294 : vector<16x128xi32> to vector<16x128xf32>
    %296 = vector.shape_cast %295 : vector<16x128xf32> to vector<1x16x128xf32>
    %cst_77 = arith.constant dense<0.000000e+00> : vector<1xf32>
    %297 = vector.multi_reduction <add>, %296, %cst_77 [1, 2] : vector<1x16x128xf32> to vector<1xf32>
    %298 = vector.shape_cast %297 : vector<1xf32> to vector<1x1x1xf32>
    %299 = vector.extract %298[0, 0, 0] : f32 from vector<1x1x1xf32>
    %300 = vector.broadcast %261 : f32 to vector<16x128xf32>
    %301 = arith.cmpf ole, %8, %300 : vector<16x128xf32>
    %302 = arith.extui %301 : vector<16x128xi1> to vector<16x128xi32>
    %303 = arith.sitofp %302 : vector<16x128xi32> to vector<16x128xf32>
    %304 = vector.shape_cast %303 : vector<16x128xf32> to vector<1x16x128xf32>
    %cst_78 = arith.constant dense<0.000000e+00> : vector<1xf32>
    %305 = vector.multi_reduction <add>, %304, %cst_78 [1, 2] : vector<1x16x128xf32> to vector<1xf32>
    %306 = vector.shape_cast %305 : vector<1xf32> to vector<1x1x1xf32>
    %307 = vector.extract %306[0, 0, 0] : f32 from vector<1x1x1xf32>
    %308 = vector.broadcast %263 : f32 to vector<16x128xf32>
    %309 = arith.cmpf ole, %8, %308 : vector<16x128xf32>
    %310 = arith.extui %309 : vector<16x128xi1> to vector<16x128xi32>
    %311 = arith.sitofp %310 : vector<16x128xi32> to vector<16x128xf32>
    %312 = vector.shape_cast %311 : vector<16x128xf32> to vector<1x16x128xf32>
    %cst_79 = arith.constant dense<0.000000e+00> : vector<1xf32>
    %313 = vector.multi_reduction <add>, %312, %cst_79 [1, 2] : vector<1x16x128xf32> to vector<1xf32>
    %314 = vector.shape_cast %313 : vector<1xf32> to vector<1x1x1xf32>
    %315 = vector.extract %314[0, 0, 0] : f32 from vector<1x1x1xf32>
    %316 = vector.broadcast %265 : f32 to vector<16x128xf32>
    %317 = arith.cmpf ole, %8, %316 : vector<16x128xf32>
    %318 = arith.extui %317 : vector<16x128xi1> to vector<16x128xi32>
    %319 = arith.sitofp %318 : vector<16x128xi32> to vector<16x128xf32>
    %320 = vector.shape_cast %319 : vector<16x128xf32> to vector<1x16x128xf32>
    %cst_80 = arith.constant dense<0.000000e+00> : vector<1xf32>
    %321 = vector.multi_reduction <add>, %320, %cst_80 [1, 2] : vector<1x16x128xf32> to vector<1xf32>
    %322 = vector.shape_cast %321 : vector<1xf32> to vector<1x1x1xf32>
    %323 = vector.extract %322[0, 0, 0] : f32 from vector<1x1x1xf32>
    %324 = vector.broadcast %267 : f32 to vector<16x128xf32>
    %325 = arith.cmpf ole, %8, %324 : vector<16x128xf32>
    %326 = arith.extui %325 : vector<16x128xi1> to vector<16x128xi32>
    %327 = arith.sitofp %326 : vector<16x128xi32> to vector<16x128xf32>
    %328 = vector.shape_cast %327 : vector<16x128xf32> to vector<1x16x128xf32>
    %cst_81 = arith.constant dense<0.000000e+00> : vector<1xf32>
    %329 = vector.multi_reduction <add>, %328, %cst_81 [1, 2] : vector<1x16x128xf32> to vector<1xf32>
    %330 = vector.shape_cast %329 : vector<1xf32> to vector<1x1x1xf32>
    %331 = vector.extract %330[0, 0, 0] : f32 from vector<1x1x1xf32>
    %cst_82 = arith.constant 2.046000e+03 : f32
    %332 = arith.cmpf olt, %275, %cst_82 : f32
    %333 = arith.maximumf %248, %253 : f32
    %334 = arith.select %332, %333, %248 : f32
    %335 = arith.minimumf %250, %253 : f32
    %336 = arith.select %332, %250, %335 : f32
    %cst_83 = arith.constant 2.046000e+03 : f32
    %337 = arith.cmpf olt, %283, %cst_83 : f32
    %338 = arith.maximumf %334, %255 : f32
    %339 = arith.select %337, %338, %334 : f32
    %340 = arith.minimumf %336, %255 : f32
    %341 = arith.select %337, %336, %340 : f32
    %cst_84 = arith.constant 2.046000e+03 : f32
    %342 = arith.cmpf olt, %291, %cst_84 : f32
    %343 = arith.maximumf %339, %257 : f32
    %344 = arith.select %342, %343, %339 : f32
    %345 = arith.minimumf %341, %257 : f32
    %346 = arith.select %342, %341, %345 : f32
    %cst_85 = arith.constant 2.046000e+03 : f32
    %347 = arith.cmpf olt, %299, %cst_85 : f32
    %348 = arith.maximumf %344, %259 : f32
    %349 = arith.select %347, %348, %344 : f32
    %350 = arith.minimumf %346, %259 : f32
    %351 = arith.select %347, %346, %350 : f32
    %cst_86 = arith.constant 2.046000e+03 : f32
    %352 = arith.cmpf olt, %307, %cst_86 : f32
    %353 = arith.maximumf %349, %261 : f32
    %354 = arith.select %352, %353, %349 : f32
    %355 = arith.minimumf %351, %261 : f32
    %356 = arith.select %352, %351, %355 : f32
    %cst_87 = arith.constant 2.046000e+03 : f32
    %357 = arith.cmpf olt, %315, %cst_87 : f32
    %358 = arith.maximumf %354, %263 : f32
    %359 = arith.select %357, %358, %354 : f32
    %360 = arith.minimumf %356, %263 : f32
    %361 = arith.select %357, %356, %360 : f32
    %cst_88 = arith.constant 2.046000e+03 : f32
    %362 = arith.cmpf olt, %323, %cst_88 : f32
    %363 = arith.maximumf %359, %265 : f32
    %364 = arith.select %362, %363, %359 : f32
    %365 = arith.minimumf %361, %265 : f32
    %366 = arith.select %362, %361, %365 : f32
    %cst_89 = arith.constant 2.046000e+03 : f32
    %367 = arith.cmpf olt, %331, %cst_89 : f32
    %368 = arith.maximumf %364, %267 : f32
    %369 = arith.select %367, %368, %364 : f32
    %370 = arith.minimumf %366, %267 : f32
    %371 = arith.select %367, %366, %370 : f32
    %372 = arith.subf %371, %369 : f32
    %cst_90 = arith.constant 0.111111112 : f32
    %373 = arith.mulf %cst_90, %372 : f32
    %374 = arith.addf %369, %373 : f32
    %cst_91 = arith.constant 0.222222224 : f32
    %375 = arith.mulf %cst_91, %372 : f32
    %376 = arith.addf %369, %375 : f32
    %cst_92 = arith.constant 0.333333343 : f32
    %377 = arith.mulf %cst_92, %372 : f32
    %378 = arith.addf %369, %377 : f32
    %cst_93 = arith.constant 0.444444448 : f32
    %379 = arith.mulf %cst_93, %372 : f32
    %380 = arith.addf %369, %379 : f32
    %cst_94 = arith.constant 0.555555582 : f32
    %381 = arith.mulf %cst_94, %372 : f32
    %382 = arith.addf %369, %381 : f32
    %cst_95 = arith.constant 0.666666686 : f32
    %383 = arith.mulf %cst_95, %372 : f32
    %384 = arith.addf %369, %383 : f32
    %cst_96 = arith.constant 0.777777791 : f32
    %385 = arith.mulf %cst_96, %372 : f32
    %386 = arith.addf %369, %385 : f32
    %cst_97 = arith.constant 0.888888895 : f32
    %387 = arith.mulf %cst_97, %372 : f32
    %388 = arith.addf %369, %387 : f32
    %389 = vector.broadcast %374 : f32 to vector<16x128xf32>
    %390 = arith.cmpf ole, %8, %389 : vector<16x128xf32>
    %391 = arith.extui %390 : vector<16x128xi1> to vector<16x128xi32>
    %392 = arith.sitofp %391 : vector<16x128xi32> to vector<16x128xf32>
    %393 = vector.shape_cast %392 : vector<16x128xf32> to vector<1x16x128xf32>
    %cst_98 = arith.constant dense<0.000000e+00> : vector<1xf32>
    %394 = vector.multi_reduction <add>, %393, %cst_98 [1, 2] : vector<1x16x128xf32> to vector<1xf32>
    %395 = vector.shape_cast %394 : vector<1xf32> to vector<1x1x1xf32>
    %396 = vector.extract %395[0, 0, 0] : f32 from vector<1x1x1xf32>
    %397 = vector.broadcast %376 : f32 to vector<16x128xf32>
    %398 = arith.cmpf ole, %8, %397 : vector<16x128xf32>
    %399 = arith.extui %398 : vector<16x128xi1> to vector<16x128xi32>
    %400 = arith.sitofp %399 : vector<16x128xi32> to vector<16x128xf32>
    %401 = vector.shape_cast %400 : vector<16x128xf32> to vector<1x16x128xf32>
    %cst_99 = arith.constant dense<0.000000e+00> : vector<1xf32>
    %402 = vector.multi_reduction <add>, %401, %cst_99 [1, 2] : vector<1x16x128xf32> to vector<1xf32>
    %403 = vector.shape_cast %402 : vector<1xf32> to vector<1x1x1xf32>
    %404 = vector.extract %403[0, 0, 0] : f32 from vector<1x1x1xf32>
    %405 = vector.broadcast %378 : f32 to vector<16x128xf32>
    %406 = arith.cmpf ole, %8, %405 : vector<16x128xf32>
    %407 = arith.extui %406 : vector<16x128xi1> to vector<16x128xi32>
    %408 = arith.sitofp %407 : vector<16x128xi32> to vector<16x128xf32>
    %409 = vector.shape_cast %408 : vector<16x128xf32> to vector<1x16x128xf32>
    %cst_100 = arith.constant dense<0.000000e+00> : vector<1xf32>
    %410 = vector.multi_reduction <add>, %409, %cst_100 [1, 2] : vector<1x16x128xf32> to vector<1xf32>
    %411 = vector.shape_cast %410 : vector<1xf32> to vector<1x1x1xf32>
    %412 = vector.extract %411[0, 0, 0] : f32 from vector<1x1x1xf32>
    %413 = vector.broadcast %380 : f32 to vector<16x128xf32>
    %414 = arith.cmpf ole, %8, %413 : vector<16x128xf32>
    %415 = arith.extui %414 : vector<16x128xi1> to vector<16x128xi32>
    %416 = arith.sitofp %415 : vector<16x128xi32> to vector<16x128xf32>
    %417 = vector.shape_cast %416 : vector<16x128xf32> to vector<1x16x128xf32>
    %cst_101 = arith.constant dense<0.000000e+00> : vector<1xf32>
    %418 = vector.multi_reduction <add>, %417, %cst_101 [1, 2] : vector<1x16x128xf32> to vector<1xf32>
    %419 = vector.shape_cast %418 : vector<1xf32> to vector<1x1x1xf32>
    %420 = vector.extract %419[0, 0, 0] : f32 from vector<1x1x1xf32>
    %421 = vector.broadcast %382 : f32 to vector<16x128xf32>
    %422 = arith.cmpf ole, %8, %421 : vector<16x128xf32>
    %423 = arith.extui %422 : vector<16x128xi1> to vector<16x128xi32>
    %424 = arith.sitofp %423 : vector<16x128xi32> to vector<16x128xf32>
    %425 = vector.shape_cast %424 : vector<16x128xf32> to vector<1x16x128xf32>
    %cst_102 = arith.constant dense<0.000000e+00> : vector<1xf32>
    %426 = vector.multi_reduction <add>, %425, %cst_102 [1, 2] : vector<1x16x128xf32> to vector<1xf32>
    %427 = vector.shape_cast %426 : vector<1xf32> to vector<1x1x1xf32>
    %428 = vector.extract %427[0, 0, 0] : f32 from vector<1x1x1xf32>
    %429 = vector.broadcast %384 : f32 to vector<16x128xf32>
    %430 = arith.cmpf ole, %8, %429 : vector<16x128xf32>
    %431 = arith.extui %430 : vector<16x128xi1> to vector<16x128xi32>
    %432 = arith.sitofp %431 : vector<16x128xi32> to vector<16x128xf32>
    %433 = vector.shape_cast %432 : vector<16x128xf32> to vector<1x16x128xf32>
    %cst_103 = arith.constant dense<0.000000e+00> : vector<1xf32>
    %434 = vector.multi_reduction <add>, %433, %cst_103 [1, 2] : vector<1x16x128xf32> to vector<1xf32>
    %435 = vector.shape_cast %434 : vector<1xf32> to vector<1x1x1xf32>
    %436 = vector.extract %435[0, 0, 0] : f32 from vector<1x1x1xf32>
    %437 = vector.broadcast %386 : f32 to vector<16x128xf32>
    %438 = arith.cmpf ole, %8, %437 : vector<16x128xf32>
    %439 = arith.extui %438 : vector<16x128xi1> to vector<16x128xi32>
    %440 = arith.sitofp %439 : vector<16x128xi32> to vector<16x128xf32>
    %441 = vector.shape_cast %440 : vector<16x128xf32> to vector<1x16x128xf32>
    %cst_104 = arith.constant dense<0.000000e+00> : vector<1xf32>
    %442 = vector.multi_reduction <add>, %441, %cst_104 [1, 2] : vector<1x16x128xf32> to vector<1xf32>
    %443 = vector.shape_cast %442 : vector<1xf32> to vector<1x1x1xf32>
    %444 = vector.extract %443[0, 0, 0] : f32 from vector<1x1x1xf32>
    %445 = vector.broadcast %388 : f32 to vector<16x128xf32>
    %446 = arith.cmpf ole, %8, %445 : vector<16x128xf32>
    %447 = arith.extui %446 : vector<16x128xi1> to vector<16x128xi32>
    %448 = arith.sitofp %447 : vector<16x128xi32> to vector<16x128xf32>
    %449 = vector.shape_cast %448 : vector<16x128xf32> to vector<1x16x128xf32>
    %cst_105 = arith.constant dense<0.000000e+00> : vector<1xf32>
    %450 = vector.multi_reduction <add>, %449, %cst_105 [1, 2] : vector<1x16x128xf32> to vector<1xf32>
    %451 = vector.shape_cast %450 : vector<1xf32> to vector<1x1x1xf32>
    %452 = vector.extract %451[0, 0, 0] : f32 from vector<1x1x1xf32>
    %cst_106 = arith.constant 2.046000e+03 : f32
    %453 = arith.cmpf olt, %396, %cst_106 : f32
    %454 = arith.maximumf %369, %374 : f32
    %455 = arith.select %453, %454, %369 : f32
    %456 = arith.minimumf %371, %374 : f32
    %457 = arith.select %453, %371, %456 : f32
    %cst_107 = arith.constant 2.046000e+03 : f32
    %458 = arith.cmpf olt, %404, %cst_107 : f32
    %459 = arith.maximumf %455, %376 : f32
    %460 = arith.select %458, %459, %455 : f32
    %461 = arith.minimumf %457, %376 : f32
    %462 = arith.select %458, %457, %461 : f32
    %cst_108 = arith.constant 2.046000e+03 : f32
    %463 = arith.cmpf olt, %412, %cst_108 : f32
    %464 = arith.maximumf %460, %378 : f32
    %465 = arith.select %463, %464, %460 : f32
    %466 = arith.minimumf %462, %378 : f32
    %467 = arith.select %463, %462, %466 : f32
    %cst_109 = arith.constant 2.046000e+03 : f32
    %468 = arith.cmpf olt, %420, %cst_109 : f32
    %469 = arith.maximumf %465, %380 : f32
    %470 = arith.select %468, %469, %465 : f32
    %471 = arith.minimumf %467, %380 : f32
    %472 = arith.select %468, %467, %471 : f32
    %cst_110 = arith.constant 2.046000e+03 : f32
    %473 = arith.cmpf olt, %428, %cst_110 : f32
    %474 = arith.maximumf %470, %382 : f32
    %475 = arith.select %473, %474, %470 : f32
    %476 = arith.minimumf %472, %382 : f32
    %477 = arith.select %473, %472, %476 : f32
    %cst_111 = arith.constant 2.046000e+03 : f32
    %478 = arith.cmpf olt, %436, %cst_111 : f32
    %479 = arith.maximumf %475, %384 : f32
    %480 = arith.select %478, %479, %475 : f32
    %481 = arith.minimumf %477, %384 : f32
    %482 = arith.select %478, %477, %481 : f32
    %cst_112 = arith.constant 2.046000e+03 : f32
    %483 = arith.cmpf olt, %444, %cst_112 : f32
    %484 = arith.maximumf %480, %386 : f32
    %485 = arith.select %483, %484, %480 : f32
    %486 = arith.minimumf %482, %386 : f32
    %487 = arith.select %483, %482, %486 : f32
    %cst_113 = arith.constant 2.046000e+03 : f32
    %488 = arith.cmpf olt, %452, %cst_113 : f32
    %489 = arith.maximumf %485, %388 : f32
    %490 = arith.select %488, %489, %485 : f32
    %491 = arith.minimumf %487, %388 : f32
    %492 = arith.select %488, %487, %491 : f32
    %493 = arith.subf %492, %490 : f32
    %cst_114 = arith.constant 0.111111112 : f32
    %494 = arith.mulf %cst_114, %493 : f32
    %495 = arith.addf %490, %494 : f32
    %cst_115 = arith.constant 0.222222224 : f32
    %496 = arith.mulf %cst_115, %493 : f32
    %497 = arith.addf %490, %496 : f32
    %cst_116 = arith.constant 0.333333343 : f32
    %498 = arith.mulf %cst_116, %493 : f32
    %499 = arith.addf %490, %498 : f32
    %cst_117 = arith.constant 0.444444448 : f32
    %500 = arith.mulf %cst_117, %493 : f32
    %501 = arith.addf %490, %500 : f32
    %cst_118 = arith.constant 0.555555582 : f32
    %502 = arith.mulf %cst_118, %493 : f32
    %503 = arith.addf %490, %502 : f32
    %cst_119 = arith.constant 0.666666686 : f32
    %504 = arith.mulf %cst_119, %493 : f32
    %505 = arith.addf %490, %504 : f32
    %cst_120 = arith.constant 0.777777791 : f32
    %506 = arith.mulf %cst_120, %493 : f32
    %507 = arith.addf %490, %506 : f32
    %cst_121 = arith.constant 0.888888895 : f32
    %508 = arith.mulf %cst_121, %493 : f32
    %509 = arith.addf %490, %508 : f32
    %510 = vector.broadcast %495 : f32 to vector<16x128xf32>
    %511 = arith.cmpf ole, %8, %510 : vector<16x128xf32>
    %512 = arith.extui %511 : vector<16x128xi1> to vector<16x128xi32>
    %513 = arith.sitofp %512 : vector<16x128xi32> to vector<16x128xf32>
    %514 = vector.shape_cast %513 : vector<16x128xf32> to vector<1x16x128xf32>
    %cst_122 = arith.constant dense<0.000000e+00> : vector<1xf32>
    %515 = vector.multi_reduction <add>, %514, %cst_122 [1, 2] : vector<1x16x128xf32> to vector<1xf32>
    %516 = vector.shape_cast %515 : vector<1xf32> to vector<1x1x1xf32>
    %517 = vector.extract %516[0, 0, 0] : f32 from vector<1x1x1xf32>
    %518 = vector.broadcast %497 : f32 to vector<16x128xf32>
    %519 = arith.cmpf ole, %8, %518 : vector<16x128xf32>
    %520 = arith.extui %519 : vector<16x128xi1> to vector<16x128xi32>
    %521 = arith.sitofp %520 : vector<16x128xi32> to vector<16x128xf32>
    %522 = vector.shape_cast %521 : vector<16x128xf32> to vector<1x16x128xf32>
    %cst_123 = arith.constant dense<0.000000e+00> : vector<1xf32>
    %523 = vector.multi_reduction <add>, %522, %cst_123 [1, 2] : vector<1x16x128xf32> to vector<1xf32>
    %524 = vector.shape_cast %523 : vector<1xf32> to vector<1x1x1xf32>
    %525 = vector.extract %524[0, 0, 0] : f32 from vector<1x1x1xf32>
    %526 = vector.broadcast %499 : f32 to vector<16x128xf32>
    %527 = arith.cmpf ole, %8, %526 : vector<16x128xf32>
    %528 = arith.extui %527 : vector<16x128xi1> to vector<16x128xi32>
    %529 = arith.sitofp %528 : vector<16x128xi32> to vector<16x128xf32>
    %530 = vector.shape_cast %529 : vector<16x128xf32> to vector<1x16x128xf32>
    %cst_124 = arith.constant dense<0.000000e+00> : vector<1xf32>
    %531 = vector.multi_reduction <add>, %530, %cst_124 [1, 2] : vector<1x16x128xf32> to vector<1xf32>
    %532 = vector.shape_cast %531 : vector<1xf32> to vector<1x1x1xf32>
    %533 = vector.extract %532[0, 0, 0] : f32 from vector<1x1x1xf32>
    %534 = vector.broadcast %501 : f32 to vector<16x128xf32>
    %535 = arith.cmpf ole, %8, %534 : vector<16x128xf32>
    %536 = arith.extui %535 : vector<16x128xi1> to vector<16x128xi32>
    %537 = arith.sitofp %536 : vector<16x128xi32> to vector<16x128xf32>
    %538 = vector.shape_cast %537 : vector<16x128xf32> to vector<1x16x128xf32>
    %cst_125 = arith.constant dense<0.000000e+00> : vector<1xf32>
    %539 = vector.multi_reduction <add>, %538, %cst_125 [1, 2] : vector<1x16x128xf32> to vector<1xf32>
    %540 = vector.shape_cast %539 : vector<1xf32> to vector<1x1x1xf32>
    %541 = vector.extract %540[0, 0, 0] : f32 from vector<1x1x1xf32>
    %542 = vector.broadcast %503 : f32 to vector<16x128xf32>
    %543 = arith.cmpf ole, %8, %542 : vector<16x128xf32>
    %544 = arith.extui %543 : vector<16x128xi1> to vector<16x128xi32>
    %545 = arith.sitofp %544 : vector<16x128xi32> to vector<16x128xf32>
    %546 = vector.shape_cast %545 : vector<16x128xf32> to vector<1x16x128xf32>
    %cst_126 = arith.constant dense<0.000000e+00> : vector<1xf32>
    %547 = vector.multi_reduction <add>, %546, %cst_126 [1, 2] : vector<1x16x128xf32> to vector<1xf32>
    %548 = vector.shape_cast %547 : vector<1xf32> to vector<1x1x1xf32>
    %549 = vector.extract %548[0, 0, 0] : f32 from vector<1x1x1xf32>
    %550 = vector.broadcast %505 : f32 to vector<16x128xf32>
    %551 = arith.cmpf ole, %8, %550 : vector<16x128xf32>
    %552 = arith.extui %551 : vector<16x128xi1> to vector<16x128xi32>
    %553 = arith.sitofp %552 : vector<16x128xi32> to vector<16x128xf32>
    %554 = vector.shape_cast %553 : vector<16x128xf32> to vector<1x16x128xf32>
    %cst_127 = arith.constant dense<0.000000e+00> : vector<1xf32>
    %555 = vector.multi_reduction <add>, %554, %cst_127 [1, 2] : vector<1x16x128xf32> to vector<1xf32>
    %556 = vector.shape_cast %555 : vector<1xf32> to vector<1x1x1xf32>
    %557 = vector.extract %556[0, 0, 0] : f32 from vector<1x1x1xf32>
    %558 = vector.broadcast %507 : f32 to vector<16x128xf32>
    %559 = arith.cmpf ole, %8, %558 : vector<16x128xf32>
    %560 = arith.extui %559 : vector<16x128xi1> to vector<16x128xi32>
    %561 = arith.sitofp %560 : vector<16x128xi32> to vector<16x128xf32>
    %562 = vector.shape_cast %561 : vector<16x128xf32> to vector<1x16x128xf32>
    %cst_128 = arith.constant dense<0.000000e+00> : vector<1xf32>
    %563 = vector.multi_reduction <add>, %562, %cst_128 [1, 2] : vector<1x16x128xf32> to vector<1xf32>
    %564 = vector.shape_cast %563 : vector<1xf32> to vector<1x1x1xf32>
    %565 = vector.extract %564[0, 0, 0] : f32 from vector<1x1x1xf32>
    %566 = vector.broadcast %509 : f32 to vector<16x128xf32>
    %567 = arith.cmpf ole, %8, %566 : vector<16x128xf32>
    %568 = arith.extui %567 : vector<16x128xi1> to vector<16x128xi32>
    %569 = arith.sitofp %568 : vector<16x128xi32> to vector<16x128xf32>
    %570 = vector.shape_cast %569 : vector<16x128xf32> to vector<1x16x128xf32>
    %cst_129 = arith.constant dense<0.000000e+00> : vector<1xf32>
    %571 = vector.multi_reduction <add>, %570, %cst_129 [1, 2] : vector<1x16x128xf32> to vector<1xf32>
    %572 = vector.shape_cast %571 : vector<1xf32> to vector<1x1x1xf32>
    %573 = vector.extract %572[0, 0, 0] : f32 from vector<1x1x1xf32>
    %cst_130 = arith.constant 2.046000e+03 : f32
    %574 = arith.cmpf olt, %517, %cst_130 : f32
    %575 = arith.maximumf %490, %495 : f32
    %576 = arith.select %574, %575, %490 : f32
    %577 = arith.minimumf %492, %495 : f32
    %578 = arith.select %574, %492, %577 : f32
    %cst_131 = arith.constant 2.046000e+03 : f32
    %579 = arith.cmpf olt, %525, %cst_131 : f32
    %580 = arith.maximumf %576, %497 : f32
    %581 = arith.select %579, %580, %576 : f32
    %582 = arith.minimumf %578, %497 : f32
    %583 = arith.select %579, %578, %582 : f32
    %cst_132 = arith.constant 2.046000e+03 : f32
    %584 = arith.cmpf olt, %533, %cst_132 : f32
    %585 = arith.maximumf %581, %499 : f32
    %586 = arith.select %584, %585, %581 : f32
    %587 = arith.minimumf %583, %499 : f32
    %588 = arith.select %584, %583, %587 : f32
    %cst_133 = arith.constant 2.046000e+03 : f32
    %589 = arith.cmpf olt, %541, %cst_133 : f32
    %590 = arith.maximumf %586, %501 : f32
    %591 = arith.select %589, %590, %586 : f32
    %592 = arith.minimumf %588, %501 : f32
    %593 = arith.select %589, %588, %592 : f32
    %cst_134 = arith.constant 2.046000e+03 : f32
    %594 = arith.cmpf olt, %549, %cst_134 : f32
    %595 = arith.maximumf %591, %503 : f32
    %596 = arith.select %594, %595, %591 : f32
    %597 = arith.minimumf %593, %503 : f32
    %598 = arith.select %594, %593, %597 : f32
    %cst_135 = arith.constant 2.046000e+03 : f32
    %599 = arith.cmpf olt, %557, %cst_135 : f32
    %600 = arith.maximumf %596, %505 : f32
    %601 = arith.select %599, %600, %596 : f32
    %602 = arith.minimumf %598, %505 : f32
    %603 = arith.select %599, %598, %602 : f32
    %cst_136 = arith.constant 2.046000e+03 : f32
    %604 = arith.cmpf olt, %565, %cst_136 : f32
    %605 = arith.maximumf %601, %507 : f32
    %606 = arith.select %604, %605, %601 : f32
    %607 = arith.minimumf %603, %507 : f32
    %608 = arith.select %604, %603, %607 : f32
    %cst_137 = arith.constant 2.046000e+03 : f32
    %609 = arith.cmpf olt, %573, %cst_137 : f32
    %610 = arith.maximumf %606, %509 : f32
    %611 = arith.select %609, %610, %606 : f32
    %612 = arith.minimumf %608, %509 : f32
    %613 = arith.select %609, %608, %612 : f32
    %614 = arith.subf %613, %611 : f32
    %cst_138 = arith.constant 0.111111112 : f32
    %615 = arith.mulf %cst_138, %614 : f32
    %616 = arith.addf %611, %615 : f32
    %cst_139 = arith.constant 0.222222224 : f32
    %617 = arith.mulf %cst_139, %614 : f32
    %618 = arith.addf %611, %617 : f32
    %cst_140 = arith.constant 0.333333343 : f32
    %619 = arith.mulf %cst_140, %614 : f32
    %620 = arith.addf %611, %619 : f32
    %cst_141 = arith.constant 0.444444448 : f32
    %621 = arith.mulf %cst_141, %614 : f32
    %622 = arith.addf %611, %621 : f32
    %cst_142 = arith.constant 0.555555582 : f32
    %623 = arith.mulf %cst_142, %614 : f32
    %624 = arith.addf %611, %623 : f32
    %cst_143 = arith.constant 0.666666686 : f32
    %625 = arith.mulf %cst_143, %614 : f32
    %626 = arith.addf %611, %625 : f32
    %cst_144 = arith.constant 0.777777791 : f32
    %627 = arith.mulf %cst_144, %614 : f32
    %628 = arith.addf %611, %627 : f32
    %cst_145 = arith.constant 0.888888895 : f32
    %629 = arith.mulf %cst_145, %614 : f32
    %630 = arith.addf %611, %629 : f32
    %631 = vector.broadcast %616 : f32 to vector<16x128xf32>
    %632 = arith.cmpf ole, %8, %631 : vector<16x128xf32>
    %633 = arith.extui %632 : vector<16x128xi1> to vector<16x128xi32>
    %634 = arith.sitofp %633 : vector<16x128xi32> to vector<16x128xf32>
    %635 = vector.shape_cast %634 : vector<16x128xf32> to vector<1x16x128xf32>
    %cst_146 = arith.constant dense<0.000000e+00> : vector<1xf32>
    %636 = vector.multi_reduction <add>, %635, %cst_146 [1, 2] : vector<1x16x128xf32> to vector<1xf32>
    %637 = vector.shape_cast %636 : vector<1xf32> to vector<1x1x1xf32>
    %638 = vector.extract %637[0, 0, 0] : f32 from vector<1x1x1xf32>
    %639 = vector.broadcast %618 : f32 to vector<16x128xf32>
    %640 = arith.cmpf ole, %8, %639 : vector<16x128xf32>
    %641 = arith.extui %640 : vector<16x128xi1> to vector<16x128xi32>
    %642 = arith.sitofp %641 : vector<16x128xi32> to vector<16x128xf32>
    %643 = vector.shape_cast %642 : vector<16x128xf32> to vector<1x16x128xf32>
    %cst_147 = arith.constant dense<0.000000e+00> : vector<1xf32>
    %644 = vector.multi_reduction <add>, %643, %cst_147 [1, 2] : vector<1x16x128xf32> to vector<1xf32>
    %645 = vector.shape_cast %644 : vector<1xf32> to vector<1x1x1xf32>
    %646 = vector.extract %645[0, 0, 0] : f32 from vector<1x1x1xf32>
    %647 = vector.broadcast %620 : f32 to vector<16x128xf32>
    %648 = arith.cmpf ole, %8, %647 : vector<16x128xf32>
    %649 = arith.extui %648 : vector<16x128xi1> to vector<16x128xi32>
    %650 = arith.sitofp %649 : vector<16x128xi32> to vector<16x128xf32>
    %651 = vector.shape_cast %650 : vector<16x128xf32> to vector<1x16x128xf32>
    %cst_148 = arith.constant dense<0.000000e+00> : vector<1xf32>
    %652 = vector.multi_reduction <add>, %651, %cst_148 [1, 2] : vector<1x16x128xf32> to vector<1xf32>
    %653 = vector.shape_cast %652 : vector<1xf32> to vector<1x1x1xf32>
    %654 = vector.extract %653[0, 0, 0] : f32 from vector<1x1x1xf32>
    %655 = vector.broadcast %622 : f32 to vector<16x128xf32>
    %656 = arith.cmpf ole, %8, %655 : vector<16x128xf32>
    %657 = arith.extui %656 : vector<16x128xi1> to vector<16x128xi32>
    %658 = arith.sitofp %657 : vector<16x128xi32> to vector<16x128xf32>
    %659 = vector.shape_cast %658 : vector<16x128xf32> to vector<1x16x128xf32>
    %cst_149 = arith.constant dense<0.000000e+00> : vector<1xf32>
    %660 = vector.multi_reduction <add>, %659, %cst_149 [1, 2] : vector<1x16x128xf32> to vector<1xf32>
    %661 = vector.shape_cast %660 : vector<1xf32> to vector<1x1x1xf32>
    %662 = vector.extract %661[0, 0, 0] : f32 from vector<1x1x1xf32>
    %663 = vector.broadcast %624 : f32 to vector<16x128xf32>
    %664 = arith.cmpf ole, %8, %663 : vector<16x128xf32>
    %665 = arith.extui %664 : vector<16x128xi1> to vector<16x128xi32>
    %666 = arith.sitofp %665 : vector<16x128xi32> to vector<16x128xf32>
    %667 = vector.shape_cast %666 : vector<16x128xf32> to vector<1x16x128xf32>
    %cst_150 = arith.constant dense<0.000000e+00> : vector<1xf32>
    %668 = vector.multi_reduction <add>, %667, %cst_150 [1, 2] : vector<1x16x128xf32> to vector<1xf32>
    %669 = vector.shape_cast %668 : vector<1xf32> to vector<1x1x1xf32>
    %670 = vector.extract %669[0, 0, 0] : f32 from vector<1x1x1xf32>
    %671 = vector.broadcast %626 : f32 to vector<16x128xf32>
    %672 = arith.cmpf ole, %8, %671 : vector<16x128xf32>
    %673 = arith.extui %672 : vector<16x128xi1> to vector<16x128xi32>
    %674 = arith.sitofp %673 : vector<16x128xi32> to vector<16x128xf32>
    %675 = vector.shape_cast %674 : vector<16x128xf32> to vector<1x16x128xf32>
    %cst_151 = arith.constant dense<0.000000e+00> : vector<1xf32>
    %676 = vector.multi_reduction <add>, %675, %cst_151 [1, 2] : vector<1x16x128xf32> to vector<1xf32>
    %677 = vector.shape_cast %676 : vector<1xf32> to vector<1x1x1xf32>
    %678 = vector.extract %677[0, 0, 0] : f32 from vector<1x1x1xf32>
    %679 = vector.broadcast %628 : f32 to vector<16x128xf32>
    %680 = arith.cmpf ole, %8, %679 : vector<16x128xf32>
    %681 = arith.extui %680 : vector<16x128xi1> to vector<16x128xi32>
    %682 = arith.sitofp %681 : vector<16x128xi32> to vector<16x128xf32>
    %683 = vector.shape_cast %682 : vector<16x128xf32> to vector<1x16x128xf32>
    %cst_152 = arith.constant dense<0.000000e+00> : vector<1xf32>
    %684 = vector.multi_reduction <add>, %683, %cst_152 [1, 2] : vector<1x16x128xf32> to vector<1xf32>
    %685 = vector.shape_cast %684 : vector<1xf32> to vector<1x1x1xf32>
    %686 = vector.extract %685[0, 0, 0] : f32 from vector<1x1x1xf32>
    %687 = vector.broadcast %630 : f32 to vector<16x128xf32>
    %688 = arith.cmpf ole, %8, %687 : vector<16x128xf32>
    %689 = arith.extui %688 : vector<16x128xi1> to vector<16x128xi32>
    %690 = arith.sitofp %689 : vector<16x128xi32> to vector<16x128xf32>
    %691 = vector.shape_cast %690 : vector<16x128xf32> to vector<1x16x128xf32>
    %cst_153 = arith.constant dense<0.000000e+00> : vector<1xf32>
    %692 = vector.multi_reduction <add>, %691, %cst_153 [1, 2] : vector<1x16x128xf32> to vector<1xf32>
    %693 = vector.shape_cast %692 : vector<1xf32> to vector<1x1x1xf32>
    %694 = vector.extract %693[0, 0, 0] : f32 from vector<1x1x1xf32>
    %cst_154 = arith.constant 2.046000e+03 : f32
    %695 = arith.cmpf olt, %638, %cst_154 : f32
    %696 = arith.maximumf %611, %616 : f32
    %697 = arith.select %695, %696, %611 : f32
    %698 = arith.minimumf %613, %616 : f32
    %699 = arith.select %695, %613, %698 : f32
    %cst_155 = arith.constant 2.046000e+03 : f32
    %700 = arith.cmpf olt, %646, %cst_155 : f32
    %701 = arith.maximumf %697, %618 : f32
    %702 = arith.select %700, %701, %697 : f32
    %703 = arith.minimumf %699, %618 : f32
    %704 = arith.select %700, %699, %703 : f32
    %cst_156 = arith.constant 2.046000e+03 : f32
    %705 = arith.cmpf olt, %654, %cst_156 : f32
    %706 = arith.maximumf %702, %620 : f32
    %707 = arith.select %705, %706, %702 : f32
    %708 = arith.minimumf %704, %620 : f32
    %709 = arith.select %705, %704, %708 : f32
    %cst_157 = arith.constant 2.046000e+03 : f32
    %710 = arith.cmpf olt, %662, %cst_157 : f32
    %711 = arith.maximumf %707, %622 : f32
    %712 = arith.select %710, %711, %707 : f32
    %713 = arith.minimumf %709, %622 : f32
    %714 = arith.select %710, %709, %713 : f32
    %cst_158 = arith.constant 2.046000e+03 : f32
    %715 = arith.cmpf olt, %670, %cst_158 : f32
    %716 = arith.maximumf %712, %624 : f32
    %717 = arith.select %715, %716, %712 : f32
    %718 = arith.minimumf %714, %624 : f32
    %719 = arith.select %715, %714, %718 : f32
    %cst_159 = arith.constant 2.046000e+03 : f32
    %720 = arith.cmpf olt, %678, %cst_159 : f32
    %721 = arith.maximumf %717, %626 : f32
    %722 = arith.select %720, %721, %717 : f32
    %723 = arith.minimumf %719, %626 : f32
    %724 = arith.select %720, %719, %723 : f32
    %cst_160 = arith.constant 2.046000e+03 : f32
    %725 = arith.cmpf olt, %686, %cst_160 : f32
    %726 = arith.maximumf %722, %628 : f32
    %727 = arith.select %725, %726, %722 : f32
    %728 = arith.minimumf %724, %628 : f32
    %729 = arith.select %725, %724, %728 : f32
    %cst_161 = arith.constant 2.046000e+03 : f32
    %730 = arith.cmpf olt, %694, %cst_161 : f32
    %731 = arith.maximumf %727, %630 : f32
    %732 = arith.select %730, %731, %727 : f32
    %733 = arith.minimumf %729, %630 : f32
    %734 = arith.select %730, %729, %733 : f32
    %735 = arith.subf %734, %732 : f32
    %cst_162 = arith.constant 0.111111112 : f32
    %736 = arith.mulf %cst_162, %735 : f32
    %737 = arith.addf %732, %736 : f32
    %cst_163 = arith.constant 0.222222224 : f32
    %738 = arith.mulf %cst_163, %735 : f32
    %739 = arith.addf %732, %738 : f32
    %cst_164 = arith.constant 0.333333343 : f32
    %740 = arith.mulf %cst_164, %735 : f32
    %741 = arith.addf %732, %740 : f32
    %cst_165 = arith.constant 0.444444448 : f32
    %742 = arith.mulf %cst_165, %735 : f32
    %743 = arith.addf %732, %742 : f32
    %cst_166 = arith.constant 0.555555582 : f32
    %744 = arith.mulf %cst_166, %735 : f32
    %745 = arith.addf %732, %744 : f32
    %cst_167 = arith.constant 0.666666686 : f32
    %746 = arith.mulf %cst_167, %735 : f32
    %747 = arith.addf %732, %746 : f32
    %cst_168 = arith.constant 0.777777791 : f32
    %748 = arith.mulf %cst_168, %735 : f32
    %749 = arith.addf %732, %748 : f32
    %cst_169 = arith.constant 0.888888895 : f32
    %750 = arith.mulf %cst_169, %735 : f32
    %751 = arith.addf %732, %750 : f32
    %752 = vector.broadcast %737 : f32 to vector<16x128xf32>
    %753 = arith.cmpf ole, %8, %752 : vector<16x128xf32>
    %754 = arith.extui %753 : vector<16x128xi1> to vector<16x128xi32>
    %755 = arith.sitofp %754 : vector<16x128xi32> to vector<16x128xf32>
    %756 = vector.shape_cast %755 : vector<16x128xf32> to vector<1x16x128xf32>
    %cst_170 = arith.constant dense<0.000000e+00> : vector<1xf32>
    %757 = vector.multi_reduction <add>, %756, %cst_170 [1, 2] : vector<1x16x128xf32> to vector<1xf32>
    %758 = vector.shape_cast %757 : vector<1xf32> to vector<1x1x1xf32>
    %759 = vector.extract %758[0, 0, 0] : f32 from vector<1x1x1xf32>
    %760 = vector.broadcast %739 : f32 to vector<16x128xf32>
    %761 = arith.cmpf ole, %8, %760 : vector<16x128xf32>
    %762 = arith.extui %761 : vector<16x128xi1> to vector<16x128xi32>
    %763 = arith.sitofp %762 : vector<16x128xi32> to vector<16x128xf32>
    %764 = vector.shape_cast %763 : vector<16x128xf32> to vector<1x16x128xf32>
    %cst_171 = arith.constant dense<0.000000e+00> : vector<1xf32>
    %765 = vector.multi_reduction <add>, %764, %cst_171 [1, 2] : vector<1x16x128xf32> to vector<1xf32>
    %766 = vector.shape_cast %765 : vector<1xf32> to vector<1x1x1xf32>
    %767 = vector.extract %766[0, 0, 0] : f32 from vector<1x1x1xf32>
    %768 = vector.broadcast %741 : f32 to vector<16x128xf32>
    %769 = arith.cmpf ole, %8, %768 : vector<16x128xf32>
    %770 = arith.extui %769 : vector<16x128xi1> to vector<16x128xi32>
    %771 = arith.sitofp %770 : vector<16x128xi32> to vector<16x128xf32>
    %772 = vector.shape_cast %771 : vector<16x128xf32> to vector<1x16x128xf32>
    %cst_172 = arith.constant dense<0.000000e+00> : vector<1xf32>
    %773 = vector.multi_reduction <add>, %772, %cst_172 [1, 2] : vector<1x16x128xf32> to vector<1xf32>
    %774 = vector.shape_cast %773 : vector<1xf32> to vector<1x1x1xf32>
    %775 = vector.extract %774[0, 0, 0] : f32 from vector<1x1x1xf32>
    %776 = vector.broadcast %743 : f32 to vector<16x128xf32>
    %777 = arith.cmpf ole, %8, %776 : vector<16x128xf32>
    %778 = arith.extui %777 : vector<16x128xi1> to vector<16x128xi32>
    %779 = arith.sitofp %778 : vector<16x128xi32> to vector<16x128xf32>
    %780 = vector.shape_cast %779 : vector<16x128xf32> to vector<1x16x128xf32>
    %cst_173 = arith.constant dense<0.000000e+00> : vector<1xf32>
    %781 = vector.multi_reduction <add>, %780, %cst_173 [1, 2] : vector<1x16x128xf32> to vector<1xf32>
    %782 = vector.shape_cast %781 : vector<1xf32> to vector<1x1x1xf32>
    %783 = vector.extract %782[0, 0, 0] : f32 from vector<1x1x1xf32>
    %784 = vector.broadcast %745 : f32 to vector<16x128xf32>
    %785 = arith.cmpf ole, %8, %784 : vector<16x128xf32>
    %786 = arith.extui %785 : vector<16x128xi1> to vector<16x128xi32>
    %787 = arith.sitofp %786 : vector<16x128xi32> to vector<16x128xf32>
    %788 = vector.shape_cast %787 : vector<16x128xf32> to vector<1x16x128xf32>
    %cst_174 = arith.constant dense<0.000000e+00> : vector<1xf32>
    %789 = vector.multi_reduction <add>, %788, %cst_174 [1, 2] : vector<1x16x128xf32> to vector<1xf32>
    %790 = vector.shape_cast %789 : vector<1xf32> to vector<1x1x1xf32>
    %791 = vector.extract %790[0, 0, 0] : f32 from vector<1x1x1xf32>
    %792 = vector.broadcast %747 : f32 to vector<16x128xf32>
    %793 = arith.cmpf ole, %8, %792 : vector<16x128xf32>
    %794 = arith.extui %793 : vector<16x128xi1> to vector<16x128xi32>
    %795 = arith.sitofp %794 : vector<16x128xi32> to vector<16x128xf32>
    %796 = vector.shape_cast %795 : vector<16x128xf32> to vector<1x16x128xf32>
    %cst_175 = arith.constant dense<0.000000e+00> : vector<1xf32>
    %797 = vector.multi_reduction <add>, %796, %cst_175 [1, 2] : vector<1x16x128xf32> to vector<1xf32>
    %798 = vector.shape_cast %797 : vector<1xf32> to vector<1x1x1xf32>
    %799 = vector.extract %798[0, 0, 0] : f32 from vector<1x1x1xf32>
    %800 = vector.broadcast %749 : f32 to vector<16x128xf32>
    %801 = arith.cmpf ole, %8, %800 : vector<16x128xf32>
    %802 = arith.extui %801 : vector<16x128xi1> to vector<16x128xi32>
    %803 = arith.sitofp %802 : vector<16x128xi32> to vector<16x128xf32>
    %804 = vector.shape_cast %803 : vector<16x128xf32> to vector<1x16x128xf32>
    %cst_176 = arith.constant dense<0.000000e+00> : vector<1xf32>
    %805 = vector.multi_reduction <add>, %804, %cst_176 [1, 2] : vector<1x16x128xf32> to vector<1xf32>
    %806 = vector.shape_cast %805 : vector<1xf32> to vector<1x1x1xf32>
    %807 = vector.extract %806[0, 0, 0] : f32 from vector<1x1x1xf32>
    %808 = vector.broadcast %751 : f32 to vector<16x128xf32>
    %809 = arith.cmpf ole, %8, %808 : vector<16x128xf32>
    %810 = arith.extui %809 : vector<16x128xi1> to vector<16x128xi32>
    %811 = arith.sitofp %810 : vector<16x128xi32> to vector<16x128xf32>
    %812 = vector.shape_cast %811 : vector<16x128xf32> to vector<1x16x128xf32>
    %cst_177 = arith.constant dense<0.000000e+00> : vector<1xf32>
    %813 = vector.multi_reduction <add>, %812, %cst_177 [1, 2] : vector<1x16x128xf32> to vector<1xf32>
    %814 = vector.shape_cast %813 : vector<1xf32> to vector<1x1x1xf32>
    %815 = vector.extract %814[0, 0, 0] : f32 from vector<1x1x1xf32>
    %cst_178 = arith.constant 2.046000e+03 : f32
    %816 = arith.cmpf olt, %759, %cst_178 : f32
    %817 = arith.maximumf %732, %737 : f32
    %818 = arith.select %816, %817, %732 : f32
    %819 = arith.minimumf %734, %737 : f32
    %820 = arith.select %816, %734, %819 : f32
    %cst_179 = arith.constant 2.046000e+03 : f32
    %821 = arith.cmpf olt, %767, %cst_179 : f32
    %822 = arith.maximumf %818, %739 : f32
    %823 = arith.select %821, %822, %818 : f32
    %824 = arith.minimumf %820, %739 : f32
    %825 = arith.select %821, %820, %824 : f32
    %cst_180 = arith.constant 2.046000e+03 : f32
    %826 = arith.cmpf olt, %775, %cst_180 : f32
    %827 = arith.maximumf %823, %741 : f32
    %828 = arith.select %826, %827, %823 : f32
    %829 = arith.minimumf %825, %741 : f32
    %830 = arith.select %826, %825, %829 : f32
    %cst_181 = arith.constant 2.046000e+03 : f32
    %831 = arith.cmpf olt, %783, %cst_181 : f32
    %832 = arith.maximumf %828, %743 : f32
    %833 = arith.select %831, %832, %828 : f32
    %834 = arith.minimumf %830, %743 : f32
    %835 = arith.select %831, %830, %834 : f32
    %cst_182 = arith.constant 2.046000e+03 : f32
    %836 = arith.cmpf olt, %791, %cst_182 : f32
    %837 = arith.maximumf %833, %745 : f32
    %838 = arith.select %836, %837, %833 : f32
    %839 = arith.minimumf %835, %745 : f32
    %840 = arith.select %836, %835, %839 : f32
    %cst_183 = arith.constant 2.046000e+03 : f32
    %841 = arith.cmpf olt, %799, %cst_183 : f32
    %842 = arith.maximumf %838, %747 : f32
    %843 = arith.select %841, %842, %838 : f32
    %844 = arith.minimumf %840, %747 : f32
    %845 = arith.select %841, %840, %844 : f32
    %cst_184 = arith.constant 2.046000e+03 : f32
    %846 = arith.cmpf olt, %807, %cst_184 : f32
    %847 = arith.maximumf %843, %749 : f32
    %848 = arith.select %846, %847, %843 : f32
    %849 = arith.minimumf %845, %749 : f32
    %850 = arith.select %846, %845, %849 : f32
    %cst_185 = arith.constant 2.046000e+03 : f32
    %851 = arith.cmpf olt, %815, %cst_185 : f32
    %852 = arith.maximumf %848, %751 : f32
    %853 = arith.select %851, %852, %848 : f32
    %854 = arith.minimumf %850, %751 : f32
    %855 = arith.select %851, %850, %854 : f32
    %856 = arith.subf %855, %853 : f32
    %cst_186 = arith.constant 0.111111112 : f32
    %857 = arith.mulf %cst_186, %856 : f32
    %858 = arith.addf %853, %857 : f32
    %cst_187 = arith.constant 0.222222224 : f32
    %859 = arith.mulf %cst_187, %856 : f32
    %860 = arith.addf %853, %859 : f32
    %cst_188 = arith.constant 0.333333343 : f32
    %861 = arith.mulf %cst_188, %856 : f32
    %862 = arith.addf %853, %861 : f32
    %cst_189 = arith.constant 0.444444448 : f32
    %863 = arith.mulf %cst_189, %856 : f32
    %864 = arith.addf %853, %863 : f32
    %cst_190 = arith.constant 0.555555582 : f32
    %865 = arith.mulf %cst_190, %856 : f32
    %866 = arith.addf %853, %865 : f32
    %cst_191 = arith.constant 0.666666686 : f32
    %867 = arith.mulf %cst_191, %856 : f32
    %868 = arith.addf %853, %867 : f32
    %cst_192 = arith.constant 0.777777791 : f32
    %869 = arith.mulf %cst_192, %856 : f32
    %870 = arith.addf %853, %869 : f32
    %cst_193 = arith.constant 0.888888895 : f32
    %871 = arith.mulf %cst_193, %856 : f32
    %872 = arith.addf %853, %871 : f32
    %873 = vector.broadcast %858 : f32 to vector<16x128xf32>
    %874 = arith.cmpf ole, %8, %873 : vector<16x128xf32>
    %875 = arith.extui %874 : vector<16x128xi1> to vector<16x128xi32>
    %876 = arith.sitofp %875 : vector<16x128xi32> to vector<16x128xf32>
    %877 = vector.shape_cast %876 : vector<16x128xf32> to vector<1x16x128xf32>
    %cst_194 = arith.constant dense<0.000000e+00> : vector<1xf32>
    %878 = vector.multi_reduction <add>, %877, %cst_194 [1, 2] : vector<1x16x128xf32> to vector<1xf32>
    %879 = vector.shape_cast %878 : vector<1xf32> to vector<1x1x1xf32>
    %880 = vector.extract %879[0, 0, 0] : f32 from vector<1x1x1xf32>
    %881 = vector.broadcast %860 : f32 to vector<16x128xf32>
    %882 = arith.cmpf ole, %8, %881 : vector<16x128xf32>
    %883 = arith.extui %882 : vector<16x128xi1> to vector<16x128xi32>
    %884 = arith.sitofp %883 : vector<16x128xi32> to vector<16x128xf32>
    %885 = vector.shape_cast %884 : vector<16x128xf32> to vector<1x16x128xf32>
    %cst_195 = arith.constant dense<0.000000e+00> : vector<1xf32>
    %886 = vector.multi_reduction <add>, %885, %cst_195 [1, 2] : vector<1x16x128xf32> to vector<1xf32>
    %887 = vector.shape_cast %886 : vector<1xf32> to vector<1x1x1xf32>
    %888 = vector.extract %887[0, 0, 0] : f32 from vector<1x1x1xf32>
    %889 = vector.broadcast %862 : f32 to vector<16x128xf32>
    %890 = arith.cmpf ole, %8, %889 : vector<16x128xf32>
    %891 = arith.extui %890 : vector<16x128xi1> to vector<16x128xi32>
    %892 = arith.sitofp %891 : vector<16x128xi32> to vector<16x128xf32>
    %893 = vector.shape_cast %892 : vector<16x128xf32> to vector<1x16x128xf32>
    %cst_196 = arith.constant dense<0.000000e+00> : vector<1xf32>
    %894 = vector.multi_reduction <add>, %893, %cst_196 [1, 2] : vector<1x16x128xf32> to vector<1xf32>
    %895 = vector.shape_cast %894 : vector<1xf32> to vector<1x1x1xf32>
    %896 = vector.extract %895[0, 0, 0] : f32 from vector<1x1x1xf32>
    %897 = vector.broadcast %864 : f32 to vector<16x128xf32>
    %898 = arith.cmpf ole, %8, %897 : vector<16x128xf32>
    %899 = arith.extui %898 : vector<16x128xi1> to vector<16x128xi32>
    %900 = arith.sitofp %899 : vector<16x128xi32> to vector<16x128xf32>
    %901 = vector.shape_cast %900 : vector<16x128xf32> to vector<1x16x128xf32>
    %cst_197 = arith.constant dense<0.000000e+00> : vector<1xf32>
    %902 = vector.multi_reduction <add>, %901, %cst_197 [1, 2] : vector<1x16x128xf32> to vector<1xf32>
    %903 = vector.shape_cast %902 : vector<1xf32> to vector<1x1x1xf32>
    %904 = vector.extract %903[0, 0, 0] : f32 from vector<1x1x1xf32>
    %905 = vector.broadcast %866 : f32 to vector<16x128xf32>
    %906 = arith.cmpf ole, %8, %905 : vector<16x128xf32>
    %907 = arith.extui %906 : vector<16x128xi1> to vector<16x128xi32>
    %908 = arith.sitofp %907 : vector<16x128xi32> to vector<16x128xf32>
    %909 = vector.shape_cast %908 : vector<16x128xf32> to vector<1x16x128xf32>
    %cst_198 = arith.constant dense<0.000000e+00> : vector<1xf32>
    %910 = vector.multi_reduction <add>, %909, %cst_198 [1, 2] : vector<1x16x128xf32> to vector<1xf32>
    %911 = vector.shape_cast %910 : vector<1xf32> to vector<1x1x1xf32>
    %912 = vector.extract %911[0, 0, 0] : f32 from vector<1x1x1xf32>
    %913 = vector.broadcast %868 : f32 to vector<16x128xf32>
    %914 = arith.cmpf ole, %8, %913 : vector<16x128xf32>
    %915 = arith.extui %914 : vector<16x128xi1> to vector<16x128xi32>
    %916 = arith.sitofp %915 : vector<16x128xi32> to vector<16x128xf32>
    %917 = vector.shape_cast %916 : vector<16x128xf32> to vector<1x16x128xf32>
    %cst_199 = arith.constant dense<0.000000e+00> : vector<1xf32>
    %918 = vector.multi_reduction <add>, %917, %cst_199 [1, 2] : vector<1x16x128xf32> to vector<1xf32>
    %919 = vector.shape_cast %918 : vector<1xf32> to vector<1x1x1xf32>
    %920 = vector.extract %919[0, 0, 0] : f32 from vector<1x1x1xf32>
    %921 = vector.broadcast %870 : f32 to vector<16x128xf32>
    %922 = arith.cmpf ole, %8, %921 : vector<16x128xf32>
    %923 = arith.extui %922 : vector<16x128xi1> to vector<16x128xi32>
    %924 = arith.sitofp %923 : vector<16x128xi32> to vector<16x128xf32>
    %925 = vector.shape_cast %924 : vector<16x128xf32> to vector<1x16x128xf32>
    %cst_200 = arith.constant dense<0.000000e+00> : vector<1xf32>
    %926 = vector.multi_reduction <add>, %925, %cst_200 [1, 2] : vector<1x16x128xf32> to vector<1xf32>
    %927 = vector.shape_cast %926 : vector<1xf32> to vector<1x1x1xf32>
    %928 = vector.extract %927[0, 0, 0] : f32 from vector<1x1x1xf32>
    %929 = vector.broadcast %872 : f32 to vector<16x128xf32>
    %930 = arith.cmpf ole, %8, %929 : vector<16x128xf32>
    %931 = arith.extui %930 : vector<16x128xi1> to vector<16x128xi32>
    %932 = arith.sitofp %931 : vector<16x128xi32> to vector<16x128xf32>
    %933 = vector.shape_cast %932 : vector<16x128xf32> to vector<1x16x128xf32>
    %cst_201 = arith.constant dense<0.000000e+00> : vector<1xf32>
    %934 = vector.multi_reduction <add>, %933, %cst_201 [1, 2] : vector<1x16x128xf32> to vector<1xf32>
    %935 = vector.shape_cast %934 : vector<1xf32> to vector<1x1x1xf32>
    %936 = vector.extract %935[0, 0, 0] : f32 from vector<1x1x1xf32>
    %cst_202 = arith.constant 2.046000e+03 : f32
    %937 = arith.cmpf olt, %880, %cst_202 : f32
    %938 = arith.maximumf %853, %858 : f32
    %939 = arith.select %937, %938, %853 : f32
    %940 = arith.minimumf %855, %858 : f32
    %941 = arith.select %937, %855, %940 : f32
    %cst_203 = arith.constant 2.046000e+03 : f32
    %942 = arith.cmpf olt, %888, %cst_203 : f32
    %943 = arith.maximumf %939, %860 : f32
    %944 = arith.select %942, %943, %939 : f32
    %945 = arith.minimumf %941, %860 : f32
    %946 = arith.select %942, %941, %945 : f32
    %cst_204 = arith.constant 2.046000e+03 : f32
    %947 = arith.cmpf olt, %896, %cst_204 : f32
    %948 = arith.maximumf %944, %862 : f32
    %949 = arith.select %947, %948, %944 : f32
    %950 = arith.minimumf %946, %862 : f32
    %951 = arith.select %947, %946, %950 : f32
    %cst_205 = arith.constant 2.046000e+03 : f32
    %952 = arith.cmpf olt, %904, %cst_205 : f32
    %953 = arith.maximumf %949, %864 : f32
    %954 = arith.select %952, %953, %949 : f32
    %955 = arith.minimumf %951, %864 : f32
    %956 = arith.select %952, %951, %955 : f32
    %cst_206 = arith.constant 2.046000e+03 : f32
    %957 = arith.cmpf olt, %912, %cst_206 : f32
    %958 = arith.maximumf %954, %866 : f32
    %959 = arith.select %957, %958, %954 : f32
    %960 = arith.minimumf %956, %866 : f32
    %961 = arith.select %957, %956, %960 : f32
    %cst_207 = arith.constant 2.046000e+03 : f32
    %962 = arith.cmpf olt, %920, %cst_207 : f32
    %963 = arith.maximumf %959, %868 : f32
    %964 = arith.select %962, %963, %959 : f32
    %965 = arith.minimumf %961, %868 : f32
    %966 = arith.select %962, %961, %965 : f32
    %cst_208 = arith.constant 2.046000e+03 : f32
    %967 = arith.cmpf olt, %928, %cst_208 : f32
    %968 = arith.maximumf %964, %870 : f32
    %969 = arith.select %967, %968, %964 : f32
    %970 = arith.minimumf %966, %870 : f32
    %971 = arith.select %967, %966, %970 : f32
    %cst_209 = arith.constant 2.046000e+03 : f32
    %972 = arith.cmpf olt, %936, %cst_209 : f32
    %973 = arith.maximumf %969, %872 : f32
    %974 = arith.select %972, %973, %969 : f32
    %975 = arith.minimumf %971, %872 : f32
    %976 = arith.select %972, %971, %975 : f32
    %977 = arith.subf %976, %974 : f32
    %cst_210 = arith.constant 0.111111112 : f32
    %978 = arith.mulf %cst_210, %977 : f32
    %979 = arith.addf %974, %978 : f32
    %cst_211 = arith.constant 0.222222224 : f32
    %980 = arith.mulf %cst_211, %977 : f32
    %981 = arith.addf %974, %980 : f32
    %cst_212 = arith.constant 0.333333343 : f32
    %982 = arith.mulf %cst_212, %977 : f32
    %983 = arith.addf %974, %982 : f32
    %cst_213 = arith.constant 0.444444448 : f32
    %984 = arith.mulf %cst_213, %977 : f32
    %985 = arith.addf %974, %984 : f32
    %cst_214 = arith.constant 0.555555582 : f32
    %986 = arith.mulf %cst_214, %977 : f32
    %987 = arith.addf %974, %986 : f32
    %cst_215 = arith.constant 0.666666686 : f32
    %988 = arith.mulf %cst_215, %977 : f32
    %989 = arith.addf %974, %988 : f32
    %cst_216 = arith.constant 0.777777791 : f32
    %990 = arith.mulf %cst_216, %977 : f32
    %991 = arith.addf %974, %990 : f32
    %cst_217 = arith.constant 0.888888895 : f32
    %992 = arith.mulf %cst_217, %977 : f32
    %993 = arith.addf %974, %992 : f32
    %994 = vector.broadcast %979 : f32 to vector<16x128xf32>
    %995 = arith.cmpf ole, %8, %994 : vector<16x128xf32>
    %996 = arith.extui %995 : vector<16x128xi1> to vector<16x128xi32>
    %997 = arith.sitofp %996 : vector<16x128xi32> to vector<16x128xf32>
    %998 = vector.shape_cast %997 : vector<16x128xf32> to vector<1x16x128xf32>
    %cst_218 = arith.constant dense<0.000000e+00> : vector<1xf32>
    %999 = vector.multi_reduction <add>, %998, %cst_218 [1, 2] : vector<1x16x128xf32> to vector<1xf32>
    %1000 = vector.shape_cast %999 : vector<1xf32> to vector<1x1x1xf32>
    %1001 = vector.extract %1000[0, 0, 0] : f32 from vector<1x1x1xf32>
    %1002 = vector.broadcast %981 : f32 to vector<16x128xf32>
    %1003 = arith.cmpf ole, %8, %1002 : vector<16x128xf32>
    %1004 = arith.extui %1003 : vector<16x128xi1> to vector<16x128xi32>
    %1005 = arith.sitofp %1004 : vector<16x128xi32> to vector<16x128xf32>
    %1006 = vector.shape_cast %1005 : vector<16x128xf32> to vector<1x16x128xf32>
    %cst_219 = arith.constant dense<0.000000e+00> : vector<1xf32>
    %1007 = vector.multi_reduction <add>, %1006, %cst_219 [1, 2] : vector<1x16x128xf32> to vector<1xf32>
    %1008 = vector.shape_cast %1007 : vector<1xf32> to vector<1x1x1xf32>
    %1009 = vector.extract %1008[0, 0, 0] : f32 from vector<1x1x1xf32>
    %1010 = vector.broadcast %983 : f32 to vector<16x128xf32>
    %1011 = arith.cmpf ole, %8, %1010 : vector<16x128xf32>
    %1012 = arith.extui %1011 : vector<16x128xi1> to vector<16x128xi32>
    %1013 = arith.sitofp %1012 : vector<16x128xi32> to vector<16x128xf32>
    %1014 = vector.shape_cast %1013 : vector<16x128xf32> to vector<1x16x128xf32>
    %cst_220 = arith.constant dense<0.000000e+00> : vector<1xf32>
    %1015 = vector.multi_reduction <add>, %1014, %cst_220 [1, 2] : vector<1x16x128xf32> to vector<1xf32>
    %1016 = vector.shape_cast %1015 : vector<1xf32> to vector<1x1x1xf32>
    %1017 = vector.extract %1016[0, 0, 0] : f32 from vector<1x1x1xf32>
    %1018 = vector.broadcast %985 : f32 to vector<16x128xf32>
    %1019 = arith.cmpf ole, %8, %1018 : vector<16x128xf32>
    %1020 = arith.extui %1019 : vector<16x128xi1> to vector<16x128xi32>
    %1021 = arith.sitofp %1020 : vector<16x128xi32> to vector<16x128xf32>
    %1022 = vector.shape_cast %1021 : vector<16x128xf32> to vector<1x16x128xf32>
    %cst_221 = arith.constant dense<0.000000e+00> : vector<1xf32>
    %1023 = vector.multi_reduction <add>, %1022, %cst_221 [1, 2] : vector<1x16x128xf32> to vector<1xf32>
    %1024 = vector.shape_cast %1023 : vector<1xf32> to vector<1x1x1xf32>
    %1025 = vector.extract %1024[0, 0, 0] : f32 from vector<1x1x1xf32>
    %1026 = vector.broadcast %987 : f32 to vector<16x128xf32>
    %1027 = arith.cmpf ole, %8, %1026 : vector<16x128xf32>
    %1028 = arith.extui %1027 : vector<16x128xi1> to vector<16x128xi32>
    %1029 = arith.sitofp %1028 : vector<16x128xi32> to vector<16x128xf32>
    %1030 = vector.shape_cast %1029 : vector<16x128xf32> to vector<1x16x128xf32>
    %cst_222 = arith.constant dense<0.000000e+00> : vector<1xf32>
    %1031 = vector.multi_reduction <add>, %1030, %cst_222 [1, 2] : vector<1x16x128xf32> to vector<1xf32>
    %1032 = vector.shape_cast %1031 : vector<1xf32> to vector<1x1x1xf32>
    %1033 = vector.extract %1032[0, 0, 0] : f32 from vector<1x1x1xf32>
    %1034 = vector.broadcast %989 : f32 to vector<16x128xf32>
    %1035 = arith.cmpf ole, %8, %1034 : vector<16x128xf32>
    %1036 = arith.extui %1035 : vector<16x128xi1> to vector<16x128xi32>
    %1037 = arith.sitofp %1036 : vector<16x128xi32> to vector<16x128xf32>
    %1038 = vector.shape_cast %1037 : vector<16x128xf32> to vector<1x16x128xf32>
    %cst_223 = arith.constant dense<0.000000e+00> : vector<1xf32>
    %1039 = vector.multi_reduction <add>, %1038, %cst_223 [1, 2] : vector<1x16x128xf32> to vector<1xf32>
    %1040 = vector.shape_cast %1039 : vector<1xf32> to vector<1x1x1xf32>
    %1041 = vector.extract %1040[0, 0, 0] : f32 from vector<1x1x1xf32>
    %1042 = vector.broadcast %991 : f32 to vector<16x128xf32>
    %1043 = arith.cmpf ole, %8, %1042 : vector<16x128xf32>
    %1044 = arith.extui %1043 : vector<16x128xi1> to vector<16x128xi32>
    %1045 = arith.sitofp %1044 : vector<16x128xi32> to vector<16x128xf32>
    %1046 = vector.shape_cast %1045 : vector<16x128xf32> to vector<1x16x128xf32>
    %cst_224 = arith.constant dense<0.000000e+00> : vector<1xf32>
    %1047 = vector.multi_reduction <add>, %1046, %cst_224 [1, 2] : vector<1x16x128xf32> to vector<1xf32>
    %1048 = vector.shape_cast %1047 : vector<1xf32> to vector<1x1x1xf32>
    %1049 = vector.extract %1048[0, 0, 0] : f32 from vector<1x1x1xf32>
    %1050 = vector.broadcast %993 : f32 to vector<16x128xf32>
    %1051 = arith.cmpf ole, %8, %1050 : vector<16x128xf32>
    %1052 = arith.extui %1051 : vector<16x128xi1> to vector<16x128xi32>
    %1053 = arith.sitofp %1052 : vector<16x128xi32> to vector<16x128xf32>
    %1054 = vector.shape_cast %1053 : vector<16x128xf32> to vector<1x16x128xf32>
    %cst_225 = arith.constant dense<0.000000e+00> : vector<1xf32>
    %1055 = vector.multi_reduction <add>, %1054, %cst_225 [1, 2] : vector<1x16x128xf32> to vector<1xf32>
    %1056 = vector.shape_cast %1055 : vector<1xf32> to vector<1x1x1xf32>
    %1057 = vector.extract %1056[0, 0, 0] : f32 from vector<1x1x1xf32>
    %cst_226 = arith.constant 2.046000e+03 : f32
    %1058 = arith.cmpf olt, %1001, %cst_226 : f32
    %1059 = arith.maximumf %974, %979 : f32
    %1060 = arith.select %1058, %1059, %974 : f32
    %1061 = arith.minimumf %976, %979 : f32
    %1062 = arith.select %1058, %976, %1061 : f32
    %cst_227 = arith.constant 2.046000e+03 : f32
    %1063 = arith.cmpf olt, %1009, %cst_227 : f32
    %1064 = arith.maximumf %1060, %981 : f32
    %1065 = arith.select %1063, %1064, %1060 : f32
    %1066 = arith.minimumf %1062, %981 : f32
    %1067 = arith.select %1063, %1062, %1066 : f32
    %cst_228 = arith.constant 2.046000e+03 : f32
    %1068 = arith.cmpf olt, %1017, %cst_228 : f32
    %1069 = arith.maximumf %1065, %983 : f32
    %1070 = arith.select %1068, %1069, %1065 : f32
    %1071 = arith.minimumf %1067, %983 : f32
    %1072 = arith.select %1068, %1067, %1071 : f32
    %cst_229 = arith.constant 2.046000e+03 : f32
    %1073 = arith.cmpf olt, %1025, %cst_229 : f32
    %1074 = arith.maximumf %1070, %985 : f32
    %1075 = arith.select %1073, %1074, %1070 : f32
    %1076 = arith.minimumf %1072, %985 : f32
    %1077 = arith.select %1073, %1072, %1076 : f32
    %cst_230 = arith.constant 2.046000e+03 : f32
    %1078 = arith.cmpf olt, %1033, %cst_230 : f32
    %1079 = arith.maximumf %1075, %987 : f32
    %1080 = arith.select %1078, %1079, %1075 : f32
    %1081 = arith.minimumf %1077, %987 : f32
    %1082 = arith.select %1078, %1077, %1081 : f32
    %cst_231 = arith.constant 2.046000e+03 : f32
    %1083 = arith.cmpf olt, %1041, %cst_231 : f32
    %1084 = arith.maximumf %1080, %989 : f32
    %1085 = arith.select %1083, %1084, %1080 : f32
    %1086 = arith.minimumf %1082, %989 : f32
    %1087 = arith.select %1083, %1082, %1086 : f32
    %cst_232 = arith.constant 2.046000e+03 : f32
    %1088 = arith.cmpf olt, %1049, %cst_232 : f32
    %1089 = arith.maximumf %1085, %991 : f32
    %1090 = arith.select %1088, %1089, %1085 : f32
    %1091 = arith.minimumf %1087, %991 : f32
    %1092 = arith.select %1088, %1087, %1091 : f32
    %cst_233 = arith.constant 2.046000e+03 : f32
    %1093 = arith.cmpf olt, %1057, %cst_233 : f32
    %1094 = arith.maximumf %1090, %993 : f32
    %1095 = arith.select %1093, %1094, %1090 : f32
    %1096 = arith.minimumf %1092, %993 : f32
    %1097 = arith.select %1093, %1092, %1096 : f32
    %1098 = arith.subf %1097, %1095 : f32
    %cst_234 = arith.constant 0.111111112 : f32
    %1099 = arith.mulf %cst_234, %1098 : f32
    %1100 = arith.addf %1095, %1099 : f32
    %cst_235 = arith.constant 0.222222224 : f32
    %1101 = arith.mulf %cst_235, %1098 : f32
    %1102 = arith.addf %1095, %1101 : f32
    %cst_236 = arith.constant 0.333333343 : f32
    %1103 = arith.mulf %cst_236, %1098 : f32
    %1104 = arith.addf %1095, %1103 : f32
    %cst_237 = arith.constant 0.444444448 : f32
    %1105 = arith.mulf %cst_237, %1098 : f32
    %1106 = arith.addf %1095, %1105 : f32
    %cst_238 = arith.constant 0.555555582 : f32
    %1107 = arith.mulf %cst_238, %1098 : f32
    %1108 = arith.addf %1095, %1107 : f32
    %cst_239 = arith.constant 0.666666686 : f32
    %1109 = arith.mulf %cst_239, %1098 : f32
    %1110 = arith.addf %1095, %1109 : f32
    %cst_240 = arith.constant 0.777777791 : f32
    %1111 = arith.mulf %cst_240, %1098 : f32
    %1112 = arith.addf %1095, %1111 : f32
    %cst_241 = arith.constant 0.888888895 : f32
    %1113 = arith.mulf %cst_241, %1098 : f32
    %1114 = arith.addf %1095, %1113 : f32
    %1115 = vector.broadcast %1100 : f32 to vector<16x128xf32>
    %1116 = arith.cmpf ole, %8, %1115 : vector<16x128xf32>
    %1117 = arith.extui %1116 : vector<16x128xi1> to vector<16x128xi32>
    %1118 = arith.sitofp %1117 : vector<16x128xi32> to vector<16x128xf32>
    %1119 = vector.shape_cast %1118 : vector<16x128xf32> to vector<1x16x128xf32>
    %cst_242 = arith.constant dense<0.000000e+00> : vector<1xf32>
    %1120 = vector.multi_reduction <add>, %1119, %cst_242 [1, 2] : vector<1x16x128xf32> to vector<1xf32>
    %1121 = vector.shape_cast %1120 : vector<1xf32> to vector<1x1x1xf32>
    %1122 = vector.extract %1121[0, 0, 0] : f32 from vector<1x1x1xf32>
    %1123 = vector.broadcast %1102 : f32 to vector<16x128xf32>
    %1124 = arith.cmpf ole, %8, %1123 : vector<16x128xf32>
    %1125 = arith.extui %1124 : vector<16x128xi1> to vector<16x128xi32>
    %1126 = arith.sitofp %1125 : vector<16x128xi32> to vector<16x128xf32>
    %1127 = vector.shape_cast %1126 : vector<16x128xf32> to vector<1x16x128xf32>
    %cst_243 = arith.constant dense<0.000000e+00> : vector<1xf32>
    %1128 = vector.multi_reduction <add>, %1127, %cst_243 [1, 2] : vector<1x16x128xf32> to vector<1xf32>
    %1129 = vector.shape_cast %1128 : vector<1xf32> to vector<1x1x1xf32>
    %1130 = vector.extract %1129[0, 0, 0] : f32 from vector<1x1x1xf32>
    %1131 = vector.broadcast %1104 : f32 to vector<16x128xf32>
    %1132 = arith.cmpf ole, %8, %1131 : vector<16x128xf32>
    %1133 = arith.extui %1132 : vector<16x128xi1> to vector<16x128xi32>
    %1134 = arith.sitofp %1133 : vector<16x128xi32> to vector<16x128xf32>
    %1135 = vector.shape_cast %1134 : vector<16x128xf32> to vector<1x16x128xf32>
    %cst_244 = arith.constant dense<0.000000e+00> : vector<1xf32>
    %1136 = vector.multi_reduction <add>, %1135, %cst_244 [1, 2] : vector<1x16x128xf32> to vector<1xf32>
    %1137 = vector.shape_cast %1136 : vector<1xf32> to vector<1x1x1xf32>
    %1138 = vector.extract %1137[0, 0, 0] : f32 from vector<1x1x1xf32>
    %1139 = vector.broadcast %1106 : f32 to vector<16x128xf32>
    %1140 = arith.cmpf ole, %8, %1139 : vector<16x128xf32>
    %1141 = arith.extui %1140 : vector<16x128xi1> to vector<16x128xi32>
    %1142 = arith.sitofp %1141 : vector<16x128xi32> to vector<16x128xf32>
    %1143 = vector.shape_cast %1142 : vector<16x128xf32> to vector<1x16x128xf32>
    %cst_245 = arith.constant dense<0.000000e+00> : vector<1xf32>
    %1144 = vector.multi_reduction <add>, %1143, %cst_245 [1, 2] : vector<1x16x128xf32> to vector<1xf32>
    %1145 = vector.shape_cast %1144 : vector<1xf32> to vector<1x1x1xf32>
    %1146 = vector.extract %1145[0, 0, 0] : f32 from vector<1x1x1xf32>
    %1147 = vector.broadcast %1108 : f32 to vector<16x128xf32>
    %1148 = arith.cmpf ole, %8, %1147 : vector<16x128xf32>
    %1149 = arith.extui %1148 : vector<16x128xi1> to vector<16x128xi32>
    %1150 = arith.sitofp %1149 : vector<16x128xi32> to vector<16x128xf32>
    %1151 = vector.shape_cast %1150 : vector<16x128xf32> to vector<1x16x128xf32>
    %cst_246 = arith.constant dense<0.000000e+00> : vector<1xf32>
    %1152 = vector.multi_reduction <add>, %1151, %cst_246 [1, 2] : vector<1x16x128xf32> to vector<1xf32>
    %1153 = vector.shape_cast %1152 : vector<1xf32> to vector<1x1x1xf32>
    %1154 = vector.extract %1153[0, 0, 0] : f32 from vector<1x1x1xf32>
    %1155 = vector.broadcast %1110 : f32 to vector<16x128xf32>
    %1156 = arith.cmpf ole, %8, %1155 : vector<16x128xf32>
    %1157 = arith.extui %1156 : vector<16x128xi1> to vector<16x128xi32>
    %1158 = arith.sitofp %1157 : vector<16x128xi32> to vector<16x128xf32>
    %1159 = vector.shape_cast %1158 : vector<16x128xf32> to vector<1x16x128xf32>
    %cst_247 = arith.constant dense<0.000000e+00> : vector<1xf32>
    %1160 = vector.multi_reduction <add>, %1159, %cst_247 [1, 2] : vector<1x16x128xf32> to vector<1xf32>
    %1161 = vector.shape_cast %1160 : vector<1xf32> to vector<1x1x1xf32>
    %1162 = vector.extract %1161[0, 0, 0] : f32 from vector<1x1x1xf32>
    %1163 = vector.broadcast %1112 : f32 to vector<16x128xf32>
    %1164 = arith.cmpf ole, %8, %1163 : vector<16x128xf32>
    %1165 = arith.extui %1164 : vector<16x128xi1> to vector<16x128xi32>
    %1166 = arith.sitofp %1165 : vector<16x128xi32> to vector<16x128xf32>
    %1167 = vector.shape_cast %1166 : vector<16x128xf32> to vector<1x16x128xf32>
    %cst_248 = arith.constant dense<0.000000e+00> : vector<1xf32>
    %1168 = vector.multi_reduction <add>, %1167, %cst_248 [1, 2] : vector<1x16x128xf32> to vector<1xf32>
    %1169 = vector.shape_cast %1168 : vector<1xf32> to vector<1x1x1xf32>
    %1170 = vector.extract %1169[0, 0, 0] : f32 from vector<1x1x1xf32>
    %1171 = vector.broadcast %1114 : f32 to vector<16x128xf32>
    %1172 = arith.cmpf ole, %8, %1171 : vector<16x128xf32>
    %1173 = arith.extui %1172 : vector<16x128xi1> to vector<16x128xi32>
    %1174 = arith.sitofp %1173 : vector<16x128xi32> to vector<16x128xf32>
    %1175 = vector.shape_cast %1174 : vector<16x128xf32> to vector<1x16x128xf32>
    %cst_249 = arith.constant dense<0.000000e+00> : vector<1xf32>
    %1176 = vector.multi_reduction <add>, %1175, %cst_249 [1, 2] : vector<1x16x128xf32> to vector<1xf32>
    %1177 = vector.shape_cast %1176 : vector<1xf32> to vector<1x1x1xf32>
    %1178 = vector.extract %1177[0, 0, 0] : f32 from vector<1x1x1xf32>
    %cst_250 = arith.constant 2.046000e+03 : f32
    %1179 = arith.cmpf olt, %1122, %cst_250 : f32
    %1180 = arith.maximumf %1095, %1100 : f32
    %1181 = arith.select %1179, %1180, %1095 : f32
    %1182 = arith.minimumf %1097, %1100 : f32
    %1183 = arith.select %1179, %1097, %1182 : f32
    %cst_251 = arith.constant 2.046000e+03 : f32
    %1184 = arith.cmpf olt, %1130, %cst_251 : f32
    %1185 = arith.maximumf %1181, %1102 : f32
    %1186 = arith.select %1184, %1185, %1181 : f32
    %1187 = arith.minimumf %1183, %1102 : f32
    %1188 = arith.select %1184, %1183, %1187 : f32
    %cst_252 = arith.constant 2.046000e+03 : f32
    %1189 = arith.cmpf olt, %1138, %cst_252 : f32
    %1190 = arith.maximumf %1186, %1104 : f32
    %1191 = arith.select %1189, %1190, %1186 : f32
    %1192 = arith.minimumf %1188, %1104 : f32
    %1193 = arith.select %1189, %1188, %1192 : f32
    %cst_253 = arith.constant 2.046000e+03 : f32
    %1194 = arith.cmpf olt, %1146, %cst_253 : f32
    %1195 = arith.maximumf %1191, %1106 : f32
    %1196 = arith.select %1194, %1195, %1191 : f32
    %1197 = arith.minimumf %1193, %1106 : f32
    %1198 = arith.select %1194, %1193, %1197 : f32
    %cst_254 = arith.constant 2.046000e+03 : f32
    %1199 = arith.cmpf olt, %1154, %cst_254 : f32
    %1200 = arith.maximumf %1196, %1108 : f32
    %1201 = arith.select %1199, %1200, %1196 : f32
    %1202 = arith.minimumf %1198, %1108 : f32
    %1203 = arith.select %1199, %1198, %1202 : f32
    %cst_255 = arith.constant 2.046000e+03 : f32
    %1204 = arith.cmpf olt, %1162, %cst_255 : f32
    %1205 = arith.maximumf %1201, %1110 : f32
    %1206 = arith.select %1204, %1205, %1201 : f32
    %1207 = arith.minimumf %1203, %1110 : f32
    %1208 = arith.select %1204, %1203, %1207 : f32
    %cst_256 = arith.constant 2.046000e+03 : f32
    %1209 = arith.cmpf olt, %1170, %cst_256 : f32
    %1210 = arith.maximumf %1206, %1112 : f32
    %1211 = arith.select %1209, %1210, %1206 : f32
    %1212 = arith.minimumf %1208, %1112 : f32
    %1213 = arith.select %1209, %1208, %1212 : f32
    %cst_257 = arith.constant 2.046000e+03 : f32
    %1214 = arith.cmpf olt, %1178, %cst_257 : f32
    %1215 = arith.maximumf %1211, %1114 : f32
    %1216 = arith.select %1214, %1215, %1211 : f32
    %1217 = arith.minimumf %1213, %1114 : f32
    %1218 = arith.select %1214, %1213, %1217 : f32
    %1219 = arith.subf %1218, %1216 : f32
    %cst_258 = arith.constant 0.111111112 : f32
    %1220 = arith.mulf %cst_258, %1219 : f32
    %1221 = arith.addf %1216, %1220 : f32
    %cst_259 = arith.constant 0.222222224 : f32
    %1222 = arith.mulf %cst_259, %1219 : f32
    %1223 = arith.addf %1216, %1222 : f32
    %cst_260 = arith.constant 0.333333343 : f32
    %1224 = arith.mulf %cst_260, %1219 : f32
    %1225 = arith.addf %1216, %1224 : f32
    %cst_261 = arith.constant 0.444444448 : f32
    %1226 = arith.mulf %cst_261, %1219 : f32
    %1227 = arith.addf %1216, %1226 : f32
    %cst_262 = arith.constant 0.555555582 : f32
    %1228 = arith.mulf %cst_262, %1219 : f32
    %1229 = arith.addf %1216, %1228 : f32
    %cst_263 = arith.constant 0.666666686 : f32
    %1230 = arith.mulf %cst_263, %1219 : f32
    %1231 = arith.addf %1216, %1230 : f32
    %cst_264 = arith.constant 0.777777791 : f32
    %1232 = arith.mulf %cst_264, %1219 : f32
    %1233 = arith.addf %1216, %1232 : f32
    %cst_265 = arith.constant 0.888888895 : f32
    %1234 = arith.mulf %cst_265, %1219 : f32
    %1235 = arith.addf %1216, %1234 : f32
    %1236 = vector.broadcast %1221 : f32 to vector<16x128xf32>
    %1237 = arith.cmpf ole, %8, %1236 : vector<16x128xf32>
    %1238 = arith.extui %1237 : vector<16x128xi1> to vector<16x128xi32>
    %1239 = arith.sitofp %1238 : vector<16x128xi32> to vector<16x128xf32>
    %1240 = vector.shape_cast %1239 : vector<16x128xf32> to vector<1x16x128xf32>
    %cst_266 = arith.constant dense<0.000000e+00> : vector<1xf32>
    %1241 = vector.multi_reduction <add>, %1240, %cst_266 [1, 2] : vector<1x16x128xf32> to vector<1xf32>
    %1242 = vector.shape_cast %1241 : vector<1xf32> to vector<1x1x1xf32>
    %1243 = vector.extract %1242[0, 0, 0] : f32 from vector<1x1x1xf32>
    %1244 = vector.broadcast %1223 : f32 to vector<16x128xf32>
    %1245 = arith.cmpf ole, %8, %1244 : vector<16x128xf32>
    %1246 = arith.extui %1245 : vector<16x128xi1> to vector<16x128xi32>
    %1247 = arith.sitofp %1246 : vector<16x128xi32> to vector<16x128xf32>
    %1248 = vector.shape_cast %1247 : vector<16x128xf32> to vector<1x16x128xf32>
    %cst_267 = arith.constant dense<0.000000e+00> : vector<1xf32>
    %1249 = vector.multi_reduction <add>, %1248, %cst_267 [1, 2] : vector<1x16x128xf32> to vector<1xf32>
    %1250 = vector.shape_cast %1249 : vector<1xf32> to vector<1x1x1xf32>
    %1251 = vector.extract %1250[0, 0, 0] : f32 from vector<1x1x1xf32>
    %1252 = vector.broadcast %1225 : f32 to vector<16x128xf32>
    %1253 = arith.cmpf ole, %8, %1252 : vector<16x128xf32>
    %1254 = arith.extui %1253 : vector<16x128xi1> to vector<16x128xi32>
    %1255 = arith.sitofp %1254 : vector<16x128xi32> to vector<16x128xf32>
    %1256 = vector.shape_cast %1255 : vector<16x128xf32> to vector<1x16x128xf32>
    %cst_268 = arith.constant dense<0.000000e+00> : vector<1xf32>
    %1257 = vector.multi_reduction <add>, %1256, %cst_268 [1, 2] : vector<1x16x128xf32> to vector<1xf32>
    %1258 = vector.shape_cast %1257 : vector<1xf32> to vector<1x1x1xf32>
    %1259 = vector.extract %1258[0, 0, 0] : f32 from vector<1x1x1xf32>
    %1260 = vector.broadcast %1227 : f32 to vector<16x128xf32>
    %1261 = arith.cmpf ole, %8, %1260 : vector<16x128xf32>
    %1262 = arith.extui %1261 : vector<16x128xi1> to vector<16x128xi32>
    %1263 = arith.sitofp %1262 : vector<16x128xi32> to vector<16x128xf32>
    %1264 = vector.shape_cast %1263 : vector<16x128xf32> to vector<1x16x128xf32>
    %cst_269 = arith.constant dense<0.000000e+00> : vector<1xf32>
    %1265 = vector.multi_reduction <add>, %1264, %cst_269 [1, 2] : vector<1x16x128xf32> to vector<1xf32>
    %1266 = vector.shape_cast %1265 : vector<1xf32> to vector<1x1x1xf32>
    %1267 = vector.extract %1266[0, 0, 0] : f32 from vector<1x1x1xf32>
    %1268 = vector.broadcast %1229 : f32 to vector<16x128xf32>
    %1269 = arith.cmpf ole, %8, %1268 : vector<16x128xf32>
    %1270 = arith.extui %1269 : vector<16x128xi1> to vector<16x128xi32>
    %1271 = arith.sitofp %1270 : vector<16x128xi32> to vector<16x128xf32>
    %1272 = vector.shape_cast %1271 : vector<16x128xf32> to vector<1x16x128xf32>
    %cst_270 = arith.constant dense<0.000000e+00> : vector<1xf32>
    %1273 = vector.multi_reduction <add>, %1272, %cst_270 [1, 2] : vector<1x16x128xf32> to vector<1xf32>
    %1274 = vector.shape_cast %1273 : vector<1xf32> to vector<1x1x1xf32>
    %1275 = vector.extract %1274[0, 0, 0] : f32 from vector<1x1x1xf32>
    %1276 = vector.broadcast %1231 : f32 to vector<16x128xf32>
    %1277 = arith.cmpf ole, %8, %1276 : vector<16x128xf32>
    %1278 = arith.extui %1277 : vector<16x128xi1> to vector<16x128xi32>
    %1279 = arith.sitofp %1278 : vector<16x128xi32> to vector<16x128xf32>
    %1280 = vector.shape_cast %1279 : vector<16x128xf32> to vector<1x16x128xf32>
    %cst_271 = arith.constant dense<0.000000e+00> : vector<1xf32>
    %1281 = vector.multi_reduction <add>, %1280, %cst_271 [1, 2] : vector<1x16x128xf32> to vector<1xf32>
    %1282 = vector.shape_cast %1281 : vector<1xf32> to vector<1x1x1xf32>
    %1283 = vector.extract %1282[0, 0, 0] : f32 from vector<1x1x1xf32>
    %1284 = vector.broadcast %1233 : f32 to vector<16x128xf32>
    %1285 = arith.cmpf ole, %8, %1284 : vector<16x128xf32>
    %1286 = arith.extui %1285 : vector<16x128xi1> to vector<16x128xi32>
    %1287 = arith.sitofp %1286 : vector<16x128xi32> to vector<16x128xf32>
    %1288 = vector.shape_cast %1287 : vector<16x128xf32> to vector<1x16x128xf32>
    %cst_272 = arith.constant dense<0.000000e+00> : vector<1xf32>
    %1289 = vector.multi_reduction <add>, %1288, %cst_272 [1, 2] : vector<1x16x128xf32> to vector<1xf32>
    %1290 = vector.shape_cast %1289 : vector<1xf32> to vector<1x1x1xf32>
    %1291 = vector.extract %1290[0, 0, 0] : f32 from vector<1x1x1xf32>
    %1292 = vector.broadcast %1235 : f32 to vector<16x128xf32>
    %1293 = arith.cmpf ole, %8, %1292 : vector<16x128xf32>
    %1294 = arith.extui %1293 : vector<16x128xi1> to vector<16x128xi32>
    %1295 = arith.sitofp %1294 : vector<16x128xi32> to vector<16x128xf32>
    %1296 = vector.shape_cast %1295 : vector<16x128xf32> to vector<1x16x128xf32>
    %cst_273 = arith.constant dense<0.000000e+00> : vector<1xf32>
    %1297 = vector.multi_reduction <add>, %1296, %cst_273 [1, 2] : vector<1x16x128xf32> to vector<1xf32>
    %1298 = vector.shape_cast %1297 : vector<1xf32> to vector<1x1x1xf32>
    %1299 = vector.extract %1298[0, 0, 0] : f32 from vector<1x1x1xf32>
    %cst_274 = arith.constant 2.046000e+03 : f32
    %1300 = arith.cmpf olt, %1243, %cst_274 : f32
    %1301 = arith.maximumf %1216, %1221 : f32
    %1302 = arith.select %1300, %1301, %1216 : f32
    %1303 = arith.minimumf %1218, %1221 : f32
    %1304 = arith.select %1300, %1218, %1303 : f32
    %cst_275 = arith.constant 2.046000e+03 : f32
    %1305 = arith.cmpf olt, %1251, %cst_275 : f32
    %1306 = arith.maximumf %1302, %1223 : f32
    %1307 = arith.select %1305, %1306, %1302 : f32
    %1308 = arith.minimumf %1304, %1223 : f32
    %1309 = arith.select %1305, %1304, %1308 : f32
    %cst_276 = arith.constant 2.046000e+03 : f32
    %1310 = arith.cmpf olt, %1259, %cst_276 : f32
    %1311 = arith.maximumf %1307, %1225 : f32
    %1312 = arith.select %1310, %1311, %1307 : f32
    %1313 = arith.minimumf %1309, %1225 : f32
    %1314 = arith.select %1310, %1309, %1313 : f32
    %cst_277 = arith.constant 2.046000e+03 : f32
    %1315 = arith.cmpf olt, %1267, %cst_277 : f32
    %1316 = arith.maximumf %1312, %1227 : f32
    %1317 = arith.select %1315, %1316, %1312 : f32
    %1318 = arith.minimumf %1314, %1227 : f32
    %1319 = arith.select %1315, %1314, %1318 : f32
    %cst_278 = arith.constant 2.046000e+03 : f32
    %1320 = arith.cmpf olt, %1275, %cst_278 : f32
    %1321 = arith.maximumf %1317, %1229 : f32
    %1322 = arith.select %1320, %1321, %1317 : f32
    %1323 = arith.minimumf %1319, %1229 : f32
    %1324 = arith.select %1320, %1319, %1323 : f32
    %cst_279 = arith.constant 2.046000e+03 : f32
    %1325 = arith.cmpf olt, %1283, %cst_279 : f32
    %1326 = arith.maximumf %1322, %1231 : f32
    %1327 = arith.select %1325, %1326, %1322 : f32
    %1328 = arith.minimumf %1324, %1231 : f32
    %1329 = arith.select %1325, %1324, %1328 : f32
    %cst_280 = arith.constant 2.046000e+03 : f32
    %1330 = arith.cmpf olt, %1291, %cst_280 : f32
    %1331 = arith.maximumf %1327, %1233 : f32
    %1332 = arith.select %1330, %1331, %1327 : f32
    %1333 = arith.minimumf %1329, %1233 : f32
    %1334 = arith.select %1330, %1329, %1333 : f32
    %cst_281 = arith.constant 2.046000e+03 : f32
    %1335 = arith.cmpf olt, %1299, %cst_281 : f32
    %1336 = arith.maximumf %1332, %1235 : f32
    %1337 = arith.select %1335, %1336, %1332 : f32
    %1338 = arith.minimumf %1334, %1235 : f32
    %1339 = arith.select %1335, %1334, %1338 : f32
    %1340 = arith.subf %1339, %1337 : f32
    %cst_282 = arith.constant 0.111111112 : f32
    %1341 = arith.mulf %cst_282, %1340 : f32
    %1342 = arith.addf %1337, %1341 : f32
    %cst_283 = arith.constant 0.222222224 : f32
    %1343 = arith.mulf %cst_283, %1340 : f32
    %1344 = arith.addf %1337, %1343 : f32
    %cst_284 = arith.constant 0.333333343 : f32
    %1345 = arith.mulf %cst_284, %1340 : f32
    %1346 = arith.addf %1337, %1345 : f32
    %cst_285 = arith.constant 0.444444448 : f32
    %1347 = arith.mulf %cst_285, %1340 : f32
    %1348 = arith.addf %1337, %1347 : f32
    %cst_286 = arith.constant 0.555555582 : f32
    %1349 = arith.mulf %cst_286, %1340 : f32
    %1350 = arith.addf %1337, %1349 : f32
    %cst_287 = arith.constant 0.666666686 : f32
    %1351 = arith.mulf %cst_287, %1340 : f32
    %1352 = arith.addf %1337, %1351 : f32
    %cst_288 = arith.constant 0.777777791 : f32
    %1353 = arith.mulf %cst_288, %1340 : f32
    %1354 = arith.addf %1337, %1353 : f32
    %cst_289 = arith.constant 0.888888895 : f32
    %1355 = arith.mulf %cst_289, %1340 : f32
    %1356 = arith.addf %1337, %1355 : f32
    %1357 = vector.broadcast %1342 : f32 to vector<16x128xf32>
    %1358 = arith.cmpf ole, %8, %1357 : vector<16x128xf32>
    %1359 = arith.extui %1358 : vector<16x128xi1> to vector<16x128xi32>
    %1360 = arith.sitofp %1359 : vector<16x128xi32> to vector<16x128xf32>
    %1361 = vector.shape_cast %1360 : vector<16x128xf32> to vector<1x16x128xf32>
    %cst_290 = arith.constant dense<0.000000e+00> : vector<1xf32>
    %1362 = vector.multi_reduction <add>, %1361, %cst_290 [1, 2] : vector<1x16x128xf32> to vector<1xf32>
    %1363 = vector.shape_cast %1362 : vector<1xf32> to vector<1x1x1xf32>
    %1364 = vector.extract %1363[0, 0, 0] : f32 from vector<1x1x1xf32>
    %1365 = vector.broadcast %1344 : f32 to vector<16x128xf32>
    %1366 = arith.cmpf ole, %8, %1365 : vector<16x128xf32>
    %1367 = arith.extui %1366 : vector<16x128xi1> to vector<16x128xi32>
    %1368 = arith.sitofp %1367 : vector<16x128xi32> to vector<16x128xf32>
    %1369 = vector.shape_cast %1368 : vector<16x128xf32> to vector<1x16x128xf32>
    %cst_291 = arith.constant dense<0.000000e+00> : vector<1xf32>
    %1370 = vector.multi_reduction <add>, %1369, %cst_291 [1, 2] : vector<1x16x128xf32> to vector<1xf32>
    %1371 = vector.shape_cast %1370 : vector<1xf32> to vector<1x1x1xf32>
    %1372 = vector.extract %1371[0, 0, 0] : f32 from vector<1x1x1xf32>
    %1373 = vector.broadcast %1346 : f32 to vector<16x128xf32>
    %1374 = arith.cmpf ole, %8, %1373 : vector<16x128xf32>
    %1375 = arith.extui %1374 : vector<16x128xi1> to vector<16x128xi32>
    %1376 = arith.sitofp %1375 : vector<16x128xi32> to vector<16x128xf32>
    %1377 = vector.shape_cast %1376 : vector<16x128xf32> to vector<1x16x128xf32>
    %cst_292 = arith.constant dense<0.000000e+00> : vector<1xf32>
    %1378 = vector.multi_reduction <add>, %1377, %cst_292 [1, 2] : vector<1x16x128xf32> to vector<1xf32>
    %1379 = vector.shape_cast %1378 : vector<1xf32> to vector<1x1x1xf32>
    %1380 = vector.extract %1379[0, 0, 0] : f32 from vector<1x1x1xf32>
    %1381 = vector.broadcast %1348 : f32 to vector<16x128xf32>
    %1382 = arith.cmpf ole, %8, %1381 : vector<16x128xf32>
    %1383 = arith.extui %1382 : vector<16x128xi1> to vector<16x128xi32>
    %1384 = arith.sitofp %1383 : vector<16x128xi32> to vector<16x128xf32>
    %1385 = vector.shape_cast %1384 : vector<16x128xf32> to vector<1x16x128xf32>
    %cst_293 = arith.constant dense<0.000000e+00> : vector<1xf32>
    %1386 = vector.multi_reduction <add>, %1385, %cst_293 [1, 2] : vector<1x16x128xf32> to vector<1xf32>
    %1387 = vector.shape_cast %1386 : vector<1xf32> to vector<1x1x1xf32>
    %1388 = vector.extract %1387[0, 0, 0] : f32 from vector<1x1x1xf32>
    %1389 = vector.broadcast %1350 : f32 to vector<16x128xf32>
    %1390 = arith.cmpf ole, %8, %1389 : vector<16x128xf32>
    %1391 = arith.extui %1390 : vector<16x128xi1> to vector<16x128xi32>
    %1392 = arith.sitofp %1391 : vector<16x128xi32> to vector<16x128xf32>
    %1393 = vector.shape_cast %1392 : vector<16x128xf32> to vector<1x16x128xf32>
    %cst_294 = arith.constant dense<0.000000e+00> : vector<1xf32>
    %1394 = vector.multi_reduction <add>, %1393, %cst_294 [1, 2] : vector<1x16x128xf32> to vector<1xf32>
    %1395 = vector.shape_cast %1394 : vector<1xf32> to vector<1x1x1xf32>
    %1396 = vector.extract %1395[0, 0, 0] : f32 from vector<1x1x1xf32>
    %1397 = vector.broadcast %1352 : f32 to vector<16x128xf32>
    %1398 = arith.cmpf ole, %8, %1397 : vector<16x128xf32>
    %1399 = arith.extui %1398 : vector<16x128xi1> to vector<16x128xi32>
    %1400 = arith.sitofp %1399 : vector<16x128xi32> to vector<16x128xf32>
    %1401 = vector.shape_cast %1400 : vector<16x128xf32> to vector<1x16x128xf32>
    %cst_295 = arith.constant dense<0.000000e+00> : vector<1xf32>
    %1402 = vector.multi_reduction <add>, %1401, %cst_295 [1, 2] : vector<1x16x128xf32> to vector<1xf32>
    %1403 = vector.shape_cast %1402 : vector<1xf32> to vector<1x1x1xf32>
    %1404 = vector.extract %1403[0, 0, 0] : f32 from vector<1x1x1xf32>
    %1405 = vector.broadcast %1354 : f32 to vector<16x128xf32>
    %1406 = arith.cmpf ole, %8, %1405 : vector<16x128xf32>
    %1407 = arith.extui %1406 : vector<16x128xi1> to vector<16x128xi32>
    %1408 = arith.sitofp %1407 : vector<16x128xi32> to vector<16x128xf32>
    %1409 = vector.shape_cast %1408 : vector<16x128xf32> to vector<1x16x128xf32>
    %cst_296 = arith.constant dense<0.000000e+00> : vector<1xf32>
    %1410 = vector.multi_reduction <add>, %1409, %cst_296 [1, 2] : vector<1x16x128xf32> to vector<1xf32>
    %1411 = vector.shape_cast %1410 : vector<1xf32> to vector<1x1x1xf32>
    %1412 = vector.extract %1411[0, 0, 0] : f32 from vector<1x1x1xf32>
    %1413 = vector.broadcast %1356 : f32 to vector<16x128xf32>
    %1414 = arith.cmpf ole, %8, %1413 : vector<16x128xf32>
    %1415 = arith.extui %1414 : vector<16x128xi1> to vector<16x128xi32>
    %1416 = arith.sitofp %1415 : vector<16x128xi32> to vector<16x128xf32>
    %1417 = vector.shape_cast %1416 : vector<16x128xf32> to vector<1x16x128xf32>
    %cst_297 = arith.constant dense<0.000000e+00> : vector<1xf32>
    %1418 = vector.multi_reduction <add>, %1417, %cst_297 [1, 2] : vector<1x16x128xf32> to vector<1xf32>
    %1419 = vector.shape_cast %1418 : vector<1xf32> to vector<1x1x1xf32>
    %1420 = vector.extract %1419[0, 0, 0] : f32 from vector<1x1x1xf32>
    %cst_298 = arith.constant 2.046000e+03 : f32
    %1421 = arith.cmpf olt, %1364, %cst_298 : f32
    %1422 = arith.maximumf %1337, %1342 : f32
    %1423 = arith.select %1421, %1422, %1337 : f32
    %cst_299 = arith.constant 2.046000e+03 : f32
    %1424 = arith.cmpf olt, %1372, %cst_299 : f32
    %1425 = arith.maximumf %1423, %1344 : f32
    %1426 = arith.select %1424, %1425, %1423 : f32
    %cst_300 = arith.constant 2.046000e+03 : f32
    %1427 = arith.cmpf olt, %1380, %cst_300 : f32
    %1428 = arith.maximumf %1426, %1346 : f32
    %1429 = arith.select %1427, %1428, %1426 : f32
    %cst_301 = arith.constant 2.046000e+03 : f32
    %1430 = arith.cmpf olt, %1388, %cst_301 : f32
    %1431 = arith.maximumf %1429, %1348 : f32
    %1432 = arith.select %1430, %1431, %1429 : f32
    %cst_302 = arith.constant 2.046000e+03 : f32
    %1433 = arith.cmpf olt, %1396, %cst_302 : f32
    %1434 = arith.maximumf %1432, %1350 : f32
    %1435 = arith.select %1433, %1434, %1432 : f32
    %cst_303 = arith.constant 2.046000e+03 : f32
    %1436 = arith.cmpf olt, %1404, %cst_303 : f32
    %1437 = arith.maximumf %1435, %1352 : f32
    %1438 = arith.select %1436, %1437, %1435 : f32
    %cst_304 = arith.constant 2.046000e+03 : f32
    %1439 = arith.cmpf olt, %1412, %cst_304 : f32
    %1440 = arith.maximumf %1438, %1354 : f32
    %1441 = arith.select %1439, %1440, %1438 : f32
    %cst_305 = arith.constant 2.046000e+03 : f32
    %1442 = arith.cmpf olt, %1420, %cst_305 : f32
    %1443 = arith.maximumf %1441, %1356 : f32
    %1444 = arith.select %1442, %1443, %1441 : f32
    %1445 = vector.broadcast %1444 : f32 to vector<16x128xf32>
    %1446 = arith.cmpf ogt, %8, %1445 : vector<16x128xf32>
    %cst_306 = arith.constant 0x7F800000 : f32
    %1447 = vector.broadcast %cst_306 : f32 to vector<16x128xf32>
    %1448 = arith.select %1446, %8, %1447 : vector<16x128xi1>, vector<16x128xf32>
    %1449 = vector.shape_cast %1448 : vector<16x128xf32> to vector<1x16x128xf32>
    %cst_307 = arith.constant dense<0x7F800000> : vector<1xf32>
    %1450 = vector.multi_reduction <minimumf>, %1449, %cst_307 [1, 2] : vector<1x16x128xf32> to vector<1xf32>
    %1451 = vector.shape_cast %1450 : vector<1xf32> to vector<1x1x1xf32>
    %1452 = vector.extract %1451[0, 0, 0] : f32 from vector<1x1x1xf32>
    %c0_308 = arith.constant 0 : index
    %c0_309 = arith.constant 0 : index
    %1453 = memref.load %arg3[%c0_308, %c0_309] : memref<1x1xf32, #tpu.memory_space<smem>>
    %1454 = arith.maximumf %1453, %1452 : f32
    %c0_310 = arith.constant 0 : index
    %c0_311 = arith.constant 0 : index
    %1455 = memref.load %arg3[%c0_310, %c0_311] : memref<1x1xf32, #tpu.memory_space<smem>>
    memref.store %1454, %arg3[%c0_310, %c0_311] : memref<1x1xf32, #tpu.memory_space<smem>>
    %c1_i32 = arith.constant 1 : i32
    %1456 = arith.cmpi eq, %arg0, %c1_i32 : i32
    %1457 = arith.extui %1456 : i1 to i32
    %c0_i32_312 = arith.constant 0 : i32
    %1458 = arith.cmpi ne, %1457, %c0_i32_312 : i32
    scf.if %1458 {
      %c0_313 = arith.constant 0 : index
      %c0_314 = arith.constant 0 : index
      %1459 = memref.load %arg3[%c0_313, %c0_314] : memref<1x1xf32, #tpu.memory_space<smem>>
      %1460 = vector.broadcast %1459 : f32 to vector<1x1xf32>
      %c0_315 = arith.constant 0 : index
      %c0_316 = arith.constant 0 : index
      %1461 = vector.load %arg2[%c0_315, %c0_316] : memref<1x1xf32, #tpu.memory_space<vmem>>, vector<1x1xf32>
      tpu.vector_store %arg2[%c0_315, %c0_316], %1460 {strides = array<i32>} : memref<1x1xf32, #tpu.memory_space<vmem>>, vector<1x1xf32>,
    } else {
    }
    return
  }
  func.func @transform_0(%arg0: i32) -> (i32, i32, i32) {
    %c0_i32 = arith.constant 0 : i32
    %c0_i32_0 = arith.constant 0 : i32
    %c0_i32_1 = arith.constant 0 : i32
    return %arg0, %c0_i32, %c0_i32_0 : i32, i32, i32
  }
  func.func @transform_1(%arg0: i32) -> (i32, i32) {
    %c0_i32 = arith.constant 0 : i32
    %c0_i32_0 = arith.constant 0 : i32
    %c0_i32_1 = arith.constant 0 : i32
    return %c0_i32, %c0_i32_0 : i32, i32
  }
}

</mosaic_0001>

<llo_original>
// kernel: tpu_custom_call.1
$region0: #{tpu_custom_call.1}
  #allocation0 [shape = 'u32[]', space=smem, size = 0x4, offset = 0x4, fixed_abs, tag = 'smem constant byte address 0x4 - core index']
  #allocation1 [shape = 'u32[144,128]{1,0:T(1,128)}', space=vmem, size = 0x12000, scoped, tag = 'internal scratch']
  #allocation2 [shape = 'f32[1,1]{1,0:T(1,128)}', space=smem, size = 0x200, scoped, tag = 'scratch operand']
  %s0 = inlined_call_operand.hbm [shape: f32[2,16,128], index: 0, kind: input, shape index: {}]
  %s1 = inlined_call_operand.hbm [shape: f32[1,1], index: 1, kind: output, shape index: {}]
  %s2 = sld [smem:[#allocation0]]
  $region49: #{tpu_custom_call.1} parent=0
    _
  %s4 = ssub.s32 1, %s2
  %s5 = scalar_select 0, %s4, %s2
  $region1: #{tpu_custom_call.1} parent=0
    #allocation3 [shape = 'u8[16384]{0}', space=vmem, size = 0x4000, scoped, tag = 'input window, operand 0']
    #allocation4 [shape = 's32[2]{0}', space=sflag, size = 0x8, scoped, tag = 'scoped memory for tpu_custom_call.1']
    #allocation5 [shape = 's32[2]{0}', space=sflag, size = 0x8, scoped, tag = 'scoped memory for tpu_custom_call.1']
    #allocation6 [shape = 'u8[512]{0}', space=vmem, size = 0x400, scoped, tag = 'output window, operand 0, single buffered']
    %6 = vsyncpa [#allocation4], 0
    %s7 = scalar_lea.sflag [#allocation4], 1
    %8 = vsyncpa %s7, 0
    %9 = vsyncpa [#allocation5], 0
    loop: start=0, step=1, limit=4
    $region2: #{tpu_custom_call.1} parent=1 // loop_pre_header
      _
    $region3: #{tpu_custom_call.1} parent=1 // loop_header
      %s11 = sphi 0, %s15
      %p12 = scmp.ge.s32.totalorder %s11, 4
      %s21 = sphi 0, %s23
      %s24 = sphi 0, %s21
      %s25 = sphi 0, %s24
      %s41 = sphi 0, %s25
      %s45 = sphi 0, %s45
      %s47 = sphi 0, %s45
      %s48 = sphi 0, %s47
      %s62 = sphi 0, %s48
    $region4: #{tpu_custom_call.1} parent=1 // loop_header_branch
      %14 = sbr.rel (%p12) target = $region8
    $region5: #{tpu_custom_call.1} parent=1 // loop_body
      %s16 = ssub.s32 %s11, 1
      %s17 = ssub.s32 %s11, 2
      %s18 = sadd.s32 %s11, 1
      %s19 = ssub.s32 %s11, %s18
      %p20 = scmp.eq.s32.totalorder %s19, 0
      %s22 = sadd.s32 %s21, 1
      %s23 = scalar_select %p20, %s21, %s22
      %p26 = pneg %p20
      %p27 = scmp.eq.s32.totalorder %s11, 1
      %p28 = por %p26, %p27
      %p29 = scmp.ne.s32.totalorder %s21, %s24
      %p30 = scmp.eq.s32.totalorder %s11, 0
      %p31 = por %p29, %p30
      %p32 = scmp.ne.s32.totalorder %s21, %s24
      %p33 = scmp.eq.s32.totalorder %s16, 1
      %p34 = por %p32, %p33
      %p35 = scmp.ne.s32.totalorder %s24, %s25
      %p36 = scmp.eq.s32.totalorder %s16, 0
      %p37 = por %p35, %p36
      %p38 = scmp.ne.s32.totalorder %s24, %s25
      %p39 = scmp.eq.s32.totalorder %s17, 1
      %p40 = por %p38, %p39
      %p42 = scmp.ne.s32.totalorder %s25, %s41
      %p43 = scmp.eq.s32.totalorder %s17, 0
      %p44 = por %p42, %p43
      %s46 = sadd.s32 %s45, 1
      %p49 = scmp.eq.s32.totalorder %s11, 1
      %p50 = scmp.ne.s32.totalorder %s45, %s47
      %p51 = scmp.eq.s32.totalorder %s11, 0
      %p52 = por %p50, %p51
      %p53 = scmp.ne.s32.totalorder %s45, %s47
      %p54 = scmp.eq.s32.totalorder %s16, 1
      %p55 = por %p53, %p54
      %p56 = scmp.ne.s32.totalorder %s47, %s48
      %p57 = scmp.eq.s32.totalorder %s16, 0
      %p58 = por %p56, %p57
      %p59 = scmp.ne.s32.totalorder %s47, %s48
      %p60 = scmp.eq.s32.totalorder %s17, 1
      %p61 = por %p59, %p60
      %p63 = scmp.ne.s32.totalorder %s48, %s62
      %p64 = scmp.eq.s32.totalorder %s17, 0
      %p65 = por %p63, %p64
      %p66 = scmp.le.s32.totalorder 1, %s11
      %p67 = scmp.lt.s32.totalorder %s11, 3
      %p68 = pnand %p66, %p67
      %p69 = pneg %p68
      // Predicated region
      $region9: #{tpu_custom_call.1} parent=5 // pred_check
        _
      $region10: #{tpu_custom_call.1} parent=5 // pred_check_branch
        %71 = sbr.rel (%p68) target = $region12
      $region11: #{tpu_custom_call.1} parent=5 // pred_region
        %s72 = ssub.s32 %s11, 1
      $region12: #{tpu_custom_call.1} parent=5 // pred_fallthru
        _
      %p73 = scmp.lt.s32.totalorder %s11, 2
      // Predicated region
      $region13: #{tpu_custom_call.1} parent=5 // pred_check
        %p74 = pneg %p73
      $region14: #{tpu_custom_call.1} parent=5 // pred_check_branch
        %76 = sbr.rel (%p74) target = $region16
      $region15: #{tpu_custom_call.1} parent=5 // pred_region
        // Predicated region
        $region17: #{tpu_custom_call.1} parent=15 // pred_check
          %p77 = pneg %p31
        $region18: #{tpu_custom_call.1} parent=15 // pred_check_branch
          %79 = sbr.rel (%p77) target = $region20
        $region19: #{tpu_custom_call.1} parent=15 // pred_region
          %s80 = sand.u32 %s21, 1
          %s81 = scalar_lea.sflag [#allocation4], %s80
          %s82 = sand.u32 %s21, 1
          %s83 = smul.addr %s82, 16
          %s84 = scalar_lea.vmem [#allocation3], %s83
          %s86 = ssub.s32 256, 256
          %87 = vsyncadd %s81, %s86
          %s88 = smul.addr %s11, 2
          %s89 = smul.addr %s88, 128
          %s90 = scalar_lea.hbm %s0, %s89
          %s91 = sshll.u32 %s84, 4
          %s92 = int_to_ptr.vmem [resolvable:$true] %s91
          %97 = dma.hbm_to_vmem [thread:$0]  %s90, 256, %s92, %s81, 128, 128, 8
        $region20: #{tpu_custom_call.1} parent=15 // pred_fallthru
          _
      $region16: #{tpu_custom_call.1} parent=5 // pred_fallthru
        _
      %p98 = scmp.le.s32.totalorder 1, %s11
      %p99 = scmp.lt.s32.totalorder %s11, 3
      %p100 = pnand %p98, %p99
      %p101 = pneg %p100
      // Predicated region
      $region21: #{tpu_custom_call.1} parent=5 // pred_check
        _
      $region22: #{tpu_custom_call.1} parent=5 // pred_check_branch
        %103 = sbr.rel (%p100) target = $region24
      $region23: #{tpu_custom_call.1} parent=5 // pred_region
        %s104 = ssub.s32 %s11, 1
        %s105 = sand.u32 %s24, 1
        %s106 = scalar_lea.sflag [#allocation4], %s105
        %s107 = sand.u32 %s24, 1
        %s108 = smul.addr %s107, 16
        %s109 = scalar_lea.vmem [#allocation3], %s108
        // Predicated region
        $region25: #{tpu_custom_call.1} parent=23 // pred_check
          %p110 = pneg %p37
        $region26: #{tpu_custom_call.1} parent=23 // pred_check_branch
          %112 = sbr.rel (%p110) target = $region28
        $region27: #{tpu_custom_call.1} parent=23 // pred_region
          %113 = dma.done %s106, 256
        $region28: #{tpu_custom_call.1} parent=23 // pred_fallthru
          _
        %s114 = sand.u32 %s24, 1
        %s115 = scalar_lea.sflag [#allocation4], %s114
        %s116 = sand.u32 %s24, 1
        %s117 = smul.addr %s116, 16
        %s118 = scalar_lea.vmem [#allocation3], %s117
        %p119 = pneg %p37
        %p120 = pneg %p34
        %p121 = pneg %p58
        %p122 = pneg %p55
        %p123 = scmp.eq.s32.totalorder %s16, 0
        // Predicated region
        $region29: #{tpu_custom_call.1} parent=23 // pred_check
          %p124 = pneg %p123
        $region30: #{tpu_custom_call.1} parent=23 // pred_check_branch
          %126 = sbr.rel (%p124) target = $region32
        $region31: #{tpu_custom_call.1} parent=23 // pred_region
          %s127 = scalar_lea.smem [#allocation2], 0
          %128 = sst [smem:[%s127]] 0.0
        $region32: #{tpu_custom_call.1} parent=23 // pred_fallthru
          _
        %v129 = vld [vmem:[%s109] sm:$0xff]
        %v130 = vld [vmem:[%s109 + $0x8] sm:$0xff]
        %v131 = vmax.f32 %v129, 0.0
        %v132 = vmax.f32 %v130, 0.0
        %v133 = vmin.f32 %v131, 0.999
        %v134 = vmin.f32 %v132, 0.999
        %vm135 = vcmp.le.f32.partialorder %v133, 0.11011111
        %vm136 = vcmp.le.f32.partialorder %v134, 0.11011111
        %v137 = vsel %vm135, 1, 0
        %v138 = vsel %vm136, 1, 0
        %v139 = vcvt.s32.f32 %v137
        %v140 = vcvt.s32.f32 %v138
        %v141 = vadd.f32 %v139, %v140
        %142 = vadd.xlane.f32.xlu0 %v141
        %v143 = vpop.xlane.xlu0 %142
        %v144 = vrot.slane %v143, 4
        %v145 = vadd.f32 %v143, %v144
        %v146 = vrot.slane %v145, 2
        %v147 = vadd.f32 %v145, %v146
        %v148 = vrot.slane %v147, 1
        %v149 = vadd.f32 %v147, %v148
        %s150 = vtos %v149
        %vm151 = vcmp.le.f32.partialorder %v133, 0.22122222
        %vm152 = vcmp.le.f32.partialorder %v134, 0.22122222
        %v153 = vsel %vm151, 1, 0
        %v154 = vsel %vm152, 1, 0
        %v155 = vcvt.s32.f32 %v153
        %v156 = vcvt.s32.f32 %v154
        %v157 = vadd.f32 %v155, %v156
        %158 = vadd.xlane.f32.xlu0 %v157
        %v159 = vpop.xlane.xlu0 %158
        %v160 = vrot.slane %v159, 4
        %v161 = vadd.f32 %v159, %v160
        %v162 = vrot.slane %v161, 2
        %v163 = vadd.f32 %v161, %v162
        %v164 = vrot.slane %v163, 1
        %v165 = vadd.f32 %v163, %v164
        %s166 = vtos %v165
        %vm167 = vcmp.le.f32.partialorder %v133, 0.33233336
        %vm168 = vcmp.le.f32.partialorder %v134, 0.33233336
        %v169 = vsel %vm167, 1, 0
        %v170 = vsel %vm168, 1, 0
        %v171 = vcvt.s32.f32 %v169
        %v172 = vcvt.s32.f32 %v170
        %v173 = vadd.f32 %v171, %v172
        %174 = vadd.xlane.f32.xlu0 %v173
        %v175 = vpop.xlane.xlu0 %174
        %v176 = vrot.slane %v175, 4
        %v177 = vadd.f32 %v175, %v176
        %v178 = vrot.slane %v177, 2
        %v179 = vadd.f32 %v177, %v178
        %v180 = vrot.slane %v179, 1
        %v181 = vadd.f32 %v179, %v180
        %s182 = vtos %v181
        %vm183 = vcmp.le.f32.partialorder %v133, 0.44344446
        %vm184 = vcmp.le.f32.partialorder %v134, 0.44344446
        %v185 = vsel %vm183, 1, 0
        %v186 = vsel %vm184, 1, 0
        %v187 = vcvt.s32.f32 %v185
        %v188 = vcvt.s32.f32 %v186
        %v189 = vadd.f32 %v187, %v188
        %190 = vadd.xlane.f32.xlu0 %v189
        %v191 = vpop.xlane.xlu0 %190
        %v192 = vrot.slane %v191, 4
        %v193 = vadd.f32 %v191, %v192
        %v194 = vrot.slane %v193, 2
        %v195 = vadd.f32 %v193, %v194
        %v196 = vrot.slane %v195, 1
        %v197 = vadd.f32 %v195, %v196
        %s198 = vtos %v197
        %vm199 = vcmp.le.f32.partialorder %v133, 0.5545556
        %vm200 = vcmp.le.f32.partialorder %v134, 0.5545556
        %v201 = vsel %vm199, 1, 0
        %v202 = vsel %vm200, 1, 0
        %v203 = vcvt.s32.f32 %v201
        %v204 = vcvt.s32.f32 %v202
        %v205 = vadd.f32 %v203, %v204
        %206 = vadd.xlane.f32.xlu0 %v205
        %v207 = vpop.xlane.xlu0 %206
        %v208 = vrot.slane %v207, 4
        %v209 = vadd.f32 %v207, %v208
        %v210 = vrot.slane %v209, 2
        %v211 = vadd.f32 %v209, %v210
        %v212 = vrot.slane %v211, 1
        %v213 = vadd.f32 %v211, %v212
        %s214 = vtos %v213
        %vm215 = vcmp.le.f32.partialorder %v133, 0.6656667
        %vm216 = vcmp.le.f32.partialorder %v134, 0.6656667
        %v217 = vsel %vm215, 1, 0
        %v218 = vsel %vm216, 1, 0
        %v219 = vcvt.s32.f32 %v217
        %v220 = vcvt.s32.f32 %v218
        %v221 = vadd.f32 %v219, %v220
        %222 = vadd.xlane.f32.xlu0 %v221
        %v223 = vpop.xlane.xlu0 %222
        %v224 = vrot.slane %v223, 4
        %v225 = vadd.f32 %v223, %v224
        %v226 = vrot.slane %v225, 2
        %v227 = vadd.f32 %v225, %v226
        %v228 = vrot.slane %v227, 1
        %v229 = vadd.f32 %v227, %v228
        %s230 = vtos %v229
        %vm231 = vcmp.le.f32.partialorder %v133, 0.7767778
        %vm232 = vcmp.le.f32.partialorder %v134, 0.7767778
        %v233 = vsel %vm231, 1, 0
        %v234 = vsel %vm232, 1, 0
        %v235 = vcvt.s32.f32 %v233
        %v236 = vcvt.s32.f32 %v234
        %v237 = vadd.f32 %v235, %v236
        %238 = vadd.xlane.f32.xlu0 %v237
        %v239 = vpop.xlane.xlu0 %238
        %v240 = vrot.slane %v239, 4
        %v241 = vadd.f32 %v239, %v240
        %v242 = vrot.slane %v241, 2
        %v243 = vadd.f32 %v241, %v242
        %v244 = vrot.slane %v243, 1
        %v245 = vadd.f32 %v243, %v244
        %s246 = vtos %v245
        %vm247 = vcmp.le.f32.partialorder %v133, 0.8878889
        %vm248 = vcmp.le.f32.partialorder %v134, 0.8878889
        %v249 = vsel %vm247, 1, 0
        %v250 = vsel %vm248, 1, 0
        %v251 = vcvt.s32.f32 %v249
        %v252 = vcvt.s32.f32 %v250
        %v253 = vadd.f32 %v251, %v252
        %254 = vadd.xlane.f32.xlu0 %v253
        %v255 = vpop.xlane.xlu0 %254
        %v256 = vrot.slane %v255, 4
        %v257 = vadd.f32 %v255, %v256
        %v258 = vrot.slane %v257, 2
        %v259 = vadd.f32 %v257, %v258
        %v260 = vrot.slane %v259, 1
        %v261 = vadd.f32 %v259, %v260
        %s262 = vtos %v261
        %p263 = scmp.lt.f32.partialorder %s150, 2046.0
        %s264 = scalar_select %p263, 0.11011111, -0.001
        %s265 = scalar_select %p263, 0.999, 0.11011111
        %p266 = scmp.lt.f32.partialorder %s166, 2046.0
        %s267 = smax.f32 %s264, 0.22122222
        %s268 = scalar_select %p266, %s267, %s264
        %s269 = smin.f32 %s265, 0.22122222
        %s270 = scalar_select %p266, %s265, %s269
        %p271 = scmp.lt.f32.partialorder %s182, 2046.0
        %s272 = smax.f32 %s268, 0.33233336
        %s273 = scalar_select %p271, %s272, %s268
        %s274 = smin.f32 %s270, 0.33233336
        %s275 = scalar_select %p271, %s270, %s274
        %p276 = scmp.lt.f32.partialorder %s198, 2046.0
        %s277 = smax.f32 %s273, 0.44344446
        %s278 = scalar_select %p276, %s277, %s273
        %s279 = smin.f32 %s275, 0.44344446
        %s280 = scalar_select %p276, %s275, %s279
        %p281 = scmp.lt.f32.partialorder %s214, 2046.0
        %s282 = smax.f32 %s278, 0.5545556
        %s283 = scalar_select %p281, %s282, %s278
        %s284 = smin.f32 %s280, 0.5545556
        %s285 = scalar_select %p281, %s280, %s284
        %p286 = scmp.lt.f32.partialorder %s230, 2046.0
        %s287 = smax.f32 %s283, 0.6656667
        %s288 = scalar_select %p286, %s287, %s283
        %s289 = smin.f32 %s285, 0.6656667
        %s290 = scalar_select %p286, %s285, %s289
        %p291 = scmp.lt.f32.partialorder %s246, 2046.0
        %s292 = smax.f32 %s288, 0.7767778
        %s293 = scalar_select %p291, %s292, %s288
        %s294 = smin.f32 %s290, 0.7767778
        %s295 = scalar_select %p291, %s290, %s294
        %p296 = scmp.lt.f32.partialorder %s262, 2046.0
        %s297 = smax.f32 %s293, 0.8878889
        %s298 = scalar_select %p296, %s297, %s293
        %s299 = smin.f32 %s295, 0.8878889
        %s300 = scalar_select %p296, %s295, %s299
        %s301 = ssub.f32 %s300, %s298
        %s302 = smul.f32 %s301, 0.11111111
        %s303 = sadd.f32 %s298, %s302
        %s304 = smul.f32 %s301, 0.22222222
        %s305 = sadd.f32 %s298, %s304
        %s306 = smul.f32 %s301, 0.33333334
        %s307 = sadd.f32 %s298, %s306
        %s308 = smul.f32 %s301, 0.44444445
        %s309 = sadd.f32 %s298, %s308
        %s310 = smul.f32 %s301, 0.5555556
        %s311 = sadd.f32 %s298, %s310
        %s312 = smul.f32 %s301, 0.6666667
        %s313 = sadd.f32 %s298, %s312
        %s314 = smul.f32 %s301, 0.7777778
        %s315 = sadd.f32 %s298, %s314
        %s316 = smul.f32 %s301, 0.8888889
        %s317 = sadd.f32 %s298, %s316
        %v318 = vstv %s303
        %vm319 = vcmp.le.f32.partialorder %v133, %v318
        %vm320 = vcmp.le.f32.partialorder %v134, %v318
        %v321 = vsel %vm319, 1, 0
        %v322 = vsel %vm320, 1, 0
        %v323 = vcvt.s32.f32 %v321
        %v324 = vcvt.s32.f32 %v322
        %v325 = vadd.f32 %v323, %v324
        %326 = vadd.xlane.f32.xlu0 %v325
        %v327 = vpop.xlane.xlu0 %326
        %v328 = vrot.slane %v327, 4
        %v329 = vadd.f32 %v327, %v328
        %v330 = vrot.slane %v329, 2
        %v331 = vadd.f32 %v329, %v330
        %v332 = vrot.slane %v331, 1
        %v333 = vadd.f32 %v331, %v332
        %s334 = vtos %v333
        %v335 = vstv %s305
        %vm336 = vcmp.le.f32.partialorder %v133, %v335
        %vm337 = vcmp.le.f32.partialorder %v134, %v335
        %v338 = vsel %vm336, 1, 0
        %v339 = vsel %vm337, 1, 0
        %v340 = vcvt.s32.f32 %v338
        %v341 = vcvt.s32.f32 %v339
        %v342 = vadd.f32 %v340, %v341
        %343 = vadd.xlane.f32.xlu0 %v342
        %v344 = vpop.xlane.xlu0 %343
        %v345 = vrot.slane %v344, 4
        %v346 = vadd.f32 %v344, %v345
        %v347 = vrot.slane %v346, 2
        %v348 = vadd.f32 %v346, %v347
        %v349 = vrot.slane %v348, 1
        %v350 = vadd.f32 %v348, %v349
        %s351 = vtos %v350
        %v352 = vstv %s307
        %vm353 = vcmp.le.f32.partialorder %v133, %v352
        %vm354 = vcmp.le.f32.partialorder %v134, %v352
        %v355 = vsel %vm353, 1, 0
        %v356 = vsel %vm354, 1, 0
        %v357 = vcvt.s32.f32 %v355
        %v358 = vcvt.s32.f32 %v356
        %v359 = vadd.f32 %v357, %v358
        %360 = vadd.xlane.f32.xlu0 %v359
        %v361 = vpop.xlane.xlu0 %360
        %v362 = vrot.slane %v361, 4
        %v363 = vadd.f32 %v361, %v362
        %v364 = vrot.slane %v363, 2
        %v365 = vadd.f32 %v363, %v364
        %v366 = vrot.slane %v365, 1
        %v367 = vadd.f32 %v365, %v366
        %s368 = vtos %v367
        %v369 = vstv %s309
        %vm370 = vcmp.le.f32.partialorder %v133, %v369
        %vm371 = vcmp.le.f32.partialorder %v134, %v369
        %v372 = vsel %vm370, 1, 0
        %v373 = vsel %vm371, 1, 0
        %v374 = vcvt.s32.f32 %v372
        %v375 = vcvt.s32.f32 %v373
        %v376 = vadd.f32 %v374, %v375
        %377 = vadd.xlane.f32.xlu0 %v376
        %v378 = vpop.xlane.xlu0 %377
        %v379 = vrot.slane %v378, 4
        %v380 = vadd.f32 %v378, %v379
        %v381 = vrot.slane %v380, 2
        %v382 = vadd.f32 %v380, %v381
        %v383 = vrot.slane %v382, 1
        %v384 = vadd.f32 %v382, %v383
        %s385 = vtos %v384
        %v386 = vstv %s311
        %vm387 = vcmp.le.f32.partialorder %v133, %v386
        %vm388 = vcmp.le.f32.partialorder %v134, %v386
        %v389 = vsel %vm387, 1, 0
        %v390 = vsel %vm388, 1, 0
        %v391 = vcvt.s32.f32 %v389
        %v392 = vcvt.s32.f32 %v390
        %v393 = vadd.f32 %v391, %v392
        %394 = vadd.xlane.f32.xlu0 %v393
        %v395 = vpop.xlane.xlu0 %394
        %v396 = vrot.slane %v395, 4
        %v397 = vadd.f32 %v395, %v396
        %v398 = vrot.slane %v397, 2
        %v399 = vadd.f32 %v397, %v398
        %v400 = vrot.slane %v399, 1
        %v401 = vadd.f32 %v399, %v400
        %s402 = vtos %v401
        %v403 = vstv %s313
        %vm404 = vcmp.le.f32.partialorder %v133, %v403
        %vm405 = vcmp.le.f32.partialorder %v134, %v403
        %v406 = vsel %vm404, 1, 0
        %v407 = vsel %vm405, 1, 0
        %v408 = vcvt.s32.f32 %v406
        %v409 = vcvt.s32.f32 %v407
        %v410 = vadd.f32 %v408, %v409
        %411 = vadd.xlane.f32.xlu0 %v410
        %v412 = vpop.xlane.xlu0 %411
        %v413 = vrot.slane %v412, 4
        %v414 = vadd.f32 %v412, %v413
        %v415 = vrot.slane %v414, 2
        %v416 = vadd.f32 %v414, %v415
        %v417 = vrot.slane %v416, 1
        %v418 = vadd.f32 %v416, %v417
        %s419 = vtos %v418
        %v420 = vstv %s315
        %vm421 = vcmp.le.f32.partialorder %v133, %v420
        %vm422 = vcmp.le.f32.partialorder %v134, %v420
        %v423 = vsel %vm421, 1, 0
        %v424 = vsel %vm422, 1, 0
        %v425 = vcvt.s32.f32 %v423
        %v426 = vcvt.s32.f32 %v424
        %v427 = vadd.f32 %v425, %v426
        %428 = vadd.xlane.f32.xlu0 %v427
        %v429 = vpop.xlane.xlu0 %428
        %v430 = vrot.slane %v429, 4
        %v431 = vadd.f32 %v429, %v430
        %v432 = vrot.slane %v431, 2
        %v433 = vadd.f32 %v431, %v432
        %v434 = vrot.slane %v433, 1
        %v435 = vadd.f32 %v433, %v434
        %s436 = vtos %v435
        %v437 = vstv %s317
        %vm438 = vcmp.le.f32.partialorder %v133, %v437
        %vm439 = vcmp.le.f32.partialorder %v134, %v437
        %v440 = vsel %vm438, 1, 0
        %v441 = vsel %vm439, 1, 0
        %v442 = vcvt.s32.f32 %v440
        %v443 = vcvt.s32.f32 %v441
        %v444 = vadd.f32 %v442, %v443
        %445 = vadd.xlane.f32.xlu0 %v444
        %v446 = vpop.xlane.xlu0 %445
        %v447 = vrot.slane %v446, 4
        %v448 = vadd.f32 %v446, %v447
        %v449 = vrot.slane %v448, 2
        %v450 = vadd.f32 %v448, %v449
        %v451 = vrot.slane %v450, 1
        %v452 = vadd.f32 %v450, %v451
        %s453 = vtos %v452
        %p454 = scmp.lt.f32.partialorder %s334, 2046.0
        %s455 = smax.f32 %s298, %s303
        %s456 = scalar_select %p454, %s455, %s298
        %s457 = smin.f32 %s300, %s303
        %s458 = scalar_select %p454, %s300, %s457
        %p459 = scmp.lt.f32.partialorder %s351, 2046.0
        %s460 = smax.f32 %s456, %s305
        %s461 = scalar_select %p459, %s460, %s456
        %s462 = smin.f32 %s458, %s305
        %s463 = scalar_select %p459, %s458, %s462
        %p464 = scmp.lt.f32.partialorder %s368, 2046.0
        %s465 = smax.f32 %s461, %s307
        %s466 = scalar_select %p464, %s465, %s461
        %s467 = smin.f32 %s463, %s307
        %s468 = scalar_select %p464, %s463, %s467
        %p469 = scmp.lt.f32.partialorder %s385, 2046.0
        %s470 = smax.f32 %s466, %s309
        %s471 = scalar_select %p469, %s470, %s466
        %s472 = smin.f32 %s468, %s309
        %s473 = scalar_select %p469, %s468, %s472
        %p474 = scmp.lt.f32.partialorder %s402, 2046.0
        %s475 = smax.f32 %s471, %s311
        %s476 = scalar_select %p474, %s475, %s471
        %s477 = smin.f32 %s473, %s311
        %s478 = scalar_select %p474, %s473, %s477
        %p479 = scmp.lt.f32.partialorder %s419, 2046.0
        %s480 = smax.f32 %s476, %s313
        %s481 = scalar_select %p479, %s480, %s476
        %s482 = smin.f32 %s478, %s313
        %s483 = scalar_select %p479, %s478, %s482
        %p484 = scmp.lt.f32.partialorder %s436, 2046.0
        %s485 = smax.f32 %s481, %s315
        %s486 = scalar_select %p484, %s485, %s481
        %s487 = smin.f32 %s483, %s315
        %s488 = scalar_select %p484, %s483, %s487
        %p489 = scmp.lt.f32.partialorder %s453, 2046.0
        %s490 = smax.f32 %s486, %s317
        %s491 = scalar_select %p489, %s490, %s486
        %s492 = smin.f32 %s488, %s317
        %s493 = scalar_select %p489, %s488, %s492
        %s494 = ssub.f32 %s493, %s491
        %s495 = smul.f32 %s494, 0.11111111
        %s496 = sadd.f32 %s491, %s495
        %s497 = smul.f32 %s494, 0.22222222
        %s498 = sadd.f32 %s491, %s497
        %s499 = smul.f32 %s494, 0.33333334
        %s500 = sadd.f32 %s491, %s499
        %s501 = smul.f32 %s494, 0.44444445
        %s502 = sadd.f32 %s491, %s501
        %s503 = smul.f32 %s494, 0.5555556
        %s504 = sadd.f32 %s491, %s503
        %s505 = smul.f32 %s494, 0.6666667
        %s506 = sadd.f32 %s491, %s505
        %s507 = smul.f32 %s494, 0.7777778
        %s508 = sadd.f32 %s491, %s507
        %s509 = smul.f32 %s494, 0.8888889
        %s510 = sadd.f32 %s491, %s509
        %v511 = vstv %s496
        %vm512 = vcmp.le.f32.partialorder %v133, %v511
        %vm513 = vcmp.le.f32.partialorder %v134, %v511
        %v514 = vsel %vm512, 1, 0
        %v515 = vsel %vm513, 1, 0
        %v516 = vcvt.s32.f32 %v514
        %v517 = vcvt.s32.f32 %v515
        %v518 = vadd.f32 %v516, %v517
        %519 = vadd.xlane.f32.xlu0 %v518
        %v520 = vpop.xlane.xlu0 %519
        %v521 = vrot.slane %v520, 4
        %v522 = vadd.f32 %v520, %v521
        %v523 = vrot.slane %v522, 2
        %v524 = vadd.f32 %v522, %v523
        %v525 = vrot.slane %v524, 1
        %v526 = vadd.f32 %v524, %v525
        %s527 = vtos %v526
        %v528 = vstv %s498
        %vm529 = vcmp.le.f32.partialorder %v133, %v528
        %vm530 = vcmp.le.f32.partialorder %v134, %v528
        %v531 = vsel %vm529, 1, 0
        %v532 = vsel %vm530, 1, 0
        %v533 = vcvt.s32.f32 %v531
        %v534 = vcvt.s32.f32 %v532
        %v535 = vadd.f32 %v533, %v534
        %536 = vadd.xlane.f32.xlu0 %v535
        %v537 = vpop.xlane.xlu0 %536
        %v538 = vrot.slane %v537, 4
        %v539 = vadd.f32 %v537, %v538
        %v540 = vrot.slane %v539, 2
        %v541 = vadd.f32 %v539, %v540
        %v542 = vrot.slane %v541, 1
        %v543 = vadd.f32 %v541, %v542
        %s544 = vtos %v543
        %v545 = vstv %s500
        %vm546 = vcmp.le.f32.partialorder %v133, %v545
        %vm547 = vcmp.le.f32.partialorder %v134, %v545
        %v548 = vsel %vm546, 1, 0
        %v549 = vsel %vm547, 1, 0
        %v550 = vcvt.s32.f32 %v548
        %v551 = vcvt.s32.f32 %v549
        %v552 = vadd.f32 %v550, %v551
        %553 = vadd.xlane.f32.xlu0 %v552
        %v554 = vpop.xlane.xlu0 %553
        %v555 = vrot.slane %v554, 4
        %v556 = vadd.f32 %v554, %v555
        %v557 = vrot.slane %v556, 2
        %v558 = vadd.f32 %v556, %v557
        %v559 = vrot.slane %v558, 1
        %v560 = vadd.f32 %v558, %v559
        %s561 = vtos %v560
        %v562 = vstv %s502
        %vm563 = vcmp.le.f32.partialorder %v133, %v562
        %vm564 = vcmp.le.f32.partialorder %v134, %v562
        %v565 = vsel %vm563, 1, 0
        %v566 = vsel %vm564, 1, 0
        %v567 = vcvt.s32.f32 %v565
        %v568 = vcvt.s32.f32 %v566
        %v569 = vadd.f32 %v567, %v568
        %570 = vadd.xlane.f32.xlu0 %v569
        %v571 = vpop.xlane.xlu0 %570
        %v572 = vrot.slane %v571, 4
        %v573 = vadd.f32 %v571, %v572
        %v574 = vrot.slane %v573, 2
        %v575 = vadd.f32 %v573, %v574
        %v576 = vrot.slane %v575, 1
        %v577 = vadd.f32 %v575, %v576
        %s578 = vtos %v577
        %v579 = vstv %s504
        %vm580 = vcmp.le.f32.partialorder %v133, %v579
        %vm581 = vcmp.le.f32.partialorder %v134, %v579
        %v582 = vsel %vm580, 1, 0
        %v583 = vsel %vm581, 1, 0
        %v584 = vcvt.s32.f32 %v582
        %v585 = vcvt.s32.f32 %v583
        %v586 = vadd.f32 %v584, %v585
        %587 = vadd.xlane.f32.xlu0 %v586
        %v588 = vpop.xlane.xlu0 %587
        %v589 = vrot.slane %v588, 4
        %v590 = vadd.f32 %v588, %v589
        %v591 = vrot.slane %v590, 2
        %v592 = vadd.f32 %v590, %v591
        %v593 = vrot.slane %v592, 1
        %v594 = vadd.f32 %v592, %v593
        %s595 = vtos %v594
        %v596 = vstv %s506
        %vm597 = vcmp.le.f32.partialorder %v133, %v596
        %vm598 = vcmp.le.f32.partialorder %v134, %v596
        %v599 = vsel %vm597, 1, 0
        %v600 = vsel %vm598, 1, 0
        %v601 = vcvt.s32.f32 %v599
        %v602 = vcvt.s32.f32 %v600
        %v603 = vadd.f32 %v601, %v602
        %604 = vadd.xlane.f32.xlu0 %v603
        %v605 = vpop.xlane.xlu0 %604
        %v606 = vrot.slane %v605, 4
        %v607 = vadd.f32 %v605, %v606
        %v608 = vrot.slane %v607, 2
        %v609 = vadd.f32 %v607, %v608
        %v610 = vrot.slane %v609, 1
        %v611 = vadd.f32 %v609, %v610
        %s612 = vtos %v611
        %v613 = vstv %s508
        %vm614 = vcmp.le.f32.partialorder %v133, %v613
        %vm615 = vcmp.le.f32.partialorder %v134, %v613
        %v616 = vsel %vm614, 1, 0
        %v617 = vsel %vm615, 1, 0
        %v618 = vcvt.s32.f32 %v616
        %v619 = vcvt.s32.f32 %v617
        %v620 = vadd.f32 %v618, %v619
        %621 = vadd.xlane.f32.xlu0 %v620
        %v622 = vpop.xlane.xlu0 %621
        %v623 = vrot.slane %v622, 4
        %v624 = vadd.f32 %v622, %v623
        %v625 = vrot.slane %v624, 2
        %v626 = vadd.f32 %v624, %v625
        %v627 = vrot.slane %v626, 1
        %v628 = vadd.f32 %v626, %v627
        %s629 = vtos %v628
        %v630 = vstv %s510
        %vm631 = vcmp.le.f32.partialorder %v133, %v630
        %vm632 = vcmp.le.f32.partialorder %v134, %v630
        %v633 = vsel %vm631, 1, 0
        %v634 = vsel %vm632, 1, 0
        %v635 = vcvt.s32.f32 %v633
        %v636 = vcvt.s32.f32 %v634
        %v637 = vadd.f32 %v635, %v636
        %638 = vadd.xlane.f32.xlu0 %v637
        %v639 = vpop.xlane.xlu0 %638
        %v640 = vrot.slane %v639, 4
        %v641 = vadd.f32 %v639, %v640
        %v642 = vrot.slane %v641, 2
        %v643 = vadd.f32 %v641, %v642
        %v644 = vrot.slane %v643, 1
        %v645 = vadd.f32 %v643, %v644
        %s646 = vtos %v645
        %p647 = scmp.lt.f32.partialorder %s527, 2046.0
        %s648 = smax.f32 %s491, %s496
        %s649 = scalar_select %p647, %s648, %s491
        %s650 = smin.f32 %s493, %s496
        %s651 = scalar_select %p647, %s493, %s650
        %p652 = scmp.lt.f32.partialorder %s544, 2046.0
        %s653 = smax.f32 %s649, %s498
        %s654 = scalar_select %p652, %s653, %s649
        %s655 = smin.f32 %s651, %s498
        %s656 = scalar_select %p652, %s651, %s655
        %p657 = scmp.lt.f32.partialorder %s561, 2046.0
        %s658 = smax.f32 %s654, %s500
        %s659 = scalar_select %p657, %s658, %s654
        %s660 = smin.f32 %s656, %s500
        %s661 = scalar_select %p657, %s656, %s660
        %p662 = scmp.lt.f32.partialorder %s578, 2046.0
        %s663 = smax.f32 %s659, %s502
        %s664 = scalar_select %p662, %s663, %s659
        %s665 = smin.f32 %s661, %s502
        %s666 = scalar_select %p662, %s661, %s665
        %p667 = scmp.lt.f32.partialorder %s595, 2046.0
        %s668 = smax.f32 %s664, %s504
        %s669 = scalar_select %p667, %s668, %s664
        %s670 = smin.f32 %s666, %s504
        %s671 = scalar_select %p667, %s666, %s670
        %p672 = scmp.lt.f32.partialorder %s612, 2046.0
        %s673 = smax.f32 %s669, %s506
        %s674 = scalar_select %p672, %s673, %s669
        %s675 = smin.f32 %s671, %s506
        %s676 = scalar_select %p672, %s671, %s675
        %p677 = scmp.lt.f32.partialorder %s629, 2046.0
        %s678 = smax.f32 %s674, %s508
        %s679 = scalar_select %p677, %s678, %s674
        %s680 = smin.f32 %s676, %s508
        %s681 = scalar_select %p677, %s676, %s680
        %p682 = scmp.lt.f32.partialorder %s646, 2046.0
        %s683 = smax.f32 %s679, %s510
        %s684 = scalar_select %p682, %s683, %s679
        %s685 = smin.f32 %s681, %s510
        %s686 = scalar_select %p682, %s681, %s685
        %s687 = ssub.f32 %s686, %s684
        %s688 = smul.f32 %s687, 0.11111111
        %s689 = sadd.f32 %s684, %s688
        %s690 = smul.f32 %s687, 0.22222222
        %s691 = sadd.f32 %s684, %s690
        %s692 = smul.f32 %s687, 0.33333334
        %s693 = sadd.f32 %s684, %s692
        %s694 = smul.f32 %s687, 0.44444445
        %s695 = sadd.f32 %s684, %s694
        %s696 = smul.f32 %s687, 0.5555556
        %s697 = sadd.f32 %s684, %s696
        %s698 = smul.f32 %s687, 0.6666667
        %s699 = sadd.f32 %s684, %s698
        %s700 = smul.f32 %s687, 0.7777778
        %s701 = sadd.f32 %s684, %s700
        %s702 = smul.f32 %s687, 0.8888889
        %s703 = sadd.f32 %s684, %s702
        %v704 = vstv %s689
        %vm705 = vcmp.le.f32.partialorder %v133, %v704
        %vm706 = vcmp.le.f32.partialorder %v134, %v704
        %v707 = vsel %vm705, 1, 0
        %v708 = vsel %vm706, 1, 0
        %v709 = vcvt.s32.f32 %v707
        %v710 = vcvt.s32.f32 %v708
        %v711 = vadd.f32 %v709, %v710
        %712 = vadd.xlane.f32.xlu0 %v711
        %v713 = vpop.xlane.xlu0 %712
        %v714 = vrot.slane %v713, 4
        %v715 = vadd.f32 %v713, %v714
        %v716 = vrot.slane %v715, 2
        %v717 = vadd.f32 %v715, %v716
        %v718 = vrot.slane %v717, 1
        %v719 = vadd.f32 %v717, %v718
        %s720 = vtos %v719
        %v721 = vstv %s691
        %vm722 = vcmp.le.f32.partialorder %v133, %v721
        %vm723 = vcmp.le.f32.partialorder %v134, %v721
        %v724 = vsel %vm722, 1, 0
        %v725 = vsel %vm723, 1, 0
        %v726 = vcvt.s32.f32 %v724
        %v727 = vcvt.s32.f32 %v725
        %v728 = vadd.f32 %v726, %v727
        %729 = vadd.xlane.f32.xlu0 %v728
        %v730 = vpop.xlane.xlu0 %729
        %v731 = vrot.slane %v730, 4
        %v732 = vadd.f32 %v730, %v731
        %v733 = vrot.slane %v732, 2
        %v734 = vadd.f32 %v732, %v733
        %v735 = vrot.slane %v734, 1
        %v736 = vadd.f32 %v734, %v735
        %s737 = vtos %v736
        %v738 = vstv %s693
        %vm739 = vcmp.le.f32.partialorder %v133, %v738
        %vm740 = vcmp.le.f32.partialorder %v134, %v738
        %v741 = vsel %vm739, 1, 0
        %v742 = vsel %vm740, 1, 0
        %v743 = vcvt.s32.f32 %v741
        %v744 = vcvt.s32.f32 %v742
        %v745 = vadd.f32 %v743, %v744
        %746 = vadd.xlane.f32.xlu0 %v745
        %v747 = vpop.xlane.xlu0 %746
        %v748 = vrot.slane %v747, 4
        %v749 = vadd.f32 %v747, %v748
        %v750 = vrot.slane %v749, 2
        %v751 = vadd.f32 %v749, %v750
        %v752 = vrot.slane %v751, 1
        %v753 = vadd.f32 %v751, %v752
        %s754 = vtos %v753
        %v755 = vstv %s695
        %vm756 = vcmp.le.f32.partialorder %v133, %v755
        %vm757 = vcmp.le.f32.partialorder %v134, %v755
        %v758 = vsel %vm756, 1, 0
        %v759 = vsel %vm757, 1, 0
        %v760 = vcvt.s32.f32 %v758
        %v761 = vcvt.s32.f32 %v759
        %v762 = vadd.f32 %v760, %v761
        %763 = vadd.xlane.f32.xlu0 %v762
        %v764 = vpop.xlane.xlu0 %763
        %v765 = vrot.slane %v764, 4
        %v766 = vadd.f32 %v764, %v765
        %v767 = vrot.slane %v766, 2
        %v768 = vadd.f32 %v766, %v767
        %v769 = vrot.slane %v768, 1
        %v770 = vadd.f32 %v768, %v769
        %s771 = vtos %v770
        %v772 = vstv %s697
        %vm773 = vcmp.le.f32.partialorder %v133, %v772
        %vm774 = vcmp.le.f32.partialorder %v134, %v772
        %v775 = vsel %vm773, 1, 0
        %v776 = vsel %vm774, 1, 0
        %v777 = vcvt.s32.f32 %v775
        %v778 = vcvt.s32.f32 %v776
        %v779 = vadd.f32 %v777, %v778
        %780 = vadd.xlane.f32.xlu0 %v779
        %v781 = vpop.xlane.xlu0 %780
        %v782 = vrot.slane %v781, 4
        %v783 = vadd.f32 %v781, %v782
        %v784 = vrot.slane %v783, 2
        %v785 = vadd.f32 %v783, %v784
        %v786 = vrot.slane %v785, 1
        %v787 = vadd.f32 %v785, %v786
        %s788 = vtos %v787
        %v789 = vstv %s699
        %vm790 = vcmp.le.f32.partialorder %v133, %v789
        %vm791 = vcmp.le.f32.partialorder %v134, %v789
        %v792 = vsel %vm790, 1, 0
        %v793 = vsel %vm791, 1, 0
        %v794 = vcvt.s32.f32 %v792
        %v795 = vcvt.s32.f32 %v793
        %v796 = vadd.f32 %v794, %v795
        %797 = vadd.xlane.f32.xlu0 %v796
        %v798 = vpop.xlane.xlu0 %797
        %v799 = vrot.slane %v798, 4
        %v800 = vadd.f32 %v798, %v799
        %v801 = vrot.slane %v800, 2
        %v802 = vadd.f32 %v800, %v801
        %v803 = vrot.slane %v802, 1
        %v804 = vadd.f32 %v802, %v803
        %s805 = vtos %v804
        %v806 = vstv %s701
        %vm807 = vcmp.le.f32.partialorder %v133, %v806
        %vm808 = vcmp.le.f32.partialorder %v134, %v806
        %v809 = vsel %vm807, 1, 0
        %v810 = vsel %vm808, 1, 0
        %v811 = vcvt.s32.f32 %v809
        %v812 = vcvt.s32.f32 %v810
        %v813 = vadd.f32 %v811, %v812
        %814 = vadd.xlane.f32.xlu0 %v813
        %v815 = vpop.xlane.xlu0 %814
        %v816 = vrot.slane %v815, 4
        %v817 = vadd.f32 %v815, %v816
        %v818 = vrot.slane %v817, 2
        %v819 = vadd.f32 %v817, %v818
        %v820 = vrot.slane %v819, 1
        %v821 = vadd.f32 %v819, %v820
        %s822 = vtos %v821
        %v823 = vstv %s703
        %vm824 = vcmp.le.f32.partialorder %v133, %v823
        %vm825 = vcmp.le.f32.partialorder %v134, %v823
        %v826 = vsel %vm824, 1, 0
        %v827 = vsel %vm825, 1, 0
        %v828 = vcvt.s32.f32 %v826
        %v829 = vcvt.s32.f32 %v827
        %v830 = vadd.f32 %v828, %v829
        %831 = vadd.xlane.f32.xlu0 %v830
        %v832 = vpop.xlane.xlu0 %831
        %v833 = vrot.slane %v832, 4
        %v834 = vadd.f32 %v832, %v833
        %v835 = vrot.slane %v834, 2
        %v836 = vadd.f32 %v834, %v835
        %v837 = vrot.slane %v836, 1
        %v838 = vadd.f32 %v836, %v837
        %s839 = vtos %v838
        %p840 = scmp.lt.f32.partialorder %s720, 2046.0
        %s841 = smax.f32 %s684, %s689
        %s842 = scalar_select %p840, %s841, %s684
        %s843 = smin.f32 %s686, %s689
        %s844 = scalar_select %p840, %s686, %s843
        %p845 = scmp.lt.f32.partialorder %s737, 2046.0
        %s846 = smax.f32 %s842, %s691
        %s847 = scalar_select %p845, %s846, %s842
        %s848 = smin.f32 %s844, %s691
        %s849 = scalar_select %p845, %s844, %s848
        %p850 = scmp.lt.f32.partialorder %s754, 2046.0
        %s851 = smax.f32 %s847, %s693
        %s852 = scalar_select %p850, %s851, %s847
        %s853 = smin.f32 %s849, %s693
        %s854 = scalar_select %p850, %s849, %s853
        %p855 = scmp.lt.f32.partialorder %s771, 2046.0
        %s856 = smax.f32 %s852, %s695
        %s857 = scalar_select %p855, %s856, %s852
        %s858 = smin.f32 %s854, %s695
        %s859 = scalar_select %p855, %s854, %s858
        %p860 = scmp.lt.f32.partialorder %s788, 2046.0
        %s861 = smax.f32 %s857, %s697
        %s862 = scalar_select %p860, %s861, %s857
        %s863 = smin.f32 %s859, %s697
        %s864 = scalar_select %p860, %s859, %s863
        %p865 = scmp.lt.f32.partialorder %s805, 2046.0
        %s866 = smax.f32 %s862, %s699
        %s867 = scalar_select %p865, %s866, %s862
        %s868 = smin.f32 %s864, %s699
        %s869 = scalar_select %p865, %s864, %s868
        %p870 = scmp.lt.f32.partialorder %s822, 2046.0
        %s871 = smax.f32 %s867, %s701
        %s872 = scalar_select %p870, %s871, %s867
        %s873 = smin.f32 %s869, %s701
        %s874 = scalar_select %p870, %s869, %s873
        %p875 = scmp.lt.f32.partialorder %s839, 2046.0
        %s876 = smax.f32 %s872, %s703
        %s877 = scalar_select %p875, %s876, %s872
        %s878 = smin.f32 %s874, %s703
        %s879 = scalar_select %p875, %s874, %s878
        %s880 = ssub.f32 %s879, %s877
        %s881 = smul.f32 %s880, 0.11111111
        %s882 = sadd.f32 %s877, %s881
        %s883 = smul.f32 %s880, 0.22222222
        %s884 = sadd.f32 %s877, %s883
        %s885 = smul.f32 %s880, 0.33333334
        %s886 = sadd.f32 %s877, %s885
        %s887 = smul.f32 %s880, 0.44444445
        %s888 = sadd.f32 %s877, %s887
        %s889 = smul.f32 %s880, 0.5555556
        %s890 = sadd.f32 %s877, %s889
        %s891 = smul.f32 %s880, 0.6666667
        %s892 = sadd.f32 %s877, %s891
        %s893 = smul.f32 %s880, 0.7777778
        %s894 = sadd.f32 %s877, %s893
        %s895 = smul.f32 %s880, 0.8888889
        %s896 = sadd.f32 %s877, %s895
        %v897 = vstv %s882
        %vm898 = vcmp.le.f32.partialorder %v133, %v897
        %vm899 = vcmp.le.f32.partialorder %v134, %v897
        %v900 = vsel %vm898, 1, 0
        %v901 = vsel %vm899, 1, 0
        %v902 = vcvt.s32.f32 %v900
        %v903 = vcvt.s32.f32 %v901
        %v904 = vadd.f32 %v902, %v903
        %905 = vadd.xlane.f32.xlu0 %v904
        %v906 = vpop.xlane.xlu0 %905
        %v907 = vrot.slane %v906, 4
        %v908 = vadd.f32 %v906, %v907
        %v909 = vrot.slane %v908, 2
        %v910 = vadd.f32 %v908, %v909
        %v911 = vrot.slane %v910, 1
        %v912 = vadd.f32 %v910, %v911
        %s913 = vtos %v912
        %v914 = vstv %s884
        %vm915 = vcmp.le.f32.partialorder %v133, %v914
        %vm916 = vcmp.le.f32.partialorder %v134, %v914
        %v917 = vsel %vm915, 1, 0
        %v918 = vsel %vm916, 1, 0
        %v919 = vcvt.s32.f32 %v917
        %v920 = vcvt.s32.f32 %v918
        %v921 = vadd.f32 %v919, %v920
        %922 = vadd.xlane.f32.xlu0 %v921
        %v923 = vpop.xlane.xlu0 %922
        %v924 = vrot.slane %v923, 4
        %v925 = vadd.f32 %v923, %v924
        %v926 = vrot.slane %v925, 2
        %v927 = vadd.f32 %v925, %v926
        %v928 = vrot.slane %v927, 1
        %v929 = vadd.f32 %v927, %v928
        %s930 = vtos %v929
        %v931 = vstv %s886
        %vm932 = vcmp.le.f32.partialorder %v133, %v931
        %vm933 = vcmp.le.f32.partialorder %v134, %v931
        %v934 = vsel %vm932, 1, 0
        %v935 = vsel %vm933, 1, 0
        %v936 = vcvt.s32.f32 %v934
        %v937 = vcvt.s32.f32 %v935
        %v938 = vadd.f32 %v936, %v937
        %939 = vadd.xlane.f32.xlu0 %v938
        %v940 = vpop.xlane.xlu0 %939
        %v941 = vrot.slane %v940, 4
        %v942 = vadd.f32 %v940, %v941
        %v943 = vrot.slane %v942, 2
        %v944 = vadd.f32 %v942, %v943
        %v945 = vrot.slane %v944, 1
        %v946 = vadd.f32 %v944, %v945
        %s947 = vtos %v946
        %v948 = vstv %s888
        %vm949 = vcmp.le.f32.partialorder %v133, %v948
        %vm950 = vcmp.le.f32.partialorder %v134, %v948
        %v951 = vsel %vm949, 1, 0
        %v952 = vsel %vm950, 1, 0
        %v953 = vcvt.s32.f32 %v951
        %v954 = vcvt.s32.f32 %v952
        %v955 = vadd.f32 %v953, %v954
        %956 = vadd.xlane.f32.xlu0 %v955
        %v957 = vpop.xlane.xlu0 %956
        %v958 = vrot.slane %v957, 4
        %v959 = vadd.f32 %v957, %v958
        %v960 = vrot.slane %v959, 2
        %v961 = vadd.f32 %v959, %v960
        %v962 = vrot.slane %v961, 1
        %v963 = vadd.f32 %v961, %v962
        %s964 = vtos %v963
        %v965 = vstv %s890
        %vm966 = vcmp.le.f32.partialorder %v133, %v965
        %vm967 = vcmp.le.f32.partialorder %v134, %v965
        %v968 = vsel %vm966, 1, 0
        %v969 = vsel %vm967, 1, 0
        %v970 = vcvt.s32.f32 %v968
        %v971 = vcvt.s32.f32 %v969
        %v972 = vadd.f32 %v970, %v971
        %973 = vadd.xlane.f32.xlu0 %v972
        %v974 = vpop.xlane.xlu0 %973
        %v975 = vrot.slane %v974, 4
        %v976 = vadd.f32 %v974, %v975
        %v977 = vrot.slane %v976, 2
        %v978 = vadd.f32 %v976, %v977
        %v979 = vrot.slane %v978, 1
        %v980 = vadd.f32 %v978, %v979
        %s981 = vtos %v980
        %v982 = vstv %s892
        %vm983 = vcmp.le.f32.partialorder %v133, %v982
        %vm984 = vcmp.le.f32.partialorder %v134, %v982
        %v985 = vsel %vm983, 1, 0
        %v986 = vsel %vm984, 1, 0
        %v987 = vcvt.s32.f32 %v985
        %v988 = vcvt.s32.f32 %v986
        %v989 = vadd.f32 %v987, %v988
        %990 = vadd.xlane.f32.xlu0 %v989
        %v991 = vpop.xlane.xlu0 %990
        %v992 = vrot.slane %v991, 4
        %v993 = vadd.f32 %v991, %v992
        %v994 = vrot.slane %v993, 2
        %v995 = vadd.f32 %v993, %v994
        %v996 = vrot.slane %v995, 1
        %v997 = vadd.f32 %v995, %v996
        %s998 = vtos %v997
        %v999 = vstv %s894
        %vm1000 = vcmp.le.f32.partialorder %v133, %v999
        %vm1001 = vcmp.le.f32.partialorder %v134, %v999
        %v1002 = vsel %vm1000, 1, 0
        %v1003 = vsel %vm1001, 1, 0
        %v1004 = vcvt.s32.f32 %v1002
        %v1005 = vcvt.s32.f32 %v1003
        %v1006 = vadd.f32 %v1004, %v1005
        %1007 = vadd.xlane.f32.xlu0 %v1006
        %v1008 = vpop.xlane.xlu0 %1007
        %v1009 = vrot.slane %v1008, 4
        %v1010 = vadd.f32 %v1008, %v1009
        %v1011 = vrot.slane %v1010, 2
        %v1012 = vadd.f32 %v1010, %v1011
        %v1013 = vrot.slane %v1012, 1
        %v1014 = vadd.f32 %v1012, %v1013
        %s1015 = vtos %v1014
        %v1016 = vstv %s896
        %vm1017 = vcmp.le.f32.partialorder %v133, %v1016
        %vm1018 = vcmp.le.f32.partialorder %v134, %v1016
        %v1019 = vsel %vm1017, 1, 0
        %v1020 = vsel %vm1018, 1, 0
        %v1021 = vcvt.s32.f32 %v1019
        %v1022 = vcvt.s32.f32 %v1020
        %v1023 = vadd.f32 %v1021, %v1022
        %1024 = vadd.xlane.f32.xlu0 %v1023
        %v1025 = vpop.xlane.xlu0 %1024
        %v1026 = vrot.slane %v1025, 4
        %v1027 = vadd.f32 %v1025, %v1026
        %v1028 = vrot.slane %v1027, 2
        %v1029 = vadd.f32 %v1027, %v1028
        %v1030 = vrot.slane %v1029, 1
        %v1031 = vadd.f32 %v1029, %v1030
        %s1032 = vtos %v1031
        %p1033 = scmp.lt.f32.partialorder %s913, 2046.0
        %s1034 = smax.f32 %s877, %s882
        %s1035 = scalar_select %p1033, %s1034, %s877
        %s1036 = smin.f32 %s879, %s882
        %s1037 = scalar_select %p1033, %s879, %s1036
        %p1038 = scmp.lt.f32.partialorder %s930, 2046.0
        %s1039 = smax.f32 %s1035, %s884
        %s1040 = scalar_select %p1038, %s1039, %s1035
        %s1041 = smin.f32 %s1037, %s884
        %s1042 = scalar_select %p1038, %s1037, %s1041
        %p1043 = scmp.lt.f32.partialorder %s947, 2046.0
        %s1044 = smax.f32 %s1040, %s886
        %s1045 = scalar_select %p1043, %s1044, %s1040
        %s1046 = smin.f32 %s1042, %s886
        %s1047 = scalar_select %p1043, %s1042, %s1046
        %p1048 = scmp.lt.f32.partialorder %s964, 2046.0
        %s1049 = smax.f32 %s1045, %s888
        %s1050 = scalar_select %p1048, %s1049, %s1045
        %s1051 = smin.f32 %s1047, %s888
        %s1052 = scalar_select %p1048, %s1047, %s1051
        %p1053 = scmp.lt.f32.partialorder %s981, 2046.0
        %s1054 = smax.f32 %s1050, %s890
        %s1055 = scalar_select %p1053, %s1054, %s1050
        %s1056 = smin.f32 %s1052, %s890
        %s1057 = scalar_select %p1053, %s1052, %s1056
        %p1058 = scmp.lt.f32.partialorder %s998, 2046.0
        %s1059 = smax.f32 %s1055, %s892
        %s1060 = scalar_select %p1058, %s1059, %s1055
        %s1061 = smin.f32 %s1057, %s892
        %s1062 = scalar_select %p1058, %s1057, %s1061
        %p1063 = scmp.lt.f32.partialorder %s1015, 2046.0
        %s1064 = smax.f32 %s1060, %s894
        %s1065 = scalar_select %p1063, %s1064, %s1060
        %s1066 = smin.f32 %s1062, %s894
        %s1067 = scalar_select %p1063, %s1062, %s1066
        %p1068 = scmp.lt.f32.partialorder %s1032, 2046.0
        %s1069 = smax.f32 %s1065, %s896
        %s1070 = scalar_select %p1068, %s1069, %s1065
        %s1071 = smin.f32 %s1067, %s896
        %s1072 = scalar_select %p1068, %s1067, %s1071
        %s1073 = ssub.f32 %s1072, %s1070
        %s1074 = smul.f32 %s1073, 0.11111111
        %s1075 = sadd.f32 %s1070, %s1074
        %s1076 = smul.f32 %s1073, 0.22222222
        %s1077 = sadd.f32 %s1070, %s1076
        %s1078 = smul.f32 %s1073, 0.33333334
        %s1079 = sadd.f32 %s1070, %s1078
        %s1080 = smul.f32 %s1073, 0.44444445
        %s1081 = sadd.f32 %s1070, %s1080
        %s1082 = smul.f32 %s1073, 0.5555556
        %s1083 = sadd.f32 %s1070, %s1082
        %s1084 = smul.f32 %s1073, 0.6666667
        %s1085 = sadd.f32 %s1070, %s1084
        %s1086 = smul.f32 %s1073, 0.7777778
        %s1087 = sadd.f32 %s1070, %s1086
        %s1088 = smul.f32 %s1073, 0.8888889
        %s1089 = sadd.f32 %s1070, %s1088
        %v1090 = vstv %s1075
        %vm1091 = vcmp.le.f32.partialorder %v133, %v1090
        %vm1092 = vcmp.le.f32.partialorder %v134, %v1090
        %v1093 = vsel %vm1091, 1, 0
        %v1094 = vsel %vm1092, 1, 0
        %v1095 = vcvt.s32.f32 %v1093
        %v1096 = vcvt.s32.f32 %v1094
        %v1097 = vadd.f32 %v1095, %v1096
        %1098 = vadd.xlane.f32.xlu0 %v1097
        %v1099 = vpop.xlane.xlu0 %1098
        %v1100 = vrot.slane %v1099, 4
        %v1101 = vadd.f32 %v1099, %v1100
        %v1102 = vrot.slane %v1101, 2
        %v1103 = vadd.f32 %v1101, %v1102
        %v1104 = vrot.slane %v1103, 1
        %v1105 = vadd.f32 %v1103, %v1104
        %s1106 = vtos %v1105
        %v1107 = vstv %s1077
        %vm1108 = vcmp.le.f32.partialorder %v133, %v1107
        %vm1109 = vcmp.le.f32.partialorder %v134, %v1107
        %v1110 = vsel %vm1108, 1, 0
        %v1111 = vsel %vm1109, 1, 0
        %v1112 = vcvt.s32.f32 %v1110
        %v1113 = vcvt.s32.f32 %v1111
        %v1114 = vadd.f32 %v1112, %v1113
        %1115 = vadd.xlane.f32.xlu0 %v1114
        %v1116 = vpop.xlane.xlu0 %1115
        %v1117 = vrot.slane %v1116, 4
        %v1118 = vadd.f32 %v1116, %v1117
        %v1119 = vrot.slane %v1118, 2
        %v1120 = vadd.f32 %v1118, %v1119
        %v1121 = vrot.slane %v1120, 1
        %v1122 = vadd.f32 %v1120, %v1121
        %s1123 = vtos %v1122
        %v1124 = vstv %s1079
        %vm1125 = vcmp.le.f32.partialorder %v133, %v1124
        %vm1126 = vcmp.le.f32.partialorder %v134, %v1124
        %v1127 = vsel %vm1125, 1, 0
        %v1128 = vsel %vm1126, 1, 0
        %v1129 = vcvt.s32.f32 %v1127
        %v1130 = vcvt.s32.f32 %v1128
        %v1131 = vadd.f32 %v1129, %v1130
        %1132 = vadd.xlane.f32.xlu0 %v1131
        %v1133 = vpop.xlane.xlu0 %1132
        %v1134 = vrot.slane %v1133, 4
        %v1135 = vadd.f32 %v1133, %v1134
        %v1136 = vrot.slane %v1135, 2
        %v1137 = vadd.f32 %v1135, %v1136
        %v1138 = vrot.slane %v1137, 1
        %v1139 = vadd.f32 %v1137, %v1138
        %s1140 = vtos %v1139
        %v1141 = vstv %s1081
        %vm1142 = vcmp.le.f32.partialorder %v133, %v1141
        %vm1143 = vcmp.le.f32.partialorder %v134, %v1141
        %v1144 = vsel %vm1142, 1, 0
        %v1145 = vsel %vm1143, 1, 0
        %v1146 = vcvt.s32.f32 %v1144
        %v1147 = vcvt.s32.f32 %v1145
        %v1148 = vadd.f32 %v1146, %v1147
        %1149 = vadd.xlane.f32.xlu0 %v1148
        %v1150 = vpop.xlane.xlu0 %1149
        %v1151 = vrot.slane %v1150, 4
        %v1152 = vadd.f32 %v1150, %v1151
        %v1153 = vrot.slane %v1152, 2
        %v1154 = vadd.f32 %v1152, %v1153
        %v1155 = vrot.slane %v1154, 1
        %v1156 = vadd.f32 %v1154, %v1155
        %s1157 = vtos %v1156
        %v1158 = vstv %s1083
        %vm1159 = vcmp.le.f32.partialorder %v133, %v1158
        %vm1160 = vcmp.le.f32.partialorder %v134, %v1158
        %v1161 = vsel %vm1159, 1, 0
        %v1162 = vsel %vm1160, 1, 0
        %v1163 = vcvt.s32.f32 %v1161
        %v1164 = vcvt.s32.f32 %v1162
        %v1165 = vadd.f32 %v1163, %v1164
        %1166 = vadd.xlane.f32.xlu0 %v1165
        %v1167 = vpop.xlane.xlu0 %1166
        %v1168 = vrot.slane %v1167, 4
        %v1169 = vadd.f32 %v1167, %v1168
        %v1170 = vrot.slane %v1169, 2
        %v1171 = vadd.f32 %v1169, %v1170
        %v1172 = vrot.slane %v1171, 1
        %v1173 = vadd.f32 %v1171, %v1172
        %s1174 = vtos %v1173
        %v1175 = vstv %s1085
        %vm1176 = vcmp.le.f32.partialorder %v133, %v1175
        %vm1177 = vcmp.le.f32.partialorder %v134, %v1175
        %v1178 = vsel %vm1176, 1, 0
        %v1179 = vsel %vm1177, 1, 0
        %v1180 = vcvt.s32.f32 %v1178
        %v1181 = vcvt.s32.f32 %v1179
        %v1182 = vadd.f32 %v1180, %v1181
        %1183 = vadd.xlane.f32.xlu0 %v1182
        %v1184 = vpop.xlane.xlu0 %1183
        %v1185 = vrot.slane %v1184, 4
        %v1186 = vadd.f32 %v1184, %v1185
        %v1187 = vrot.slane %v1186, 2
        %v1188 = vadd.f32 %v1186, %v1187
        %v1189 = vrot.slane %v1188, 1
        %v1190 = vadd.f32 %v1188, %v1189
        %s1191 = vtos %v1190
        %v1192 = vstv %s1087
        %vm1193 = vcmp.le.f32.partialorder %v133, %v1192
        %vm1194 = vcmp.le.f32.partialorder %v134, %v1192
        %v1195 = vsel %vm1193, 1, 0
        %v1196 = vsel %vm1194, 1, 0
        %v1197 = vcvt.s32.f32 %v1195
        %v1198 = vcvt.s32.f32 %v1196
        %v1199 = vadd.f32 %v1197, %v1198
        %1200 = vadd.xlane.f32.xlu0 %v1199
        %v1201 = vpop.xlane.xlu0 %1200
        %v1202 = vrot.slane %v1201, 4
        %v1203 = vadd.f32 %v1201, %v1202
        %v1204 = vrot.slane %v1203, 2
        %v1205 = vadd.f32 %v1203, %v1204
        %v1206 = vrot.slane %v1205, 1
        %v1207 = vadd.f32 %v1205, %v1206
        %s1208 = vtos %v1207
        %v1209 = vstv %s1089
        %vm1210 = vcmp.le.f32.partialorder %v133, %v1209
        %vm1211 = vcmp.le.f32.partialorder %v134, %v1209
        %v1212 = vsel %vm1210, 1, 0
        %v1213 = vsel %vm1211, 1, 0
        %v1214 = vcvt.s32.f32 %v1212
        %v1215 = vcvt.s32.f32 %v1213
        %v1216 = vadd.f32 %v1214, %v1215
        %1217 = vadd.xlane.f32.xlu0 %v1216
        %v1218 = vpop.xlane.xlu0 %1217
        %v1219 = vrot.slane %v1218, 4
        %v1220 = vadd.f32 %v1218, %v1219
        %v1221 = vrot.slane %v1220, 2
        %v1222 = vadd.f32 %v1220, %v1221
        %v1223 = vrot.slane %v1222, 1
        %v1224 = vadd.f32 %v1222, %v1223
        %s1225 = vtos %v1224
        %p1226 = scmp.lt.f32.partialorder %s1106, 2046.0
        %s1227 = smax.f32 %s1070, %s1075
        %s1228 = scalar_select %p1226, %s1227, %s1070
        %s1229 = smin.f32 %s1072, %s1075
        %s1230 = scalar_select %p1226, %s1072, %s1229
        %p1231 = scmp.lt.f32.partialorder %s1123, 2046.0
        %s1232 = smax.f32 %s1228, %s1077
        %s1233 = scalar_select %p1231, %s1232, %s1228
        %s1234 = smin.f32 %s1230, %s1077
        %s1235 = scalar_select %p1231, %s1230, %s1234
        %p1236 = scmp.lt.f32.partialorder %s1140, 2046.0
        %s1237 = smax.f32 %s1233, %s1079
        %s1238 = scalar_select %p1236, %s1237, %s1233
        %s1239 = smin.f32 %s1235, %s1079
        %s1240 = scalar_select %p1236, %s1235, %s1239
        %p1241 = scmp.lt.f32.partialorder %s1157, 2046.0
        %s1242 = smax.f32 %s1238, %s1081
        %s1243 = scalar_select %p1241, %s1242, %s1238
        %s1244 = smin.f32 %s1240, %s1081
        %s1245 = scalar_select %p1241, %s1240, %s1244
        %p1246 = scmp.lt.f32.partialorder %s1174, 2046.0
        %s1247 = smax.f32 %s1243, %s1083
        %s1248 = scalar_select %p1246, %s1247, %s1243
        %s1249 = smin.f32 %s1245, %s1083
        %s1250 = scalar_select %p1246, %s1245, %s1249
        %p1251 = scmp.lt.f32.partialorder %s1191, 2046.0
        %s1252 = smax.f32 %s1248, %s1085
        %s1253 = scalar_select %p1251, %s1252, %s1248
        %s1254 = smin.f32 %s1250, %s1085
        %s1255 = scalar_select %p1251, %s1250, %s1254
        %p1256 = scmp.lt.f32.partialorder %s1208, 2046.0
        %s1257 = smax.f32 %s1253, %s1087
        %s1258 = scalar_select %p1256, %s1257, %s1253
        %s1259 = smin.f32 %s1255, %s1087
        %s1260 = scalar_select %p1256, %s1255, %s1259
        %p1261 = scmp.lt.f32.partialorder %s1225, 2046.0
        %s1262 = smax.f32 %s1258, %s1089
        %s1263 = scalar_select %p1261, %s1262, %s1258
        %s1264 = smin.f32 %s1260, %s1089
        %s1265 = scalar_select %p1261, %s1260, %s1264
        %s1266 = ssub.f32 %s1265, %s1263
        %s1267 = smul.f32 %s1266, 0.11111111
        %s1268 = sadd.f32 %s1263, %s1267
        %s1269 = smul.f32 %s1266, 0.22222222
        %s1270 = sadd.f32 %s1263, %s1269
        %s1271 = smul.f32 %s1266, 0.33333334
        %s1272 = sadd.f32 %s1263, %s1271
        %s1273 = smul.f32 %s1266, 0.44444445
        %s1274 = sadd.f32 %s1263, %s1273
        %s1275 = smul.f32 %s1266, 0.5555556
        %s1276 = sadd.f32 %s1263, %s1275
        %s1277 = smul.f32 %s1266, 0.6666667
        %s1278 = sadd.f32 %s1263, %s1277
        %s1279 = smul.f32 %s1266, 0.7777778
        %s1280 = sadd.f32 %s1263, %s1279
        %s1281 = smul.f32 %s1266, 0.8888889
        %s1282 = sadd.f32 %s1263, %s1281
        %v1283 = vstv %s1268
        %vm1284 = vcmp.le.f32.partialorder %v133, %v1283
        %vm1285 = vcmp.le.f32.partialorder %v134, %v1283
        %v1286 = vsel %vm1284, 1, 0
        %v1287 = vsel %vm1285, 1, 0
        %v1288 = vcvt.s32.f32 %v1286
        %v1289 = vcvt.s32.f32 %v1287
        %v1290 = vadd.f32 %v1288, %v1289
        %1291 = vadd.xlane.f32.xlu0 %v1290
        %v1292 = vpop.xlane.xlu0 %1291
        %v1293 = vrot.slane %v1292, 4
        %v1294 = vadd.f32 %v1292, %v1293
        %v1295 = vrot.slane %v1294, 2
        %v1296 = vadd.f32 %v1294, %v1295
        %v1297 = vrot.slane %v1296, 1
        %v1298 = vadd.f32 %v1296, %v1297
        %s1299 = vtos %v1298
        %v1300 = vstv %s1270
        %vm1301 = vcmp.le.f32.partialorder %v133, %v1300
        %vm1302 = vcmp.le.f32.partialorder %v134, %v1300
        %v1303 = vsel %vm1301, 1, 0
        %v1304 = vsel %vm1302, 1, 0
        %v1305 = vcvt.s32.f32 %v1303
        %v1306 = vcvt.s32.f32 %v1304
        %v1307 = vadd.f32 %v1305, %v1306
        %1308 = vadd.xlane.f32.xlu0 %v1307
        %v1309 = vpop.xlane.xlu0 %1308
        %v1310 = vrot.slane %v1309, 4
        %v1311 = vadd.f32 %v1309, %v1310
        %v1312 = vrot.slane %v1311, 2
        %v1313 = vadd.f32 %v1311, %v1312
        %v1314 = vrot.slane %v1313, 1
        %v1315 = vadd.f32 %v1313, %v1314
        %s1316 = vtos %v1315
        %v1317 = vstv %s1272
        %vm1318 = vcmp.le.f32.partialorder %v133, %v1317
        %vm1319 = vcmp.le.f32.partialorder %v134, %v1317
        %v1320 = vsel %vm1318, 1, 0
        %v1321 = vsel %vm1319, 1, 0
        %v1322 = vcvt.s32.f32 %v1320
        %v1323 = vcvt.s32.f32 %v1321
        %v1324 = vadd.f32 %v1322, %v1323
        %1325 = vadd.xlane.f32.xlu0 %v1324
        %v1326 = vpop.xlane.xlu0 %1325
        %v1327 = vrot.slane %v1326, 4
        %v1328 = vadd.f32 %v1326, %v1327
        %v1329 = vrot.slane %v1328, 2
        %v1330 = vadd.f32 %v1328, %v1329
        %v1331 = vrot.slane %v1330, 1
        %v1332 = vadd.f32 %v1330, %v1331
        %s1333 = vtos %v1332
        %v1334 = vstv %s1274
        %vm1335 = vcmp.le.f32.partialorder %v133, %v1334
        %vm1336 = vcmp.le.f32.partialorder %v134, %v1334
        %v1337 = vsel %vm1335, 1, 0
        %v1338 = vsel %vm1336, 1, 0
        %v1339 = vcvt.s32.f32 %v1337
        %v1340 = vcvt.s32.f32 %v1338
        %v1341 = vadd.f32 %v1339, %v1340
        %1342 = vadd.xlane.f32.xlu0 %v1341
        %v1343 = vpop.xlane.xlu0 %1342
        %v1344 = vrot.slane %v1343, 4
        %v1345 = vadd.f32 %v1343, %v1344
        %v1346 = vrot.slane %v1345, 2
        %v1347 = vadd.f32 %v1345, %v1346
        %v1348 = vrot.slane %v1347, 1
        %v1349 = vadd.f32 %v1347, %v1348
        %s1350 = vtos %v1349
        %v1351 = vstv %s1276
        %vm1352 = vcmp.le.f32.partialorder %v133, %v1351
        %vm1353 = vcmp.le.f32.partialorder %v134, %v1351
        %v1354 = vsel %vm1352, 1, 0
        %v1355 = vsel %vm1353, 1, 0
        %v1356 = vcvt.s32.f32 %v1354
        %v1357 = vcvt.s32.f32 %v1355
        %v1358 = vadd.f32 %v1356, %v1357
        %1359 = vadd.xlane.f32.xlu0 %v1358
        %v1360 = vpop.xlane.xlu0 %1359
        %v1361 = vrot.slane %v1360, 4
        %v1362 = vadd.f32 %v1360, %v1361
        %v1363 = vrot.slane %v1362, 2
        %v1364 = vadd.f32 %v1362, %v1363
        %v1365 = vrot.slane %v1364, 1
        %v1366 = vadd.f32 %v1364, %v1365
        %s1367 = vtos %v1366
        %v1368 = vstv %s1278
        %vm1369 = vcmp.le.f32.partialorder %v133, %v1368
        %vm1370 = vcmp.le.f32.partialorder %v134, %v1368
        %v1371 = vsel %vm1369, 1, 0
        %v1372 = vsel %vm1370, 1, 0
        %v1373 = vcvt.s32.f32 %v1371
        %v1374 = vcvt.s32.f32 %v1372
        %v1375 = vadd.f32 %v1373, %v1374
        %1376 = vadd.xlane.f32.xlu0 %v1375
        %v1377 = vpop.xlane.xlu0 %1376
        %v1378 = vrot.slane %v1377, 4
        %v1379 = vadd.f32 %v1377, %v1378
        %v1380 = vrot.slane %v1379, 2
        %v1381 = vadd.f32 %v1379, %v1380
        %v1382 = vrot.slane %v1381, 1
        %v1383 = vadd.f32 %v1381, %v1382
        %s1384 = vtos %v1383
        %v1385 = vstv %s1280
        %vm1386 = vcmp.le.f32.partialorder %v133, %v1385
        %vm1387 = vcmp.le.f32.partialorder %v134, %v1385
        %v1388 = vsel %vm1386, 1, 0
        %v1389 = vsel %vm1387, 1, 0
        %v1390 = vcvt.s32.f32 %v1388
        %v1391 = vcvt.s32.f32 %v1389
        %v1392 = vadd.f32 %v1390, %v1391
        %1393 = vadd.xlane.f32.xlu0 %v1392
        %v1394 = vpop.xlane.xlu0 %1393
        %v1395 = vrot.slane %v1394, 4
        %v1396 = vadd.f32 %v1394, %v1395
        %v1397 = vrot.slane %v1396, 2
        %v1398 = vadd.f32 %v1396, %v1397
        %v1399 = vrot.slane %v1398, 1
        %v1400 = vadd.f32 %v1398, %v1399
        %s1401 = vtos %v1400
        %v1402 = vstv %s1282
        %vm1403 = vcmp.le.f32.partialorder %v133, %v1402
        %vm1404 = vcmp.le.f32.partialorder %v134, %v1402
        %v1405 = vsel %vm1403, 1, 0
        %v1406 = vsel %vm1404, 1, 0
        %v1407 = vcvt.s32.f32 %v1405
        %v1408 = vcvt.s32.f32 %v1406
        %v1409 = vadd.f32 %v1407, %v1408
        %1410 = vadd.xlane.f32.xlu0 %v1409
        %v1411 = vpop.xlane.xlu0 %1410
        %v1412 = vrot.slane %v1411, 4
        %v1413 = vadd.f32 %v1411, %v1412
        %v1414 = vrot.slane %v1413, 2
        %v1415 = vadd.f32 %v1413, %v1414
        %v1416 = vrot.slane %v1415, 1
        %v1417 = vadd.f32 %v1415, %v1416
        %s1418 = vtos %v1417
        %p1419 = scmp.lt.f32.partialorder %s1299, 2046.0
        %s1420 = smax.f32 %s1263, %s1268
        %s1421 = scalar_select %p1419, %s1420, %s1263
        %s1422 = smin.f32 %s1265, %s1268
        %s1423 = scalar_select %p1419, %s1265, %s1422
        %p1424 = scmp.lt.f32.partialorder %s1316, 2046.0
        %s1425 = smax.f32 %s1421, %s1270
        %s1426 = scalar_select %p1424, %s1425, %s1421
        %s1427 = smin.f32 %s1423, %s1270
        %s1428 = scalar_select %p1424, %s1423, %s1427
        %p1429 = scmp.lt.f32.partialorder %s1333, 2046.0
        %s1430 = smax.f32 %s1426, %s1272
        %s1431 = scalar_select %p1429, %s1430, %s1426
        %s1432 = smin.f32 %s1428, %s1272
        %s1433 = scalar_select %p1429, %s1428, %s1432
        %p1434 = scmp.lt.f32.partialorder %s1350, 2046.0
        %s1435 = smax.f32 %s1431, %s1274
        %s1436 = scalar_select %p1434, %s1435, %s1431
        %s1437 = smin.f32 %s1433, %s1274
        %s1438 = scalar_select %p1434, %s1433, %s1437
        %p1439 = scmp.lt.f32.partialorder %s1367, 2046.0
        %s1440 = smax.f32 %s1436, %s1276
        %s1441 = scalar_select %p1439, %s1440, %s1436
        %s1442 = smin.f32 %s1438, %s1276
        %s1443 = scalar_select %p1439, %s1438, %s1442
        %p1444 = scmp.lt.f32.partialorder %s1384, 2046.0
        %s1445 = smax.f32 %s1441, %s1278
        %s1446 = scalar_select %p1444, %s1445, %s1441
        %s1447 = smin.f32 %s1443, %s1278
        %s1448 = scalar_select %p1444, %s1443, %s1447
        %p1449 = scmp.lt.f32.partialorder %s1401, 2046.0
        %s1450 = smax.f32 %s1446, %s1280
        %s1451 = scalar_select %p1449, %s1450, %s1446
        %s1452 = smin.f32 %s1448, %s1280
        %s1453 = scalar_select %p1449, %s1448, %s1452
        %p1454 = scmp.lt.f32.partialorder %s1418, 2046.0
        %s1455 = smax.f32 %s1451, %s1282
        %s1456 = scalar_select %p1454, %s1455, %s1451
        %s1457 = smin.f32 %s1453, %s1282
        %s1458 = scalar_select %p1454, %s1453, %s1457
        %s1459 = ssub.f32 %s1458, %s1456
        %s1460 = smul.f32 %s1459, 0.11111111
        %s1461 = sadd.f32 %s1456, %s1460
        %s1462 = smul.f32 %s1459, 0.22222222
        %s1463 = sadd.f32 %s1456, %s1462
        %s1464 = smul.f32 %s1459, 0.33333334
        %s1465 = sadd.f32 %s1456, %s1464
        %s1466 = smul.f32 %s1459, 0.44444445
        %s1467 = sadd.f32 %s1456, %s1466
        %s1468 = smul.f32 %s1459, 0.5555556
        %s1469 = sadd.f32 %s1456, %s1468
        %s1470 = smul.f32 %s1459, 0.6666667
        %s1471 = sadd.f32 %s1456, %s1470
        %s1472 = smul.f32 %s1459, 0.7777778
        %s1473 = sadd.f32 %s1456, %s1472
        %s1474 = smul.f32 %s1459, 0.8888889
        %s1475 = sadd.f32 %s1456, %s1474
        %v1476 = vstv %s1461
        %vm1477 = vcmp.le.f32.partialorder %v133, %v1476
        %vm1478 = vcmp.le.f32.partialorder %v134, %v1476
        %v1479 = vsel %vm1477, 1, 0
        %v1480 = vsel %vm1478, 1, 0
        %v1481 = vcvt.s32.f32 %v1479
        %v1482 = vcvt.s32.f32 %v1480
        %v1483 = vadd.f32 %v1481, %v1482
        %1484 = vadd.xlane.f32.xlu0 %v1483
        %v1485 = vpop.xlane.xlu0 %1484
        %v1486 = vrot.slane %v1485, 4
        %v1487 = vadd.f32 %v1485, %v1486
        %v1488 = vrot.slane %v1487, 2
        %v1489 = vadd.f32 %v1487, %v1488
        %v1490 = vrot.slane %v1489, 1
        %v1491 = vadd.f32 %v1489, %v1490
        %s1492 = vtos %v1491
        %v1493 = vstv %s1463
        %vm1494 = vcmp.le.f32.partialorder %v133, %v1493
        %vm1495 = vcmp.le.f32.partialorder %v134, %v1493
        %v1496 = vsel %vm1494, 1, 0
        %v1497 = vsel %vm1495, 1, 0
        %v1498 = vcvt.s32.f32 %v1496
        %v1499 = vcvt.s32.f32 %v1497
        %v1500 = vadd.f32 %v1498, %v1499
        %1501 = vadd.xlane.f32.xlu0 %v1500
        %v1502 = vpop.xlane.xlu0 %1501
        %v1503 = vrot.slane %v1502, 4
        %v1504 = vadd.f32 %v1502, %v1503
        %v1505 = vrot.slane %v1504, 2
        %v1506 = vadd.f32 %v1504, %v1505
        %v1507 = vrot.slane %v1506, 1
        %v1508 = vadd.f32 %v1506, %v1507
        %s1509 = vtos %v1508
        %v1510 = vstv %s1465
        %vm1511 = vcmp.le.f32.partialorder %v133, %v1510
        %vm1512 = vcmp.le.f32.partialorder %v134, %v1510
        %v1513 = vsel %vm1511, 1, 0
        %v1514 = vsel %vm1512, 1, 0
        %v1515 = vcvt.s32.f32 %v1513
        %v1516 = vcvt.s32.f32 %v1514
        %v1517 = vadd.f32 %v1515, %v1516
        %1518 = vadd.xlane.f32.xlu0 %v1517
        %v1519 = vpop.xlane.xlu0 %1518
        %v1520 = vrot.slane %v1519, 4
        %v1521 = vadd.f32 %v1519, %v1520
        %v1522 = vrot.slane %v1521, 2
        %v1523 = vadd.f32 %v1521, %v1522
        %v1524 = vrot.slane %v1523, 1
        %v1525 = vadd.f32 %v1523, %v1524
        %s1526 = vtos %v1525
        %v1527 = vstv %s1467
        %vm1528 = vcmp.le.f32.partialorder %v133, %v1527
        %vm1529 = vcmp.le.f32.partialorder %v134, %v1527
        %v1530 = vsel %vm1528, 1, 0
        %v1531 = vsel %vm1529, 1, 0
        %v1532 = vcvt.s32.f32 %v1530
        %v1533 = vcvt.s32.f32 %v1531
        %v1534 = vadd.f32 %v1532, %v1533
        %1535 = vadd.xlane.f32.xlu0 %v1534
        %v1536 = vpop.xlane.xlu0 %1535
        %v1537 = vrot.slane %v1536, 4
        %v1538 = vadd.f32 %v1536, %v1537
        %v1539 = vrot.slane %v1538, 2
        %v1540 = vadd.f32 %v1538, %v1539
        %v1541 = vrot.slane %v1540, 1
        %v1542 = vadd.f32 %v1540, %v1541
        %s1543 = vtos %v1542
        %v1544 = vstv %s1469
        %vm1545 = vcmp.le.f32.partialorder %v133, %v1544
        %vm1546 = vcmp.le.f32.partialorder %v134, %v1544
        %v1547 = vsel %vm1545, 1, 0
        %v1548 = vsel %vm1546, 1, 0
        %v1549 = vcvt.s32.f32 %v1547
        %v1550 = vcvt.s32.f32 %v1548
        %v1551 = vadd.f32 %v1549, %v1550
        %1552 = vadd.xlane.f32.xlu0 %v1551
        %v1553 = vpop.xlane.xlu0 %1552
        %v1554 = vrot.slane %v1553, 4
        %v1555 = vadd.f32 %v1553, %v1554
        %v1556 = vrot.slane %v1555, 2
        %v1557 = vadd.f32 %v1555, %v1556
        %v1558 = vrot.slane %v1557, 1
        %v1559 = vadd.f32 %v1557, %v1558
        %s1560 = vtos %v1559
        %v1561 = vstv %s1471
        %vm1562 = vcmp.le.f32.partialorder %v133, %v1561
        %vm1563 = vcmp.le.f32.partialorder %v134, %v1561
        %v1564 = vsel %vm1562, 1, 0
        %v1565 = vsel %vm1563, 1, 0
        %v1566 = vcvt.s32.f32 %v1564
        %v1567 = vcvt.s32.f32 %v1565
        %v1568 = vadd.f32 %v1566, %v1567
        %1569 = vadd.xlane.f32.xlu0 %v1568
        %v1570 = vpop.xlane.xlu0 %1569
        %v1571 = vrot.slane %v1570, 4
        %v1572 = vadd.f32 %v1570, %v1571
        %v1573 = vrot.slane %v1572, 2
        %v1574 = vadd.f32 %v1572, %v1573
        %v1575 = vrot.slane %v1574, 1
        %v1576 = vadd.f32 %v1574, %v1575
        %s1577 = vtos %v1576
        %v1578 = vstv %s1473
        %vm1579 = vcmp.le.f32.partialorder %v133, %v1578
        %vm1580 = vcmp.le.f32.partialorder %v134, %v1578
        %v1581 = vsel %vm1579, 1, 0
        %v1582 = vsel %vm1580, 1, 0
        %v1583 = vcvt.s32.f32 %v1581
        %v1584 = vcvt.s32.f32 %v1582
        %v1585 = vadd.f32 %v1583, %v1584
        %1586 = vadd.xlane.f32.xlu0 %v1585
        %v1587 = vpop.xlane.xlu0 %1586
        %v1588 = vrot.slane %v1587, 4
        %v1589 = vadd.f32 %v1587, %v1588
        %v1590 = vrot.slane %v1589, 2
        %v1591 = vadd.f32 %v1589, %v1590
        %v1592 = vrot.slane %v1591, 1
        %v1593 = vadd.f32 %v1591, %v1592
        %s1594 = vtos %v1593
        %v1595 = vstv %s1475
        %vm1596 = vcmp.le.f32.partialorder %v133, %v1595
        %vm1597 = vcmp.le.f32.partialorder %v134, %v1595
        %v1598 = vsel %vm1596, 1, 0
        %v1599 = vsel %vm1597, 1, 0
        %v1600 = vcvt.s32.f32 %v1598
        %v1601 = vcvt.s32.f32 %v1599
        %v1602 = vadd.f32 %v1600, %v1601
        %1603 = vadd.xlane.f32.xlu0 %v1602
        %v1604 = vpop.xlane.xlu0 %1603
        %v1605 = vrot.slane %v1604, 4
        %v1606 = vadd.f32 %v1604, %v1605
        %v1607 = vrot.slane %v1606, 2
        %v1608 = vadd.f32 %v1606, %v1607
        %v1609 = vrot.slane %v1608, 1
        %v1610 = vadd.f32 %v1608, %v1609
        %s1611 = vtos %v1610
        %p1612 = scmp.lt.f32.partialorder %s1492, 2046.0
        %s1613 = smax.f32 %s1456, %s1461
        %s1614 = scalar_select %p1612, %s1613, %s1456
        %s1615 = smin.f32 %s1458, %s1461
        %s1616 = scalar_select %p1612, %s1458, %s1615
        %p1617 = scmp.lt.f32.partialorder %s1509, 2046.0
        %s1618 = smax.f32 %s1614, %s1463
        %s1619 = scalar_select %p1617, %s1618, %s1614
        %s1620 = smin.f32 %s1616, %s1463
        %s1621 = scalar_select %p1617, %s1616, %s1620
        %p1622 = scmp.lt.f32.partialorder %s1526, 2046.0
        %s1623 = smax.f32 %s1619, %s1465
        %s1624 = scalar_select %p1622, %s1623, %s1619
        %s1625 = smin.f32 %s1621, %s1465
        %s1626 = scalar_select %p1622, %s1621, %s1625
        %p1627 = scmp.lt.f32.partialorder %s1543, 2046.0
        %s1628 = smax.f32 %s1624, %s1467
        %s1629 = scalar_select %p1627, %s1628, %s1624
        %s1630 = smin.f32 %s1626, %s1467
        %s1631 = scalar_select %p1627, %s1626, %s1630
        %p1632 = scmp.lt.f32.partialorder %s1560, 2046.0
        %s1633 = smax.f32 %s1629, %s1469
        %s1634 = scalar_select %p1632, %s1633, %s1629
        %s1635 = smin.f32 %s1631, %s1469
        %s1636 = scalar_select %p1632, %s1631, %s1635
        %p1637 = scmp.lt.f32.partialorder %s1577, 2046.0
        %s1638 = smax.f32 %s1634, %s1471
        %s1639 = scalar_select %p1637, %s1638, %s1634
        %s1640 = smin.f32 %s1636, %s1471
        %s1641 = scalar_select %p1637, %s1636, %s1640
        %p1642 = scmp.lt.f32.partialorder %s1594, 2046.0
        %s1643 = smax.f32 %s1639, %s1473
        %s1644 = scalar_select %p1642, %s1643, %s1639
        %s1645 = smin.f32 %s1641, %s1473
        %s1646 = scalar_select %p1642, %s1641, %s1645
        %p1647 = scmp.lt.f32.partialorder %s1611, 2046.0
        %s1648 = smax.f32 %s1644, %s1475
        %s1649 = scalar_select %p1647, %s1648, %s1644
        %s1650 = smin.f32 %s1646, %s1475
        %s1651 = scalar_select %p1647, %s1646, %s1650
        %s1652 = ssub.f32 %s1651, %s1649
        %s1653 = smul.f32 %s1652, 0.11111111
        %s1654 = sadd.f32 %s1649, %s1653
        %s1655 = smul.f32 %s1652, 0.22222222
        %s1656 = sadd.f32 %s1649, %s1655
        %s1657 = smul.f32 %s1652, 0.33333334
        %s1658 = sadd.f32 %s1649, %s1657
        %s1659 = smul.f32 %s1652, 0.44444445
        %s1660 = sadd.f32 %s1649, %s1659
        %s1661 = smul.f32 %s1652, 0.5555556
        %s1662 = sadd.f32 %s1649, %s1661
        %s1663 = smul.f32 %s1652, 0.6666667
        %s1664 = sadd.f32 %s1649, %s1663
        %s1665 = smul.f32 %s1652, 0.7777778
        %s1666 = sadd.f32 %s1649, %s1665
        %s1667 = smul.f32 %s1652, 0.8888889
        %s1668 = sadd.f32 %s1649, %s1667
        %v1669 = vstv %s1654
        %vm1670 = vcmp.le.f32.partialorder %v133, %v1669
        %vm1671 = vcmp.le.f32.partialorder %v134, %v1669
        %v1672 = vsel %vm1670, 1, 0
        %v1673 = vsel %vm1671, 1, 0
        %v1674 = vcvt.s32.f32 %v1672
        %v1675 = vcvt.s32.f32 %v1673
        %v1676 = vadd.f32 %v1674, %v1675
        %1677 = vadd.xlane.f32.xlu0 %v1676
        %v1678 = vpop.xlane.xlu0 %1677
        %v1679 = vrot.slane %v1678, 4
        %v1680 = vadd.f32 %v1678, %v1679
        %v1681 = vrot.slane %v1680, 2
        %v1682 = vadd.f32 %v1680, %v1681
        %v1683 = vrot.slane %v1682, 1
        %v1684 = vadd.f32 %v1682, %v1683
        %s1685 = vtos %v1684
        %v1686 = vstv %s1656
        %vm1687 = vcmp.le.f32.partialorder %v133, %v1686
        %vm1688 = vcmp.le.f32.partialorder %v134, %v1686
        %v1689 = vsel %vm1687, 1, 0
        %v1690 = vsel %vm1688, 1, 0
        %v1691 = vcvt.s32.f32 %v1689
        %v1692 = vcvt.s32.f32 %v1690
        %v1693 = vadd.f32 %v1691, %v1692
        %1694 = vadd.xlane.f32.xlu0 %v1693
        %v1695 = vpop.xlane.xlu0 %1694
        %v1696 = vrot.slane %v1695, 4
        %v1697 = vadd.f32 %v1695, %v1696
        %v1698 = vrot.slane %v1697, 2
        %v1699 = vadd.f32 %v1697, %v1698
        %v1700 = vrot.slane %v1699, 1
        %v1701 = vadd.f32 %v1699, %v1700
        %s1702 = vtos %v1701
        %v1703 = vstv %s1658
        %vm1704 = vcmp.le.f32.partialorder %v133, %v1703
        %vm1705 = vcmp.le.f32.partialorder %v134, %v1703
        %v1706 = vsel %vm1704, 1, 0
        %v1707 = vsel %vm1705, 1, 0
        %v1708 = vcvt.s32.f32 %v1706
        %v1709 = vcvt.s32.f32 %v1707
        %v1710 = vadd.f32 %v1708, %v1709
        %1711 = vadd.xlane.f32.xlu0 %v1710
        %v1712 = vpop.xlane.xlu0 %1711
        %v1713 = vrot.slane %v1712, 4
        %v1714 = vadd.f32 %v1712, %v1713
        %v1715 = vrot.slane %v1714, 2
        %v1716 = vadd.f32 %v1714, %v1715
        %v1717 = vrot.slane %v1716, 1
        %v1718 = vadd.f32 %v1716, %v1717
        %s1719 = vtos %v1718
        %v1720 = vstv %s1660
        %vm1721 = vcmp.le.f32.partialorder %v133, %v1720
        %vm1722 = vcmp.le.f32.partialorder %v134, %v1720
        %v1723 = vsel %vm1721, 1, 0
        %v1724 = vsel %vm1722, 1, 0
        %v1725 = vcvt.s32.f32 %v1723
        %v1726 = vcvt.s32.f32 %v1724
        %v1727 = vadd.f32 %v1725, %v1726
        %1728 = vadd.xlane.f32.xlu0 %v1727
        %v1729 = vpop.xlane.xlu0 %1728
        %v1730 = vrot.slane %v1729, 4
        %v1731 = vadd.f32 %v1729, %v1730
        %v1732 = vrot.slane %v1731, 2
        %v1733 = vadd.f32 %v1731, %v1732
        %v1734 = vrot.slane %v1733, 1
        %v1735 = vadd.f32 %v1733, %v1734
        %s1736 = vtos %v1735
        %v1737 = vstv %s1662
        %vm1738 = vcmp.le.f32.partialorder %v133, %v1737
        %vm1739 = vcmp.le.f32.partialorder %v134, %v1737
        %v1740 = vsel %vm1738, 1, 0
        %v1741 = vsel %vm1739, 1, 0
        %v1742 = vcvt.s32.f32 %v1740
        %v1743 = vcvt.s32.f32 %v1741
        %v1744 = vadd.f32 %v1742, %v1743
        %1745 = vadd.xlane.f32.xlu0 %v1744
        %v1746 = vpop.xlane.xlu0 %1745
        %v1747 = vrot.slane %v1746, 4
        %v1748 = vadd.f32 %v1746, %v1747
        %v1749 = vrot.slane %v1748, 2
        %v1750 = vadd.f32 %v1748, %v1749
        %v1751 = vrot.slane %v1750, 1
        %v1752 = vadd.f32 %v1750, %v1751
        %s1753 = vtos %v1752
        %v1754 = vstv %s1664
        %vm1755 = vcmp.le.f32.partialorder %v133, %v1754
        %vm1756 = vcmp.le.f32.partialorder %v134, %v1754
        %v1757 = vsel %vm1755, 1, 0
        %v1758 = vsel %vm1756, 1, 0
        %v1759 = vcvt.s32.f32 %v1757
        %v1760 = vcvt.s32.f32 %v1758
        %v1761 = vadd.f32 %v1759, %v1760
        %1762 = vadd.xlane.f32.xlu0 %v1761
        %v1763 = vpop.xlane.xlu0 %1762
        %v1764 = vrot.slane %v1763, 4
        %v1765 = vadd.f32 %v1763, %v1764
        %v1766 = vrot.slane %v1765, 2
        %v1767 = vadd.f32 %v1765, %v1766
        %v1768 = vrot.slane %v1767, 1
        %v1769 = vadd.f32 %v1767, %v1768
        %s1770 = vtos %v1769
        %v1771 = vstv %s1666
        %vm1772 = vcmp.le.f32.partialorder %v133, %v1771
        %vm1773 = vcmp.le.f32.partialorder %v134, %v1771
        %v1774 = vsel %vm1772, 1, 0
        %v1775 = vsel %vm1773, 1, 0
        %v1776 = vcvt.s32.f32 %v1774
        %v1777 = vcvt.s32.f32 %v1775
        %v1778 = vadd.f32 %v1776, %v1777
        %1779 = vadd.xlane.f32.xlu0 %v1778
        %v1780 = vpop.xlane.xlu0 %1779
        %v1781 = vrot.slane %v1780, 4
        %v1782 = vadd.f32 %v1780, %v1781
        %v1783 = vrot.slane %v1782, 2
        %v1784 = vadd.f32 %v1782, %v1783
        %v1785 = vrot.slane %v1784, 1
        %v1786 = vadd.f32 %v1784, %v1785
        %s1787 = vtos %v1786
        %v1788 = vstv %s1668
        %vm1789 = vcmp.le.f32.partialorder %v133, %v1788
        %vm1790 = vcmp.le.f32.partialorder %v134, %v1788
        %v1791 = vsel %vm1789, 1, 0
        %v1792 = vsel %vm1790, 1, 0
        %v1793 = vcvt.s32.f32 %v1791
        %v1794 = vcvt.s32.f32 %v1792
        %v1795 = vadd.f32 %v1793, %v1794
        %1796 = vadd.xlane.f32.xlu0 %v1795
        %v1797 = vpop.xlane.xlu0 %1796
        %v1798 = vrot.slane %v1797, 4
        %v1799 = vadd.f32 %v1797, %v1798
        %v1800 = vrot.slane %v1799, 2
        %v1801 = vadd.f32 %v1799, %v1800
        %v1802 = vrot.slane %v1801, 1
        %v1803 = vadd.f32 %v1801, %v1802
        %s1804 = vtos %v1803
        %p1805 = scmp.lt.f32.partialorder %s1685, 2046.0
        %s1806 = smax.f32 %s1649, %s1654
        %s1807 = scalar_select %p1805, %s1806, %s1649
        %s1808 = smin.f32 %s1651, %s1654
        %s1809 = scalar_select %p1805, %s1651, %s1808
        %p1810 = scmp.lt.f32.partialorder %s1702, 2046.0
        %s1811 = smax.f32 %s1807, %s1656
        %s1812 = scalar_select %p1810, %s1811, %s1807
        %s1813 = smin.f32 %s1809, %s1656
        %s1814 = scalar_select %p1810, %s1809, %s1813
        %p1815 = scmp.lt.f32.partialorder %s1719, 2046.0
        %s1816 = smax.f32 %s1812, %s1658
        %s1817 = scalar_select %p1815, %s1816, %s1812
        %s1818 = smin.f32 %s1814, %s1658
        %s1819 = scalar_select %p1815, %s1814, %s1818
        %p1820 = scmp.lt.f32.partialorder %s1736, 2046.0
        %s1821 = smax.f32 %s1817, %s1660
        %s1822 = scalar_select %p1820, %s1821, %s1817
        %s1823 = smin.f32 %s1819, %s1660
        %s1824 = scalar_select %p1820, %s1819, %s1823
        %p1825 = scmp.lt.f32.partialorder %s1753, 2046.0
        %s1826 = smax.f32 %s1822, %s1662
        %s1827 = scalar_select %p1825, %s1826, %s1822
        %s1828 = smin.f32 %s1824, %s1662
        %s1829 = scalar_select %p1825, %s1824, %s1828
        %p1830 = scmp.lt.f32.partialorder %s1770, 2046.0
        %s1831 = smax.f32 %s1827, %s1664
        %s1832 = scalar_select %p1830, %s1831, %s1827
        %s1833 = smin.f32 %s1829, %s1664
        %s1834 = scalar_select %p1830, %s1829, %s1833
        %p1835 = scmp.lt.f32.partialorder %s1787, 2046.0
        %s1836 = smax.f32 %s1832, %s1666
        %s1837 = scalar_select %p1835, %s1836, %s1832
        %s1838 = smin.f32 %s1834, %s1666
        %s1839 = scalar_select %p1835, %s1834, %s1838
        %p1840 = scmp.lt.f32.partialorder %s1804, 2046.0
        %s1841 = smax.f32 %s1837, %s1668
        %s1842 = scalar_select %p1840, %s1841, %s1837
        %s1843 = smin.f32 %s1839, %s1668
        %s1844 = scalar_select %p1840, %s1839, %s1843
        %s1845 = ssub.f32 %s1844, %s1842
        %s1846 = smul.f32 %s1845, 0.11111111
        %s1847 = sadd.f32 %s1842, %s1846
        %s1848 = smul.f32 %s1845, 0.22222222
        %s1849 = sadd.f32 %s1842, %s1848
        %s1850 = smul.f32 %s1845, 0.33333334
        %s1851 = sadd.f32 %s1842, %s1850
        %s1852 = smul.f32 %s1845, 0.44444445
        %s1853 = sadd.f32 %s1842, %s1852
        %s1854 = smul.f32 %s1845, 0.5555556
        %s1855 = sadd.f32 %s1842, %s1854
        %s1856 = smul.f32 %s1845, 0.6666667
        %s1857 = sadd.f32 %s1842, %s1856
        %s1858 = smul.f32 %s1845, 0.7777778
        %s1859 = sadd.f32 %s1842, %s1858
        %s1860 = smul.f32 %s1845, 0.8888889
        %s1861 = sadd.f32 %s1842, %s1860
        %v1862 = vstv %s1847
        %vm1863 = vcmp.le.f32.partialorder %v133, %v1862
        %vm1864 = vcmp.le.f32.partialorder %v134, %v1862
        %v1865 = vsel %vm1863, 1, 0
        %v1866 = vsel %vm1864, 1, 0
        %v1867 = vcvt.s32.f32 %v1865
        %v1868 = vcvt.s32.f32 %v1866
        %v1869 = vadd.f32 %v1867, %v1868
        %1870 = vadd.xlane.f32.xlu0 %v1869
        %v1871 = vpop.xlane.xlu0 %1870
        %v1872 = vrot.slane %v1871, 4
        %v1873 = vadd.f32 %v1871, %v1872
        %v1874 = vrot.slane %v1873, 2
        %v1875 = vadd.f32 %v1873, %v1874
        %v1876 = vrot.slane %v1875, 1
        %v1877 = vadd.f32 %v1875, %v1876
        %s1878 = vtos %v1877
        %v1879 = vstv %s1849
        %vm1880 = vcmp.le.f32.partialorder %v133, %v1879
        %vm1881 = vcmp.le.f32.partialorder %v134, %v1879
        %v1882 = vsel %vm1880, 1, 0
        %v1883 = vsel %vm1881, 1, 0
        %v1884 = vcvt.s32.f32 %v1882
        %v1885 = vcvt.s32.f32 %v1883
        %v1886 = vadd.f32 %v1884, %v1885
        %1887 = vadd.xlane.f32.xlu0 %v1886
        %v1888 = vpop.xlane.xlu0 %1887
        %v1889 = vrot.slane %v1888, 4
        %v1890 = vadd.f32 %v1888, %v1889
        %v1891 = vrot.slane %v1890, 2
        %v1892 = vadd.f32 %v1890, %v1891
        %v1893 = vrot.slane %v1892, 1
        %v1894 = vadd.f32 %v1892, %v1893
        %s1895 = vtos %v1894
        %v1896 = vstv %s1851
        %vm1897 = vcmp.le.f32.partialorder %v133, %v1896
        %vm1898 = vcmp.le.f32.partialorder %v134, %v1896
        %v1899 = vsel %vm1897, 1, 0
        %v1900 = vsel %vm1898, 1, 0
        %v1901 = vcvt.s32.f32 %v1899
        %v1902 = vcvt.s32.f32 %v1900
        %v1903 = vadd.f32 %v1901, %v1902
        %1904 = vadd.xlane.f32.xlu0 %v1903
        %v1905 = vpop.xlane.xlu0 %1904
        %v1906 = vrot.slane %v1905, 4
        %v1907 = vadd.f32 %v1905, %v1906
        %v1908 = vrot.slane %v1907, 2
        %v1909 = vadd.f32 %v1907, %v1908
        %v1910 = vrot.slane %v1909, 1
        %v1911 = vadd.f32 %v1909, %v1910
        %s1912 = vtos %v1911
        %v1913 = vstv %s1853
        %vm1914 = vcmp.le.f32.partialorder %v133, %v1913
        %vm1915 = vcmp.le.f32.partialorder %v134, %v1913
        %v1916 = vsel %vm1914, 1, 0
        %v1917 = vsel %vm1915, 1, 0
        %v1918 = vcvt.s32.f32 %v1916
        %v1919 = vcvt.s32.f32 %v1917
        %v1920 = vadd.f32 %v1918, %v1919
        %1921 = vadd.xlane.f32.xlu0 %v1920
        %v1922 = vpop.xlane.xlu0 %1921
        %v1923 = vrot.slane %v1922, 4
        %v1924 = vadd.f32 %v1922, %v1923
        %v1925 = vrot.slane %v1924, 2
        %v1926 = vadd.f32 %v1924, %v1925
        %v1927 = vrot.slane %v1926, 1
        %v1928 = vadd.f32 %v1926, %v1927
        %s1929 = vtos %v1928
        %v1930 = vstv %s1855
        %vm1931 = vcmp.le.f32.partialorder %v133, %v1930
        %vm1932 = vcmp.le.f32.partialorder %v134, %v1930
        %v1933 = vsel %vm1931, 1, 0
        %v1934 = vsel %vm1932, 1, 0
        %v1935 = vcvt.s32.f32 %v1933
        %v1936 = vcvt.s32.f32 %v1934
        %v1937 = vadd.f32 %v1935, %v1936
        %1938 = vadd.xlane.f32.xlu0 %v1937
        %v1939 = vpop.xlane.xlu0 %1938
        %v1940 = vrot.slane %v1939, 4
        %v1941 = vadd.f32 %v1939, %v1940
        %v1942 = vrot.slane %v1941, 2
        %v1943 = vadd.f32 %v1941, %v1942
        %v1944 = vrot.slane %v1943, 1
        %v1945 = vadd.f32 %v1943, %v1944
        %s1946 = vtos %v1945
        %v1947 = vstv %s1857
        %vm1948 = vcmp.le.f32.partialorder %v133, %v1947
        %vm1949 = vcmp.le.f32.partialorder %v134, %v1947
        %v1950 = vsel %vm1948, 1, 0
        %v1951 = vsel %vm1949, 1, 0
        %v1952 = vcvt.s32.f32 %v1950
        %v1953 = vcvt.s32.f32 %v1951
        %v1954 = vadd.f32 %v1952, %v1953
        %1955 = vadd.xlane.f32.xlu0 %v1954
        %v1956 = vpop.xlane.xlu0 %1955
        %v1957 = vrot.slane %v1956, 4
        %v1958 = vadd.f32 %v1956, %v1957
        %v1959 = vrot.slane %v1958, 2
        %v1960 = vadd.f32 %v1958, %v1959
        %v1961 = vrot.slane %v1960, 1
        %v1962 = vadd.f32 %v1960, %v1961
        %s1963 = vtos %v1962
        %v1964 = vstv %s1859
        %vm1965 = vcmp.le.f32.partialorder %v133, %v1964
        %vm1966 = vcmp.le.f32.partialorder %v134, %v1964
        %v1967 = vsel %vm1965, 1, 0
        %v1968 = vsel %vm1966, 1, 0
        %v1969 = vcvt.s32.f32 %v1967
        %v1970 = vcvt.s32.f32 %v1968
        %v1971 = vadd.f32 %v1969, %v1970
        %1972 = vadd.xlane.f32.xlu0 %v1971
        %v1973 = vpop.xlane.xlu0 %1972
        %v1974 = vrot.slane %v1973, 4
        %v1975 = vadd.f32 %v1973, %v1974
        %v1976 = vrot.slane %v1975, 2
        %v1977 = vadd.f32 %v1975, %v1976
        %v1978 = vrot.slane %v1977, 1
        %v1979 = vadd.f32 %v1977, %v1978
        %s1980 = vtos %v1979
        %v1981 = vstv %s1861
        %vm1982 = vcmp.le.f32.partialorder %v133, %v1981
        %vm1983 = vcmp.le.f32.partialorder %v134, %v1981
        %v1984 = vsel %vm1982, 1, 0
        %v1985 = vsel %vm1983, 1, 0
        %v1986 = vcvt.s32.f32 %v1984
        %v1987 = vcvt.s32.f32 %v1985
        %v1988 = vadd.f32 %v1986, %v1987
        %1989 = vadd.xlane.f32.xlu0 %v1988
        %v1990 = vpop.xlane.xlu0 %1989
        %v1991 = vrot.slane %v1990, 4
        %v1992 = vadd.f32 %v1990, %v1991
        %v1993 = vrot.slane %v1992, 2
        %v1994 = vadd.f32 %v1992, %v1993
        %v1995 = vrot.slane %v1994, 1
        %v1996 = vadd.f32 %v1994, %v1995
        %s1997 = vtos %v1996
        %p1998 = scmp.lt.f32.partialorder %s1878, 2046.0
        %s1999 = smax.f32 %s1842, %s1847
        %s2000 = scalar_select %p1998, %s1999, %s1842
        %s2001 = smin.f32 %s1844, %s1847
        %s2002 = scalar_select %p1998, %s1844, %s2001
        %p2003 = scmp.lt.f32.partialorder %s1895, 2046.0
        %s2004 = smax.f32 %s2000, %s1849
        %s2005 = scalar_select %p2003, %s2004, %s2000
        %s2006 = smin.f32 %s2002, %s1849
        %s2007 = scalar_select %p2003, %s2002, %s2006
        %p2008 = scmp.lt.f32.partialorder %s1912, 2046.0
        %s2009 = smax.f32 %s2005, %s1851
        %s2010 = scalar_select %p2008, %s2009, %s2005
        %s2011 = smin.f32 %s2007, %s1851
        %s2012 = scalar_select %p2008, %s2007, %s2011
        %p2013 = scmp.lt.f32.partialorder %s1929, 2046.0
        %s2014 = smax.f32 %s2010, %s1853
        %s2015 = scalar_select %p2013, %s2014, %s2010
        %s2016 = smin.f32 %s2012, %s1853
        %s2017 = scalar_select %p2013, %s2012, %s2016
        %p2018 = scmp.lt.f32.partialorder %s1946, 2046.0
        %s2019 = smax.f32 %s2015, %s1855
        %s2020 = scalar_select %p2018, %s2019, %s2015
        %s2021 = smin.f32 %s2017, %s1855
        %s2022 = scalar_select %p2018, %s2017, %s2021
        %p2023 = scmp.lt.f32.partialorder %s1963, 2046.0
        %s2024 = smax.f32 %s2020, %s1857
        %s2025 = scalar_select %p2023, %s2024, %s2020
        %s2026 = smin.f32 %s2022, %s1857
        %s2027 = scalar_select %p2023, %s2022, %s2026
        %p2028 = scmp.lt.f32.partialorder %s1980, 2046.0
        %s2029 = smax.f32 %s2025, %s1859
        %s2030 = scalar_select %p2028, %s2029, %s2025
        %s2031 = smin.f32 %s2027, %s1859
        %s2032 = scalar_select %p2028, %s2027, %s2031
        %p2033 = scmp.lt.f32.partialorder %s1997, 2046.0
        %s2034 = smax.f32 %s2030, %s1861
        %s2035 = scalar_select %p2033, %s2034, %s2030
        %s2036 = smin.f32 %s2032, %s1861
        %s2037 = scalar_select %p2033, %s2032, %s2036
        %s2038 = ssub.f32 %s2037, %s2035
        %s2039 = smul.f32 %s2038, 0.11111111
        %s2040 = sadd.f32 %s2035, %s2039
        %s2041 = smul.f32 %s2038, 0.22222222
        %s2042 = sadd.f32 %s2035, %s2041
        %s2043 = smul.f32 %s2038, 0.33333334
        %s2044 = sadd.f32 %s2035, %s2043
        %s2045 = smul.f32 %s2038, 0.44444445
        %s2046 = sadd.f32 %s2035, %s2045
        %s2047 = smul.f32 %s2038, 0.5555556
        %s2048 = sadd.f32 %s2035, %s2047
        %s2049 = smul.f32 %s2038, 0.6666667
        %s2050 = sadd.f32 %s2035, %s2049
        %s2051 = smul.f32 %s2038, 0.7777778
        %s2052 = sadd.f32 %s2035, %s2051
        %s2053 = smul.f32 %s2038, 0.8888889
        %s2054 = sadd.f32 %s2035, %s2053
        %v2055 = vstv %s2040
        %vm2056 = vcmp.le.f32.partialorder %v133, %v2055
        %vm2057 = vcmp.le.f32.partialorder %v134, %v2055
        %v2058 = vsel %vm2056, 1, 0
        %v2059 = vsel %vm2057, 1, 0
        %v2060 = vcvt.s32.f32 %v2058
        %v2061 = vcvt.s32.f32 %v2059
        %v2062 = vadd.f32 %v2060, %v2061
        %2063 = vadd.xlane.f32.xlu0 %v2062
        %v2064 = vpop.xlane.xlu0 %2063
        %v2065 = vrot.slane %v2064, 4
        %v2066 = vadd.f32 %v2064, %v2065
        %v2067 = vrot.slane %v2066, 2
        %v2068 = vadd.f32 %v2066, %v2067
        %v2069 = vrot.slane %v2068, 1
        %v2070 = vadd.f32 %v2068, %v2069
        %s2071 = vtos %v2070
        %v2072 = vstv %s2042
        %vm2073 = vcmp.le.f32.partialorder %v133, %v2072
        %vm2074 = vcmp.le.f32.partialorder %v134, %v2072
        %v2075 = vsel %vm2073, 1, 0
        %v2076 = vsel %vm2074, 1, 0
        %v2077 = vcvt.s32.f32 %v2075
        %v2078 = vcvt.s32.f32 %v2076
        %v2079 = vadd.f32 %v2077, %v2078
        %2080 = vadd.xlane.f32.xlu0 %v2079
        %v2081 = vpop.xlane.xlu0 %2080
        %v2082 = vrot.slane %v2081, 4
        %v2083 = vadd.f32 %v2081, %v2082
        %v2084 = vrot.slane %v2083, 2
        %v2085 = vadd.f32 %v2083, %v2084
        %v2086 = vrot.slane %v2085, 1
        %v2087 = vadd.f32 %v2085, %v2086
        %s2088 = vtos %v2087
        %v2089 = vstv %s2044
        %vm2090 = vcmp.le.f32.partialorder %v133, %v2089
        %vm2091 = vcmp.le.f32.partialorder %v134, %v2089
        %v2092 = vsel %vm2090, 1, 0
        %v2093 = vsel %vm2091, 1, 0
        %v2094 = vcvt.s32.f32 %v2092
        %v2095 = vcvt.s32.f32 %v2093
        %v2096 = vadd.f32 %v2094, %v2095
        %2097 = vadd.xlane.f32.xlu0 %v2096
        %v2098 = vpop.xlane.xlu0 %2097
        %v2099 = vrot.slane %v2098, 4
        %v2100 = vadd.f32 %v2098, %v2099
        %v2101 = vrot.slane %v2100, 2
        %v2102 = vadd.f32 %v2100, %v2101
        %v2103 = vrot.slane %v2102, 1
        %v2104 = vadd.f32 %v2102, %v2103
        %s2105 = vtos %v2104
        %v2106 = vstv %s2046
        %vm2107 = vcmp.le.f32.partialorder %v133, %v2106
        %vm2108 = vcmp.le.f32.partialorder %v134, %v2106
        %v2109 = vsel %vm2107, 1, 0
        %v2110 = vsel %vm2108, 1, 0
        %v2111 = vcvt.s32.f32 %v2109
        %v2112 = vcvt.s32.f32 %v2110
        %v2113 = vadd.f32 %v2111, %v2112
        %2114 = vadd.xlane.f32.xlu0 %v2113
        %v2115 = vpop.xlane.xlu0 %2114
        %v2116 = vrot.slane %v2115, 4
        %v2117 = vadd.f32 %v2115, %v2116
        %v2118 = vrot.slane %v2117, 2
        %v2119 = vadd.f32 %v2117, %v2118
        %v2120 = vrot.slane %v2119, 1
        %v2121 = vadd.f32 %v2119, %v2120
        %s2122 = vtos %v2121
        %v2123 = vstv %s2048
        %vm2124 = vcmp.le.f32.partialorder %v133, %v2123
        %vm2125 = vcmp.le.f32.partialorder %v134, %v2123
        %v2126 = vsel %vm2124, 1, 0
        %v2127 = vsel %vm2125, 1, 0
        %v2128 = vcvt.s32.f32 %v2126
        %v2129 = vcvt.s32.f32 %v2127
        %v2130 = vadd.f32 %v2128, %v2129
        %2131 = vadd.xlane.f32.xlu0 %v2130
        %v2132 = vpop.xlane.xlu0 %2131
        %v2133 = vrot.slane %v2132, 4
        %v2134 = vadd.f32 %v2132, %v2133
        %v2135 = vrot.slane %v2134, 2
        %v2136 = vadd.f32 %v2134, %v2135
        %v2137 = vrot.slane %v2136, 1
        %v2138 = vadd.f32 %v2136, %v2137
        %s2139 = vtos %v2138
        %v2140 = vstv %s2050
        %vm2141 = vcmp.le.f32.partialorder %v133, %v2140
        %vm2142 = vcmp.le.f32.partialorder %v134, %v2140
        %v2143 = vsel %vm2141, 1, 0
        %v2144 = vsel %vm2142, 1, 0
        %v2145 = vcvt.s32.f32 %v2143
        %v2146 = vcvt.s32.f32 %v2144
        %v2147 = vadd.f32 %v2145, %v2146
        %2148 = vadd.xlane.f32.xlu0 %v2147
        %v2149 = vpop.xlane.xlu0 %2148
        %v2150 = vrot.slane %v2149, 4
        %v2151 = vadd.f32 %v2149, %v2150
        %v2152 = vrot.slane %v2151, 2
        %v2153 = vadd.f32 %v2151, %v2152
        %v2154 = vrot.slane %v2153, 1
        %v2155 = vadd.f32 %v2153, %v2154
        %s2156 = vtos %v2155
        %v2157 = vstv %s2052
        %vm2158 = vcmp.le.f32.partialorder %v133, %v2157
        %vm2159 = vcmp.le.f32.partialorder %v134, %v2157
        %v2160 = vsel %vm2158, 1, 0
        %v2161 = vsel %vm2159, 1, 0
        %v2162 = vcvt.s32.f32 %v2160
        %v2163 = vcvt.s32.f32 %v2161
        %v2164 = vadd.f32 %v2162, %v2163
        %2165 = vadd.xlane.f32.xlu0 %v2164
        %v2166 = vpop.xlane.xlu0 %2165
        %v2167 = vrot.slane %v2166, 4
        %v2168 = vadd.f32 %v2166, %v2167
        %v2169 = vrot.slane %v2168, 2
        %v2170 = vadd.f32 %v2168, %v2169
        %v2171 = vrot.slane %v2170, 1
        %v2172 = vadd.f32 %v2170, %v2171
        %s2173 = vtos %v2172
        %v2174 = vstv %s2054
        %vm2175 = vcmp.le.f32.partialorder %v133, %v2174
        %vm2176 = vcmp.le.f32.partialorder %v134, %v2174
        %v2177 = vsel %vm2175, 1, 0
        %v2178 = vsel %vm2176, 1, 0
        %v2179 = vcvt.s32.f32 %v2177
        %v2180 = vcvt.s32.f32 %v2178
        %v2181 = vadd.f32 %v2179, %v2180
        %2182 = vadd.xlane.f32.xlu0 %v2181
        %v2183 = vpop.xlane.xlu0 %2182
        %v2184 = vrot.slane %v2183, 4
        %v2185 = vadd.f32 %v2183, %v2184
        %v2186 = vrot.slane %v2185, 2
        %v2187 = vadd.f32 %v2185, %v2186
        %v2188 = vrot.slane %v2187, 1
        %v2189 = vadd.f32 %v2187, %v2188
        %s2190 = vtos %v2189
        %p2191 = scmp.lt.f32.partialorder %s2071, 2046.0
        %s2192 = smax.f32 %s2035, %s2040
        %s2193 = scalar_select %p2191, %s2192, %s2035
        %s2194 = smin.f32 %s2037, %s2040
        %s2195 = scalar_select %p2191, %s2037, %s2194
        %p2196 = scmp.lt.f32.partialorder %s2088, 2046.0
        %s2197 = smax.f32 %s2193, %s2042
        %s2198 = scalar_select %p2196, %s2197, %s2193
        %s2199 = smin.f32 %s2195, %s2042
        %s2200 = scalar_select %p2196, %s2195, %s2199
        %p2201 = scmp.lt.f32.partialorder %s2105, 2046.0
        %s2202 = smax.f32 %s2198, %s2044
        %s2203 = scalar_select %p2201, %s2202, %s2198
        %s2204 = smin.f32 %s2200, %s2044
        %s2205 = scalar_select %p2201, %s2200, %s2204
        %p2206 = scmp.lt.f32.partialorder %s2122, 2046.0
        %s2207 = smax.f32 %s2203, %s2046
        %s2208 = scalar_select %p2206, %s2207, %s2203
        %s2209 = smin.f32 %s2205, %s2046
        %s2210 = scalar_select %p2206, %s2205, %s2209
        %p2211 = scmp.lt.f32.partialorder %s2139, 2046.0
        %s2212 = smax.f32 %s2208, %s2048
        %s2213 = scalar_select %p2211, %s2212, %s2208
        %s2214 = smin.f32 %s2210, %s2048
        %s2215 = scalar_select %p2211, %s2210, %s2214
        %p2216 = scmp.lt.f32.partialorder %s2156, 2046.0
        %s2217 = smax.f32 %s2213, %s2050
        %s2218 = scalar_select %p2216, %s2217, %s2213
        %s2219 = smin.f32 %s2215, %s2050
        %s2220 = scalar_select %p2216, %s2215, %s2219
        %p2221 = scmp.lt.f32.partialorder %s2173, 2046.0
        %s2222 = smax.f32 %s2218, %s2052
        %s2223 = scalar_select %p2221, %s2222, %s2218
        %s2224 = smin.f32 %s2220, %s2052
        %s2225 = scalar_select %p2221, %s2220, %s2224
        %p2226 = scmp.lt.f32.partialorder %s2190, 2046.0
        %s2227 = smax.f32 %s2223, %s2054
        %s2228 = scalar_select %p2226, %s2227, %s2223
        %s2229 = smin.f32 %s2225, %s2054
        %s2230 = scalar_select %p2226, %s2225, %s2229
        %s2231 = ssub.f32 %s2230, %s2228
        %s2232 = smul.f32 %s2231, 0.11111111
        %s2233 = sadd.f32 %s2228, %s2232
        %s2234 = smul.f32 %s2231, 0.22222222
        %s2235 = sadd.f32 %s2228, %s2234
        %s2236 = smul.f32 %s2231, 0.33333334
        %s2237 = sadd.f32 %s2228, %s2236
        %s2238 = smul.f32 %s2231, 0.44444445
        %s2239 = sadd.f32 %s2228, %s2238
        %s2240 = smul.f32 %s2231, 0.5555556
        %s2241 = sadd.f32 %s2228, %s2240
        %s2242 = smul.f32 %s2231, 0.6666667
        %s2243 = sadd.f32 %s2228, %s2242
        %s2244 = smul.f32 %s2231, 0.7777778
        %s2245 = sadd.f32 %s2228, %s2244
        %s2246 = smul.f32 %s2231, 0.8888889
        %s2247 = sadd.f32 %s2228, %s2246
        %v2248 = vstv %s2233
        %vm2249 = vcmp.le.f32.partialorder %v133, %v2248
        %vm2250 = vcmp.le.f32.partialorder %v134, %v2248
        %v2251 = vsel %vm2249, 1, 0
        %v2252 = vsel %vm2250, 1, 0
        %v2253 = vcvt.s32.f32 %v2251
        %v2254 = vcvt.s32.f32 %v2252
        %v2255 = vadd.f32 %v2253, %v2254
        %2256 = vadd.xlane.f32.xlu0 %v2255
        %v2257 = vpop.xlane.xlu0 %2256
        %v2258 = vrot.slane %v2257, 4
        %v2259 = vadd.f32 %v2257, %v2258
        %v2260 = vrot.slane %v2259, 2
        %v2261 = vadd.f32 %v2259, %v2260
        %v2262 = vrot.slane %v2261, 1
        %v2263 = vadd.f32 %v2261, %v2262
        %s2264 = vtos %v2263
        %v2265 = vstv %s2235
        %vm2266 = vcmp.le.f32.partialorder %v133, %v2265
        %vm2267 = vcmp.le.f32.partialorder %v134, %v2265
        %v2268 = vsel %vm2266, 1, 0
        %v2269 = vsel %vm2267, 1, 0
        %v2270 = vcvt.s32.f32 %v2268
        %v2271 = vcvt.s32.f32 %v2269
        %v2272 = vadd.f32 %v2270, %v2271
        %2273 = vadd.xlane.f32.xlu0 %v2272
        %v2274 = vpop.xlane.xlu0 %2273
        %v2275 = vrot.slane %v2274, 4
        %v2276 = vadd.f32 %v2274, %v2275
        %v2277 = vrot.slane %v2276, 2
        %v2278 = vadd.f32 %v2276, %v2277
        %v2279 = vrot.slane %v2278, 1
        %v2280 = vadd.f32 %v2278, %v2279
        %s2281 = vtos %v2280
        %v2282 = vstv %s2237
        %vm2283 = vcmp.le.f32.partialorder %v133, %v2282
        %vm2284 = vcmp.le.f32.partialorder %v134, %v2282
        %v2285 = vsel %vm2283, 1, 0
        %v2286 = vsel %vm2284, 1, 0
        %v2287 = vcvt.s32.f32 %v2285
        %v2288 = vcvt.s32.f32 %v2286
        %v2289 = vadd.f32 %v2287, %v2288
        %2290 = vadd.xlane.f32.xlu0 %v2289
        %v2291 = vpop.xlane.xlu0 %2290
        %v2292 = vrot.slane %v2291, 4
        %v2293 = vadd.f32 %v2291, %v2292
        %v2294 = vrot.slane %v2293, 2
        %v2295 = vadd.f32 %v2293, %v2294
        %v2296 = vrot.slane %v2295, 1
        %v2297 = vadd.f32 %v2295, %v2296
        %s2298 = vtos %v2297
        %v2299 = vstv %s2239
        %vm2300 = vcmp.le.f32.partialorder %v133, %v2299
        %vm2301 = vcmp.le.f32.partialorder %v134, %v2299
        %v2302 = vsel %vm2300, 1, 0
        %v2303 = vsel %vm2301, 1, 0
        %v2304 = vcvt.s32.f32 %v2302
        %v2305 = vcvt.s32.f32 %v2303
        %v2306 = vadd.f32 %v2304, %v2305
        %2307 = vadd.xlane.f32.xlu0 %v2306
        %v2308 = vpop.xlane.xlu0 %2307
        %v2309 = vrot.slane %v2308, 4
        %v2310 = vadd.f32 %v2308, %v2309
        %v2311 = vrot.slane %v2310, 2
        %v2312 = vadd.f32 %v2310, %v2311
        %v2313 = vrot.slane %v2312, 1
        %v2314 = vadd.f32 %v2312, %v2313
        %s2315 = vtos %v2314
        %v2316 = vstv %s2241
        %vm2317 = vcmp.le.f32.partialorder %v133, %v2316
        %vm2318 = vcmp.le.f32.partialorder %v134, %v2316
        %v2319 = vsel %vm2317, 1, 0
        %v2320 = vsel %vm2318, 1, 0
        %v2321 = vcvt.s32.f32 %v2319
        %v2322 = vcvt.s32.f32 %v2320
        %v2323 = vadd.f32 %v2321, %v2322
        %2324 = vadd.xlane.f32.xlu0 %v2323
        %v2325 = vpop.xlane.xlu0 %2324
        %v2326 = vrot.slane %v2325, 4
        %v2327 = vadd.f32 %v2325, %v2326
        %v2328 = vrot.slane %v2327, 2
        %v2329 = vadd.f32 %v2327, %v2328
        %v2330 = vrot.slane %v2329, 1
        %v2331 = vadd.f32 %v2329, %v2330
        %s2332 = vtos %v2331
        %v2333 = vstv %s2243
        %vm2334 = vcmp.le.f32.partialorder %v133, %v2333
        %vm2335 = vcmp.le.f32.partialorder %v134, %v2333
        %v2336 = vsel %vm2334, 1, 0
        %v2337 = vsel %vm2335, 1, 0
        %v2338 = vcvt.s32.f32 %v2336
        %v2339 = vcvt.s32.f32 %v2337
        %v2340 = vadd.f32 %v2338, %v2339
        %2341 = vadd.xlane.f32.xlu0 %v2340
        %v2342 = vpop.xlane.xlu0 %2341
        %v2343 = vrot.slane %v2342, 4
        %v2344 = vadd.f32 %v2342, %v2343
        %v2345 = vrot.slane %v2344, 2
        %v2346 = vadd.f32 %v2344, %v2345
        %v2347 = vrot.slane %v2346, 1
        %v2348 = vadd.f32 %v2346, %v2347
        %s2349 = vtos %v2348
        %v2350 = vstv %s2245
        %vm2351 = vcmp.le.f32.partialorder %v133, %v2350
        %vm2352 = vcmp.le.f32.partialorder %v134, %v2350
        %v2353 = vsel %vm2351, 1, 0
        %v2354 = vsel %vm2352, 1, 0
        %v2355 = vcvt.s32.f32 %v2353
        %v2356 = vcvt.s32.f32 %v2354
        %v2357 = vadd.f32 %v2355, %v2356
        %2358 = vadd.xlane.f32.xlu0 %v2357
        %v2359 = vpop.xlane.xlu0 %2358
        %v2360 = vrot.slane %v2359, 4
        %v2361 = vadd.f32 %v2359, %v2360
        %v2362 = vrot.slane %v2361, 2
        %v2363 = vadd.f32 %v2361, %v2362
        %v2364 = vrot.slane %v2363, 1
        %v2365 = vadd.f32 %v2363, %v2364
        %s2366 = vtos %v2365
        %v2367 = vstv %s2247
        %vm2368 = vcmp.le.f32.partialorder %v133, %v2367
        %vm2369 = vcmp.le.f32.partialorder %v134, %v2367
        %v2370 = vsel %vm2368, 1, 0
        %v2371 = vsel %vm2369, 1, 0
        %v2372 = vcvt.s32.f32 %v2370
        %v2373 = vcvt.s32.f32 %v2371
        %v2374 = vadd.f32 %v2372, %v2373
        %2375 = vadd.xlane.f32.xlu0 %v2374
        %v2376 = vpop.xlane.xlu0 %2375
        %v2377 = vrot.slane %v2376, 4
        %v2378 = vadd.f32 %v2376, %v2377
        %v2379 = vrot.slane %v2378, 2
        %v2380 = vadd.f32 %v2378, %v2379
        %v2381 = vrot.slane %v2380, 1
        %v2382 = vadd.f32 %v2380, %v2381
        %s2383 = vtos %v2382
        %p2384 = scmp.lt.f32.partialorder %s2264, 2046.0
        %s2385 = smax.f32 %s2228, %s2233
        %s2386 = scalar_select %p2384, %s2385, %s2228
        %p2387 = scmp.lt.f32.partialorder %s2281, 2046.0
        %s2388 = smax.f32 %s2386, %s2235
        %s2389 = scalar_select %p2387, %s2388, %s2386
        %p2390 = scmp.lt.f32.partialorder %s2298, 2046.0
        %s2391 = smax.f32 %s2389, %s2237
        %s2392 = scalar_select %p2390, %s2391, %s2389
        %p2393 = scmp.lt.f32.partialorder %s2315, 2046.0
        %s2394 = smax.f32 %s2392, %s2239
        %s2395 = scalar_select %p2393, %s2394, %s2392
        %p2396 = scmp.lt.f32.partialorder %s2332, 2046.0
        %s2397 = smax.f32 %s2395, %s2241
        %s2398 = scalar_select %p2396, %s2397, %s2395
        %p2399 = scmp.lt.f32.partialorder %s2349, 2046.0
        %s2400 = smax.f32 %s2398, %s2243
        %s2401 = scalar_select %p2399, %s2400, %s2398
        %p2402 = scmp.lt.f32.partialorder %s2366, 2046.0
        %s2403 = smax.f32 %s2401, %s2245
        %s2404 = scalar_select %p2402, %s2403, %s2401
        %p2405 = scmp.lt.f32.partialorder %s2383, 2046.0
        %s2406 = smax.f32 %s2404, %s2247
        %s2407 = scalar_select %p2405, %s2406, %s2404
        %v2408 = vstv %s2407
        %vm2409 = vcmp.gt.f32.partialorder %v133, %v2408
        %vm2410 = vcmp.gt.f32.partialorder %v134, %v2408
        %v2411 = vsel %vm2409, %v133, inf
        %v2412 = vsel %vm2410, %v134, inf
        %v2413 = vmin.f32 %v2411, %v2412
        %2414 = vmin.xlane.f32.xlu0 %v2413
        %v2415 = vpop.xlane.xlu0 %2414
        %v2416 = vrot.slane %v2415, 4
        %v2417 = vmin.f32 %v2415, %v2416
        %v2418 = vrot.slane %v2417, 2
        %v2419 = vmin.f32 %v2417, %v2418
        %v2420 = vrot.slane %v2419, 1
        %v2421 = vmin.f32 %v2419, %v2420
        %s2422 = vtos %v2421
        %s2423 = sld [smem:[#allocation2]]
        %s2424 = smax.f32 %s2423, %s2422
        %s2425 = scalar_lea.smem [#allocation2], 0
        %2426 = sst [smem:[%s2425]] %s2424
        %p2427 = scmp.eq.s32.totalorder %s16, 1
        // Predicated region
        $region33: #{tpu_custom_call.1} parent=23 // pred_check
          %p2428 = pneg %p2427
        $region34: #{tpu_custom_call.1} parent=23 // pred_check_branch
          %2430 = sbr.rel (%p2428) target = $region36
        $region35: #{tpu_custom_call.1} parent=23 // pred_region
          %s2431 = sld [smem:[#allocation2]]
          %v2432 = vstv %s2431
          %vm2433 = vcmask 0
          %2434 = vst.msk [vmem:[#allocation6] sm:$0x1] %vm2433, %v2432
        $region36: #{tpu_custom_call.1} parent=23 // pred_fallthru
          _
        // Predicated region
        $region37: #{tpu_custom_call.1} parent=23 // pred_check
          %p2435 = pneg %p55
        $region38: #{tpu_custom_call.1} parent=23 // pred_check_branch
          %2437 = sbr.rel (%p2435) target = $region40
        $region39: #{tpu_custom_call.1} parent=23 // pred_region
          %s2439 = ssub.s32 16, 16
          %2440 = vsyncadd [#allocation5], %s2439
          %s2442 = sshll.u32 [#allocation6], 4
          %s2443 = int_to_ptr.vmem [resolvable:$true] %s2442
          %2445 = dma.vmem_to_hbm [thread:$0]  %s2443, 16, %s1, [#allocation5]
        $region40: #{tpu_custom_call.1} parent=23 // pred_fallthru
          _
        // Predicated region
        $region41: #{tpu_custom_call.1} parent=23 // pred_check
          %p2446 = pneg %p55
        $region42: #{tpu_custom_call.1} parent=23 // pred_check_branch
          %2448 = sbr.rel (%p2446) target = $region44
        $region43: #{tpu_custom_call.1} parent=23 // pred_region
          %2449 = dma.done [#allocation5], 16
        $region44: #{tpu_custom_call.1} parent=23 // pred_fallthru
          _
      $region24: #{tpu_custom_call.1} parent=5 // pred_fallthru
        _
      %p2450 = scmp.le.s32.totalorder 2, %s11
      // Predicated region
      $region45: #{tpu_custom_call.1} parent=5 // pred_check
        %p2451 = pneg %p2450
      $region46: #{tpu_custom_call.1} parent=5 // pred_check_branch
        %2453 = sbr.rel (%p2451) target = $region48
      $region47: #{tpu_custom_call.1} parent=5 // pred_region
        %s2454 = ssub.s32 %s11, 2
      $region48: #{tpu_custom_call.1} parent=5 // pred_fallthru
        _
    $region6: #{tpu_custom_call.1} parent=1 // loop_footer
      %s15 = sadd.s32 1, %s11
    $region7: #{tpu_custom_call.1} parent=1 // loop_footer_branch
      %10 = sbr.rel target = $region3
    $region8: #{tpu_custom_call.1} parent=1 // loop_exit
      _
    %2455 = vsyncpa [#allocation4], 1
    %s2456 = scalar_lea.sflag [#allocation4], 1
    %2457 = vsyncpa %s2456, 1
    %2458 = vsyncpa [#allocation5], 1
    %s2459 = scalar_lea.sflag [#allocation5], 1
    %2460 = vsyncpa %s2459, 1

</llo_original>
